<compile_context>
chip_gen: v6e
topology: v6e:2x2x1
jax: 0.10.0
libtpu: 0.0.40
codegen_flags: <defaults>
</compile_context>

<pallas_src>
import functools

import numpy as np
import jax
import jax.numpy as jnp
from jax.experimental import pallas as pl
from jax.experimental.pallas import tpu as pltpu

VARIANCE_BOUND = 0.1
KS = 3
FILTERS = 32
H0, W0 = 20, 10          # input spatial
H1, W1 = 18, 8           # after conv1
H2, W2 = 16, 6           # after conv2
H3, W3 = 14, 4           # after conv3
FLAT = H3 * W3 * FILTERS  # 1792
N_FC = 256
N_OUT = 2
TB = 8                   # batch rows per grid step (padded up to a multiple)


# ------------------------------ fused kernel --------------------------------

def _fused_net_kernel(x_ref, wb1_ref, bb1_ref, wb2_ref, bb2_ref,
                      wb3_ref, bb3_ref, fc1w_ref, fc1b_ref,
                      fc2w_ref, fc2b_ref, bounds_ref,
                      o_ref, h1_ref, h2_ref):
    tb = o_ref.shape[0]          # batch rows in this block
    r0 = x_ref.shape[0]          # tb * 20 input rows
    r1, r2, r3 = r0 - 2, r0 - 4, r0 - 6

    # ---- conv1 + ReLU (banded matmul over width, Cin = 1) ----
    acc = jnp.zeros((r1, W1 * FILTERS), jnp.float32)
    for di in range(KS):
        xw = x_ref[pl.ds(di, r1), :]                        # (r1, 10)
        acc = acc + jnp.dot(xw, wb1_ref[di],
                            preferred_element_type=jnp.float32)
    h1_ref[...] = jnp.maximum(acc + bb1_ref[...], 0.0)      # (r1, 256)

    # ---- conv2 + ReLU ----
    acc = jnp.zeros((r2, W2 * FILTERS), jnp.float32)
    for di in range(KS):
        hw = h1_ref[pl.ds(di, r2), :]                       # (r2, 256)
        acc = acc + jnp.dot(hw, wb2_ref[di],
                            preferred_element_type=jnp.float32)
    h2_ref[...] = jnp.maximum(acc + bb2_ref[...], 0.0)      # (r2, 192)

    # ---- conv3 + ReLU (kept as a value; consumed below) ----
    acc = jnp.zeros((r3, W3 * FILTERS), jnp.float32)
    for di in range(KS):
        hw = h2_ref[pl.ds(di, r3), :]                       # (r3, 192)
        acc = acc + jnp.dot(hw, wb3_ref[di],
                            preferred_element_type=jnp.float32)
    h3 = jnp.maximum(acc + bb3_ref[...], 0.0)               # (r3, 128)

    # ---- flatten: pick row (20*b + i) of h3 for every batch b, i in [0,14) ---
    # (fc1_w rows were pre-permuted at init so this HWC order matches
    #  nn.Flatten's NCHW order.)
    b_idx = jax.lax.broadcasted_iota(jnp.int32, (tb, r3), 0)
    r_idx = jax.lax.broadcasted_iota(jnp.int32, (tb, r3), 1)
    pieces = []
    for i in range(H3):
        sel = (r_idx == (b_idx * H0 + i)).astype(jnp.float32)   # one-hot rows
        pieces.append(jnp.dot(sel, h3,
                              preferred_element_type=jnp.float32))  # (tb, 128)
    flat = jnp.concatenate(pieces, axis=-1)                  # (tb, 1792)

    # ---- fc1 (bf16 weights, f32 accumulate) + ReLU ----
    z1 = jnp.dot(flat.astype(jnp.bfloat16), fc1w_ref[...],
                 preferred_element_type=jnp.float32) + fc1b_ref[...]
    a1 = jnp.maximum(z1, 0.0)                                # (tb, 256)

    # ---- fc2 + sigmoid, then scale: sigmoid(z)*ubound + lbound ----
    z2 = jnp.dot(a1, fc2w_ref[...],
                 preferred_element_type=jnp.float32) + fc2b_ref[...]  # (tb, 2)
    bounds = bounds_ref[...]                                 # (2,2): [[ub],[lb]]
    o_ref[...] = jax.nn.sigmoid(z2) * bounds[0:1, :] + bounds[1:2, :]


# ------------------------------ host wrapper ---------------------------------

@jax.jit
def net_forward(kparams, x_nchw):
    # x_nchw: (B, 1, 20, 10) float32, PyTorch convention
    B = x_nchw.shape[0]
    b_pad = ((B + TB - 1) // TB) * TB
    x = x_nchw.reshape(B, H0, W0).astype(jnp.float32)
    if b_pad != B:
        x = jnp.pad(x, ((0, b_pad - B), (0, 0), (0, 0)))
    x2d = x.reshape(b_pad * H0, W0)          # rows = b*20 + h, lanes = w

    r1 = TB * H0 - 2
    r2 = TB * H0 - 4

    out = pl.pallas_call(
        _fused_net_kernel,
        out_shape=jax.ShapeDtypeStruct((b_pad, N_OUT), jnp.float32),
        grid=(b_pad // TB,),
        in_specs=[
            pl.BlockSpec((TB * H0, W0), lambda i: (i, 0)),                 # x
            pl.BlockSpec((KS, W0, W1 * FILTERS), lambda i: (0, 0, 0)),     # wb1
            pl.BlockSpec((1, W1 * FILTERS), lambda i: (0, 0)),             # bb1
            pl.BlockSpec((KS, W1 * FILTERS, W2 * FILTERS),
                         lambda i: (0, 0, 0)),                             # wb2
            pl.BlockSpec((1, W2 * FILTERS), lambda i: (0, 0)),             # bb2
            pl.BlockSpec((KS, W2 * FILTERS, W3 * FILTERS),
                         lambda i: (0, 0, 0)),                             # wb3
            pl.BlockSpec((1, W3 * FILTERS), lambda i: (0, 0)),             # bb3
            pl.BlockSpec((FLAT, N_FC), lambda i: (0, 0)),                  # fc1_w
            pl.BlockSpec((1, N_FC), lambda i: (0, 0)),                     # fc1_b
            pl.BlockSpec((N_FC, N_OUT), lambda i: (0, 0)),                 # fc2_w
            pl.BlockSpec((1, N_OUT), lambda i: (0, 0)),                    # fc2_b
            pl.BlockSpec((2, N_OUT), lambda i: (0, 0)),                    # bounds
        ],
        out_specs=pl.BlockSpec((TB, N_OUT), lambda i: (i, 0)),
        scratch_shapes=[
            pltpu.VMEM((r1, W1 * FILTERS), jnp.float32),   # conv1 activations
            pltpu.VMEM((r2, W2 * FILTERS), jnp.float32),   # conv2 activations
        ],
        compiler_params=pltpu.CompilerParams(
            dimension_semantics=("parallel",),
            vmem_limit_bytes=32 * 1024 * 1024),
    )(x2d,
      kparams['wb1'], kparams['bb1'],
      kparams['wb2'], kparams['bb2'],
      kparams['wb3'], kparams['bb3'],
      kparams['fc1_w'], kparams['fc1_b'],
      kparams['fc2_w'], kparams['fc2_b'],
      kparams['bounds'])
    return out[:B]


# ------------------------- parameter init / packing --------------------------

def conv_out_shape(shape, k, s):
    return ((shape[0] - k) // s + 1, (shape[1] - k) // s + 1)


def init_params(key, input_shape=(H0, W0), eps=VARIANCE_BOUND):
    s = conv_out_shape(input_shape, KS, 1)
    s = conv_out_shape(s, KS, 1)
    s = conv_out_shape(s, KS, 1)
    flat_in = s[0] * s[1] * FILTERS            # 1792

    keys = jax.random.split(key, 10)

    def u(k, shape, fan_in):
        bound = 1.0 / float(fan_in) ** 0.5
        return jax.random.uniform(k, shape, jnp.float32, -bound, bound)

    p = {}
    # conv weights stored (KH, KW, Cin, Cout)  (PyTorch is (Cout, Cin, KH, KW))
    p['conv1_w'] = u(keys[0], (KS, KS, 1, FILTERS), 1 * KS * KS)
    p['conv1_b'] = u(keys[1], (1, FILTERS), 1 * KS * KS)
    p['conv2_w'] = u(keys[2], (KS, KS, FILTERS, FILTERS), FILTERS * KS * KS)
    p['conv2_b'] = u(keys[3], (1, FILTERS), FILTERS * KS * KS)
    p['conv3_w'] = u(keys[4], (KS, KS, FILTERS, FILTERS), FILTERS * KS * KS)
    p['conv3_b'] = u(keys[5], (1, FILTERS), FILTERS * KS * KS)
    # fc weights stored (in, out); fc1 rows indexed in PyTorch NCHW-flatten order
    p['fc1_w'] = u(keys[6], (flat_in, N_FC), flat_in)
    p['fc1_b'] = u(keys[7], (1, N_FC), flat_in)
    p['fc2_w'] = u(keys[8], (N_FC, N_OUT), N_FC)
    p['fc2_b'] = u(keys[9], (1, N_OUT), N_FC)
    p['out_ubound'] = jnp.array([[100.0, 1000.0]], jnp.float32)
    p['out_lbound'] = jnp.array([[0.0, eps]], jnp.float32)
    return p


def _band_weights(w, w_out):
    """Conv (3,3,Cin,Cout) -> 3 banded matrices (Win*Cin, Wout*Cout) so that
    out[:, jo*Cout+co] = sum_di in_row_shifted_di @ band[di]."""
    w = np.asarray(w, np.float32)
    kh, kw, cin, cout = w.shape
    w_in = w_out + kw - 1
    band = np.zeros((kh, w_in * cin, w_out * cout), np.float32)
    for di in range(kh):
        for dj in range(kw):
            for jo in range(w_out):
                jw = jo + dj
                band[di, jw * cin:(jw + 1) * cin,
                     jo * cout:(jo + 1) * cout] = w[di, dj]
    return jnp.asarray(band)


def prepare_params(p):
    """One-time host-side repack of the PyTorch-layout params for the kernel."""
    kp = {}
    kp['wb1'] = _band_weights(p['conv1_w'], W1)            # (3, 10, 256)
    kp['bb1'] = jnp.tile(p['conv1_b'], (1, W1))            # (1, 256)
    kp['wb2'] = _band_weights(p['conv2_w'], W2)            # (3, 256, 192)
    kp['bb2'] = jnp.tile(p['conv2_b'], (1, W2))            # (1, 192)
    kp['wb3'] = _band_weights(p['conv3_w'], W3)            # (3, 192, 128)
    kp['bb3'] = jnp.tile(p['conv3_b'], (1, W3))            # (1, 128)

    # fc1: rows are in NCHW-flatten (c,h,w) order; kernel produces (h,w,c)
    # order, so permute rows once here (free at runtime). Stream in bf16.
    k = np.arange(FLAT)
    hi = k // (W3 * FILTERS)
    wi = (k % (W3 * FILTERS)) // FILTERS
    ci = k % FILTERS
    perm = ci * (H3 * W3) + hi * W3 + wi
    fc1_np = np.asarray(p['fc1_w'], np.float32)[perm, :]
    kp['fc1_w'] = jnp.asarray(fc1_np, dtype=jnp.bfloat16)  # (1792, 256) bf16
    kp['fc1_b'] = p['fc1_b']
    kp['fc2_w'] = p['fc2_w']
    kp['fc2_b'] = p['fc2_b']
    kp['bounds'] = jnp.concatenate([p['out_ubound'], p['out_lbound']], axis=0)
    return kp


# ------------------------------ pure-JAX reference ---------------------------

def reference_forward(params, x_nchw):
    def conv(x, w_hwio, b):
        w_oihw = jnp.transpose(w_hwio, (3, 2, 0, 1))
        y = jax.lax.conv_general_dilated(
            x, w_oihw, window_strides=(1, 1), padding='VALID',
            dimension_numbers=('NCHW', 'OIHW', 'NCHW'))
        return jax.nn.relu(y + b.reshape(1, -1, 1, 1))

    h = conv(x_nchw, params['conv1_w'], params['conv1_b'])
    h = conv(h, params['conv2_w'], params['conv2_b'])
    h = conv(h, params['conv3_w'], params['conv3_b'])
    h = h.reshape(h.shape[0], -1)                     # NCHW flatten
    h = jax.nn.relu(h @ params['fc1_w'] + params['fc1_b'])
    z = h @ params['fc2_w'] + params['fc2_b']
    return jax.nn.sigmoid(z) * params['out_ubound'] + params['out_lbound']


# ----------------------------------- main ------------------------------------

if __name__ == "__main__":
    key = jax.random.PRNGKey(0)
    pkey, xkey = jax.random.split(key)
    params = init_params(pkey)
    kparams = prepare_params(params)
    x = jax.random.normal(xkey, (2, 1, H0, W0), jnp.float32)

    out = net_forward(kparams, x)
    out = jax.block_until_ready(out)
    assert out.shape == (2, 2) and out.dtype == jnp.float32

    ref = reference_forward(params, x)
    err = float(jnp.max(jnp.abs(out - ref) / (jnp.abs(ref) + 1.0)))
    assert err < 5e-2, f"mismatch vs reference: {err}"
    print("KERNEL_OK")
</pallas_src>

<mosaic_0001>
module attributes {stable_mosaic.version = 11 : i64} {
  func.func @_fused_net_kernel(%arg0: i32, %arg1: memref<160x10xf32, #tpu.memory_space<vmem>>, %arg2: memref<3x10x256xf32, #tpu.memory_space<vmem>>, %arg3: memref<1x256xf32, #tpu.memory_space<vmem>>, %arg4: memref<3x256x192xf32, #tpu.memory_space<vmem>>, %arg5: memref<1x192xf32, #tpu.memory_space<vmem>>, %arg6: memref<3x192x128xf32, #tpu.memory_space<vmem>>, %arg7: memref<1x128xf32, #tpu.memory_space<vmem>>, %arg8: memref<1792x256xbf16, #tpu.memory_space<vmem>>, %arg9: memref<1x256xf32, #tpu.memory_space<vmem>>, %arg10: memref<256x2xf32, #tpu.memory_space<vmem>>, %arg11: memref<1x2xf32, #tpu.memory_space<vmem>>, %arg12: memref<2x2xf32, #tpu.memory_space<vmem>>, %arg13: memref<8x2xf32, #tpu.memory_space<vmem>>, %arg14: memref<158x256xf32, #tpu.memory_space<vmem>>, %arg15: memref<156x192xf32, #tpu.memory_space<vmem>>) attributes {dimension_semantics = [#tpu.dimension_semantics<parallel>], iteration_bounds = array<i64: 1>, scalar_prefetch = 0 : i64, scratch_operands = 2 : i64, tpu.core_type = #tpu.core_type<tc>, window_params = [{transform_indices = @transform_0, window_bounds = array<i64: 160, 10>}, {pipeline_mode = #tpu.pipeline_mode<synchronous>, transform_indices = @transform_1, window_bounds = array<i64: 3, 10, 256>}, {pipeline_mode = #tpu.pipeline_mode<synchronous>, transform_indices = @transform_2, window_bounds = array<i64: 1, 256>}, {pipeline_mode = #tpu.pipeline_mode<synchronous>, transform_indices = @transform_3, window_bounds = array<i64: 3, 256, 192>}, {pipeline_mode = #tpu.pipeline_mode<synchronous>, transform_indices = @transform_4, window_bounds = array<i64: 1, 192>}, {pipeline_mode = #tpu.pipeline_mode<synchronous>, transform_indices = @transform_5, window_bounds = array<i64: 3, 192, 128>}, {pipeline_mode = #tpu.pipeline_mode<synchronous>, transform_indices = @transform_6, window_bounds = array<i64: 1, 128>}, {pipeline_mode = #tpu.pipeline_mode<synchronous>, transform_indices = @transform_7, window_bounds = array<i64: 1792, 256>}, {pipeline_mode = #tpu.pipeline_mode<synchronous>, transform_indices = @transform_8, window_bounds = array<i64: 1, 256>}, {pipeline_mode = #tpu.pipeline_mode<synchronous>, transform_indices = @transform_9, window_bounds = array<i64: 256, 2>}, {pipeline_mode = #tpu.pipeline_mode<synchronous>, transform_indices = @transform_10, window_bounds = array<i64: 1, 2>}, {pipeline_mode = #tpu.pipeline_mode<synchronous>, transform_indices = @transform_11, window_bounds = array<i64: 2, 2>}, {transform_indices = @transform_12, window_bounds = array<i64: 8, 2>}]} {
    %cst = arith.constant 0.000000e+00 : f32
    %0 = vector.broadcast %cst : f32 to vector<158x256xf32>
    %c0 = arith.constant 0 : index
    %c0_0 = arith.constant 0 : index
    %1 = vector.load %arg1[%c0, %c0_0] : memref<160x10xf32, #tpu.memory_space<vmem>>, vector<158x10xf32>
    %c0_1 = arith.constant 0 : index
    %c0_2 = arith.constant 0 : index
    %c0_3 = arith.constant 0 : index
    %2 = vector.load %arg2[%c0_1, %c0_2, %c0_3] : memref<3x10x256xf32, #tpu.memory_space<vmem>>, vector<1x10x256xf32>
    %3 = vector.shape_cast %2 : vector<1x10x256xf32> to vector<10x256xf32>
    %cst_4 = arith.constant dense<0.000000e+00> : vector<158x256xf32>
    %4 = tpu.matmul %1, %3, %cst_4 {dimension_numbers = #tpu.dot_dimension_numbers<[1], [0], [0], [1], [0, 0, 1, 1], [], []>} : vector<158x10xf32>, vector<10x256xf32>, vector<158x256xf32> -> vector<158x256xf32>
    %5 = arith.addf %0, %4 : vector<158x256xf32>
    %c1 = arith.constant 1 : index
    %c0_5 = arith.constant 0 : index
    %6 = vector.load %arg1[%c1, %c0_5] : memref<160x10xf32, #tpu.memory_space<vmem>>, vector<158x10xf32>
    %c1_6 = arith.constant 1 : index
    %c0_7 = arith.constant 0 : index
    %c0_8 = arith.constant 0 : index
    %7 = vector.load %arg2[%c1_6, %c0_7, %c0_8] : memref<3x10x256xf32, #tpu.memory_space<vmem>>, vector<1x10x256xf32>
    %8 = vector.shape_cast %7 : vector<1x10x256xf32> to vector<10x256xf32>
    %cst_9 = arith.constant dense<0.000000e+00> : vector<158x256xf32>
    %9 = tpu.matmul %6, %8, %cst_9 {dimension_numbers = #tpu.dot_dimension_numbers<[1], [0], [0], [1], [0, 0, 1, 1], [], []>} : vector<158x10xf32>, vector<10x256xf32>, vector<158x256xf32> -> vector<158x256xf32>
    %10 = arith.addf %5, %9 : vector<158x256xf32>
    %c2 = arith.constant 2 : index
    %c0_10 = arith.constant 0 : index
    %11 = vector.load %arg1[%c2, %c0_10] : memref<160x10xf32, #tpu.memory_space<vmem>>, vector<158x10xf32>
    %c2_11 = arith.constant 2 : index
    %c0_12 = arith.constant 0 : index
    %c0_13 = arith.constant 0 : index
    %12 = vector.load %arg2[%c2_11, %c0_12, %c0_13] : memref<3x10x256xf32, #tpu.memory_space<vmem>>, vector<1x10x256xf32>
    %13 = vector.shape_cast %12 : vector<1x10x256xf32> to vector<10x256xf32>
    %cst_14 = arith.constant dense<0.000000e+00> : vector<158x256xf32>
    %14 = tpu.matmul %11, %13, %cst_14 {dimension_numbers = #tpu.dot_dimension_numbers<[1], [0], [0], [1], [0, 0, 1, 1], [], []>} : vector<158x10xf32>, vector<10x256xf32>, vector<158x256xf32> -> vector<158x256xf32>
    %15 = arith.addf %10, %14 : vector<158x256xf32>
    %c0_15 = arith.constant 0 : index
    %c0_16 = arith.constant 0 : index
    %16 = vector.load %arg3[%c0_15, %c0_16] : memref<1x256xf32, #tpu.memory_space<vmem>>, vector<1x256xf32>
    %17 = vector.broadcast %16 : vector<1x256xf32> to vector<158x256xf32>
    %18 = arith.addf %15, %17 : vector<158x256xf32>
    %cst_17 = arith.constant 0.000000e+00 : f32
    %19 = vector.broadcast %cst_17 : f32 to vector<158x256xf32>
    %20 = arith.maximumf %18, %19 : vector<158x256xf32>
    %c0_18 = arith.constant 0 : index
    %c0_19 = arith.constant 0 : index
    %21 = vector.load %arg14[%c0_18, %c0_19] : memref<158x256xf32, #tpu.memory_space<vmem>>, vector<158x256xf32>
    tpu.vector_store %arg14[%c0_18, %c0_19], %20 {strides = array<i32>} : memref<158x256xf32, #tpu.memory_space<vmem>>, vector<158x256xf32>,
    %cst_20 = arith.constant 0.000000e+00 : f32
    %22 = vector.broadcast %cst_20 : f32 to vector<156x192xf32>
    %c0_21 = arith.constant 0 : index
    %c0_22 = arith.constant 0 : index
    %23 = vector.load %arg14[%c0_21, %c0_22] : memref<158x256xf32, #tpu.memory_space<vmem>>, vector<156x256xf32>
    %c0_23 = arith.constant 0 : index
    %c0_24 = arith.constant 0 : index
    %c0_25 = arith.constant 0 : index
    %24 = vector.load %arg4[%c0_23, %c0_24, %c0_25] : memref<3x256x192xf32, #tpu.memory_space<vmem>>, vector<1x256x192xf32>
    %25 = vector.shape_cast %24 : vector<1x256x192xf32> to vector<256x192xf32>
    %cst_26 = arith.constant dense<0.000000e+00> : vector<156x192xf32>
    %26 = tpu.matmul %23, %25, %cst_26 {dimension_numbers = #tpu.dot_dimension_numbers<[1], [0], [0], [1], [0, 0, 1, 1], [], []>} : vector<156x256xf32>, vector<256x192xf32>, vector<156x192xf32> -> vector<156x192xf32>
    %27 = arith.addf %22, %26 : vector<156x192xf32>
    %c1_27 = arith.constant 1 : index
    %c0_28 = arith.constant 0 : index
    %28 = vector.load %arg14[%c1_27, %c0_28] : memref<158x256xf32, #tpu.memory_space<vmem>>, vector<156x256xf32>
    %c1_29 = arith.constant 1 : index
    %c0_30 = arith.constant 0 : index
    %c0_31 = arith.constant 0 : index
    %29 = vector.load %arg4[%c1_29, %c0_30, %c0_31] : memref<3x256x192xf32, #tpu.memory_space<vmem>>, vector<1x256x192xf32>
    %30 = vector.shape_cast %29 : vector<1x256x192xf32> to vector<256x192xf32>
    %cst_32 = arith.constant dense<0.000000e+00> : vector<156x192xf32>
    %31 = tpu.matmul %28, %30, %cst_32 {dimension_numbers = #tpu.dot_dimension_numbers<[1], [0], [0], [1], [0, 0, 1, 1], [], []>} : vector<156x256xf32>, vector<256x192xf32>, vector<156x192xf32> -> vector<156x192xf32>
    %32 = arith.addf %27, %31 : vector<156x192xf32>
    %c2_33 = arith.constant 2 : index
    %c0_34 = arith.constant 0 : index
    %33 = vector.load %arg14[%c2_33, %c0_34] : memref<158x256xf32, #tpu.memory_space<vmem>>, vector<156x256xf32>
    %c2_35 = arith.constant 2 : index
    %c0_36 = arith.constant 0 : index
    %c0_37 = arith.constant 0 : index
    %34 = vector.load %arg4[%c2_35, %c0_36, %c0_37] : memref<3x256x192xf32, #tpu.memory_space<vmem>>, vector<1x256x192xf32>
    %35 = vector.shape_cast %34 : vector<1x256x192xf32> to vector<256x192xf32>
    %cst_38 = arith.constant dense<0.000000e+00> : vector<156x192xf32>
    %36 = tpu.matmul %33, %35, %cst_38 {dimension_numbers = #tpu.dot_dimension_numbers<[1], [0], [0], [1], [0, 0, 1, 1], [], []>} : vector<156x256xf32>, vector<256x192xf32>, vector<156x192xf32> -> vector<156x192xf32>
    %37 = arith.addf %32, %36 : vector<156x192xf32>
    %c0_39 = arith.constant 0 : index
    %c0_40 = arith.constant 0 : index
    %38 = vector.load %arg5[%c0_39, %c0_40] : memref<1x192xf32, #tpu.memory_space<vmem>>, vector<1x192xf32>
    %39 = vector.broadcast %38 : vector<1x192xf32> to vector<156x192xf32>
    %40 = arith.addf %37, %39 : vector<156x192xf32>
    %cst_41 = arith.constant 0.000000e+00 : f32
    %41 = vector.broadcast %cst_41 : f32 to vector<156x192xf32>
    %42 = arith.maximumf %40, %41 : vector<156x192xf32>
    %c0_42 = arith.constant 0 : index
    %c0_43 = arith.constant 0 : index
    %43 = vector.load %arg15[%c0_42, %c0_43] : memref<156x192xf32, #tpu.memory_space<vmem>>, vector<156x192xf32>
    tpu.vector_store %arg15[%c0_42, %c0_43], %42 {strides = array<i32>} : memref<156x192xf32, #tpu.memory_space<vmem>>, vector<156x192xf32>,
    %cst_44 = arith.constant 0.000000e+00 : f32
    %44 = vector.broadcast %cst_44 : f32 to vector<154x128xf32>
    %c0_45 = arith.constant 0 : index
    %c0_46 = arith.constant 0 : index
    %45 = vector.load %arg15[%c0_45, %c0_46] : memref<156x192xf32, #tpu.memory_space<vmem>>, vector<154x192xf32>
    %c0_47 = arith.constant 0 : index
    %c0_48 = arith.constant 0 : index
    %c0_49 = arith.constant 0 : index
    %46 = vector.load %arg6[%c0_47, %c0_48, %c0_49] : memref<3x192x128xf32, #tpu.memory_space<vmem>>, vector<1x192x128xf32>
    %47 = vector.shape_cast %46 : vector<1x192x128xf32> to vector<192x128xf32>
    %cst_50 = arith.constant dense<0.000000e+00> : vector<154x128xf32>
    %48 = tpu.matmul %45, %47, %cst_50 {dimension_numbers = #tpu.dot_dimension_numbers<[1], [0], [0], [1], [0, 0, 1, 1], [], []>} : vector<154x192xf32>, vector<192x128xf32>, vector<154x128xf32> -> vector<154x128xf32>
    %49 = arith.addf %44, %48 : vector<154x128xf32>
    %c1_51 = arith.constant 1 : index
    %c0_52 = arith.constant 0 : index
    %50 = vector.load %arg15[%c1_51, %c0_52] : memref<156x192xf32, #tpu.memory_space<vmem>>, vector<154x192xf32>
    %c1_53 = arith.constant 1 : index
    %c0_54 = arith.constant 0 : index
    %c0_55 = arith.constant 0 : index
    %51 = vector.load %arg6[%c1_53, %c0_54, %c0_55] : memref<3x192x128xf32, #tpu.memory_space<vmem>>, vector<1x192x128xf32>
    %52 = vector.shape_cast %51 : vector<1x192x128xf32> to vector<192x128xf32>
    %cst_56 = arith.constant dense<0.000000e+00> : vector<154x128xf32>
    %53 = tpu.matmul %50, %52, %cst_56 {dimension_numbers = #tpu.dot_dimension_numbers<[1], [0], [0], [1], [0, 0, 1, 1], [], []>} : vector<154x192xf32>, vector<192x128xf32>, vector<154x128xf32> -> vector<154x128xf32>
    %54 = arith.addf %49, %53 : vector<154x128xf32>
    %c2_57 = arith.constant 2 : index
    %c0_58 = arith.constant 0 : index
    %55 = vector.load %arg15[%c2_57, %c0_58] : memref<156x192xf32, #tpu.memory_space<vmem>>, vector<154x192xf32>
    %c2_59 = arith.constant 2 : index
    %c0_60 = arith.constant 0 : index
    %c0_61 = arith.constant 0 : index
    %56 = vector.load %arg6[%c2_59, %c0_60, %c0_61] : memref<3x192x128xf32, #tpu.memory_space<vmem>>, vector<1x192x128xf32>
    %57 = vector.shape_cast %56 : vector<1x192x128xf32> to vector<192x128xf32>
    %cst_62 = arith.constant dense<0.000000e+00> : vector<154x128xf32>
    %58 = tpu.matmul %55, %57, %cst_62 {dimension_numbers = #tpu.dot_dimension_numbers<[1], [0], [0], [1], [0, 0, 1, 1], [], []>} : vector<154x192xf32>, vector<192x128xf32>, vector<154x128xf32> -> vector<154x128xf32>
    %59 = arith.addf %54, %58 : vector<154x128xf32>
    %c0_63 = arith.constant 0 : index
    %c0_64 = arith.constant 0 : index
    %60 = vector.load %arg7[%c0_63, %c0_64] : memref<1x128xf32, #tpu.memory_space<vmem>>, vector<1x128xf32>
    %61 = vector.broadcast %60 : vector<1x128xf32> to vector<154x128xf32>
    %62 = arith.addf %59, %61 : vector<154x128xf32>
    %cst_65 = arith.constant 0.000000e+00 : f32
    %63 = vector.broadcast %cst_65 : f32 to vector<154x128xf32>
    %64 = arith.maximumf %62, %63 : vector<154x128xf32>
    %65 = tpu.iota {dimensions = array<i32: 0>} : vector<8x154xi32>
    %66 = tpu.iota {dimensions = array<i32: 1>} : vector<8x154xi32>
    %c20_i32 = arith.constant 20 : i32
    %67 = vector.broadcast %c20_i32 : i32 to vector<8x154xi32>
    %68 = arith.muli %65, %67 : vector<8x154xi32>
    %c0_i32 = arith.constant 0 : i32
    %69 = vector.broadcast %c0_i32 : i32 to vector<8x154xi32>
    %70 = arith.addi %68, %69 : vector<8x154xi32>
    %71 = arith.cmpi eq, %66, %70 : vector<8x154xi32>
    %72 = arith.extui %71 : vector<8x154xi1> to vector<8x154xi32>
    %73 = arith.sitofp %72 : vector<8x154xi32> to vector<8x154xf32>
    %cst_66 = arith.constant dense<0.000000e+00> : vector<8x128xf32>
    %74 = tpu.matmul %73, %64, %cst_66 {dimension_numbers = #tpu.dot_dimension_numbers<[1], [0], [0], [1], [0, 0, 1, 1], [], []>} : vector<8x154xf32>, vector<154x128xf32>, vector<8x128xf32> -> vector<8x128xf32>
    %c20_i32_67 = arith.constant 20 : i32
    %75 = vector.broadcast %c20_i32_67 : i32 to vector<8x154xi32>
    %76 = arith.muli %65, %75 : vector<8x154xi32>
    %c1_i32 = arith.constant 1 : i32
    %77 = vector.broadcast %c1_i32 : i32 to vector<8x154xi32>
    %78 = arith.addi %76, %77 : vector<8x154xi32>
    %79 = arith.cmpi eq, %66, %78 : vector<8x154xi32>
    %80 = arith.extui %79 : vector<8x154xi1> to vector<8x154xi32>
    %81 = arith.sitofp %80 : vector<8x154xi32> to vector<8x154xf32>
    %cst_68 = arith.constant dense<0.000000e+00> : vector<8x128xf32>
    %82 = tpu.matmul %81, %64, %cst_68 {dimension_numbers = #tpu.dot_dimension_numbers<[1], [0], [0], [1], [0, 0, 1, 1], [], []>} : vector<8x154xf32>, vector<154x128xf32>, vector<8x128xf32> -> vector<8x128xf32>
    %c20_i32_69 = arith.constant 20 : i32
    %83 = vector.broadcast %c20_i32_69 : i32 to vector<8x154xi32>
    %84 = arith.muli %65, %83 : vector<8x154xi32>
    %c2_i32 = arith.constant 2 : i32
    %85 = vector.broadcast %c2_i32 : i32 to vector<8x154xi32>
    %86 = arith.addi %84, %85 : vector<8x154xi32>
    %87 = arith.cmpi eq, %66, %86 : vector<8x154xi32>
    %88 = arith.extui %87 : vector<8x154xi1> to vector<8x154xi32>
    %89 = arith.sitofp %88 : vector<8x154xi32> to vector<8x154xf32>
    %cst_70 = arith.constant dense<0.000000e+00> : vector<8x128xf32>
    %90 = tpu.matmul %89, %64, %cst_70 {dimension_numbers = #tpu.dot_dimension_numbers<[1], [0], [0], [1], [0, 0, 1, 1], [], []>} : vector<8x154xf32>, vector<154x128xf32>, vector<8x128xf32> -> vector<8x128xf32>
    %c20_i32_71 = arith.constant 20 : i32
    %91 = vector.broadcast %c20_i32_71 : i32 to vector<8x154xi32>
    %92 = arith.muli %65, %91 : vector<8x154xi32>
    %c3_i32 = arith.constant 3 : i32
    %93 = vector.broadcast %c3_i32 : i32 to vector<8x154xi32>
    %94 = arith.addi %92, %93 : vector<8x154xi32>
    %95 = arith.cmpi eq, %66, %94 : vector<8x154xi32>
    %96 = arith.extui %95 : vector<8x154xi1> to vector<8x154xi32>
    %97 = arith.sitofp %96 : vector<8x154xi32> to vector<8x154xf32>
    %cst_72 = arith.constant dense<0.000000e+00> : vector<8x128xf32>
    %98 = tpu.matmul %97, %64, %cst_72 {dimension_numbers = #tpu.dot_dimension_numbers<[1], [0], [0], [1], [0, 0, 1, 1], [], []>} : vector<8x154xf32>, vector<154x128xf32>, vector<8x128xf32> -> vector<8x128xf32>
    %c20_i32_73 = arith.constant 20 : i32
    %99 = vector.broadcast %c20_i32_73 : i32 to vector<8x154xi32>
    %100 = arith.muli %65, %99 : vector<8x154xi32>
    %c4_i32 = arith.constant 4 : i32
    %101 = vector.broadcast %c4_i32 : i32 to vector<8x154xi32>
    %102 = arith.addi %100, %101 : vector<8x154xi32>
    %103 = arith.cmpi eq, %66, %102 : vector<8x154xi32>
    %104 = arith.extui %103 : vector<8x154xi1> to vector<8x154xi32>
    %105 = arith.sitofp %104 : vector<8x154xi32> to vector<8x154xf32>
    %cst_74 = arith.constant dense<0.000000e+00> : vector<8x128xf32>
    %106 = tpu.matmul %105, %64, %cst_74 {dimension_numbers = #tpu.dot_dimension_numbers<[1], [0], [0], [1], [0, 0, 1, 1], [], []>} : vector<8x154xf32>, vector<154x128xf32>, vector<8x128xf32> -> vector<8x128xf32>
    %c20_i32_75 = arith.constant 20 : i32
    %107 = vector.broadcast %c20_i32_75 : i32 to vector<8x154xi32>
    %108 = arith.muli %65, %107 : vector<8x154xi32>
    %c5_i32 = arith.constant 5 : i32
    %109 = vector.broadcast %c5_i32 : i32 to vector<8x154xi32>
    %110 = arith.addi %108, %109 : vector<8x154xi32>
    %111 = arith.cmpi eq, %66, %110 : vector<8x154xi32>
    %112 = arith.extui %111 : vector<8x154xi1> to vector<8x154xi32>
    %113 = arith.sitofp %112 : vector<8x154xi32> to vector<8x154xf32>
    %cst_76 = arith.constant dense<0.000000e+00> : vector<8x128xf32>
    %114 = tpu.matmul %113, %64, %cst_76 {dimension_numbers = #tpu.dot_dimension_numbers<[1], [0], [0], [1], [0, 0, 1, 1], [], []>} : vector<8x154xf32>, vector<154x128xf32>, vector<8x128xf32> -> vector<8x128xf32>
    %c20_i32_77 = arith.constant 20 : i32
    %115 = vector.broadcast %c20_i32_77 : i32 to vector<8x154xi32>
    %116 = arith.muli %65, %115 : vector<8x154xi32>
    %c6_i32 = arith.constant 6 : i32
    %117 = vector.broadcast %c6_i32 : i32 to vector<8x154xi32>
    %118 = arith.addi %116, %117 : vector<8x154xi32>
    %119 = arith.cmpi eq, %66, %118 : vector<8x154xi32>
    %120 = arith.extui %119 : vector<8x154xi1> to vector<8x154xi32>
    %121 = arith.sitofp %120 : vector<8x154xi32> to vector<8x154xf32>
    %cst_78 = arith.constant dense<0.000000e+00> : vector<8x128xf32>
    %122 = tpu.matmul %121, %64, %cst_78 {dimension_numbers = #tpu.dot_dimension_numbers<[1], [0], [0], [1], [0, 0, 1, 1], [], []>} : vector<8x154xf32>, vector<154x128xf32>, vector<8x128xf32> -> vector<8x128xf32>
    %c20_i32_79 = arith.constant 20 : i32
    %123 = vector.broadcast %c20_i32_79 : i32 to vector<8x154xi32>
    %124 = arith.muli %65, %123 : vector<8x154xi32>
    %c7_i32 = arith.constant 7 : i32
    %125 = vector.broadcast %c7_i32 : i32 to vector<8x154xi32>
    %126 = arith.addi %124, %125 : vector<8x154xi32>
    %127 = arith.cmpi eq, %66, %126 : vector<8x154xi32>
    %128 = arith.extui %127 : vector<8x154xi1> to vector<8x154xi32>
    %129 = arith.sitofp %128 : vector<8x154xi32> to vector<8x154xf32>
    %cst_80 = arith.constant dense<0.000000e+00> : vector<8x128xf32>
    %130 = tpu.matmul %129, %64, %cst_80 {dimension_numbers = #tpu.dot_dimension_numbers<[1], [0], [0], [1], [0, 0, 1, 1], [], []>} : vector<8x154xf32>, vector<154x128xf32>, vector<8x128xf32> -> vector<8x128xf32>
    %c20_i32_81 = arith.constant 20 : i32
    %131 = vector.broadcast %c20_i32_81 : i32 to vector<8x154xi32>
    %132 = arith.muli %65, %131 : vector<8x154xi32>
    %c8_i32 = arith.constant 8 : i32
    %133 = vector.broadcast %c8_i32 : i32 to vector<8x154xi32>
    %134 = arith.addi %132, %133 : vector<8x154xi32>
    %135 = arith.cmpi eq, %66, %134 : vector<8x154xi32>
    %136 = arith.extui %135 : vector<8x154xi1> to vector<8x154xi32>
    %137 = arith.sitofp %136 : vector<8x154xi32> to vector<8x154xf32>
    %cst_82 = arith.constant dense<0.000000e+00> : vector<8x128xf32>
    %138 = tpu.matmul %137, %64, %cst_82 {dimension_numbers = #tpu.dot_dimension_numbers<[1], [0], [0], [1], [0, 0, 1, 1], [], []>} : vector<8x154xf32>, vector<154x128xf32>, vector<8x128xf32> -> vector<8x128xf32>
    %c20_i32_83 = arith.constant 20 : i32
    %139 = vector.broadcast %c20_i32_83 : i32 to vector<8x154xi32>
    %140 = arith.muli %65, %139 : vector<8x154xi32>
    %c9_i32 = arith.constant 9 : i32
    %141 = vector.broadcast %c9_i32 : i32 to vector<8x154xi32>
    %142 = arith.addi %140, %141 : vector<8x154xi32>
    %143 = arith.cmpi eq, %66, %142 : vector<8x154xi32>
    %144 = arith.extui %143 : vector<8x154xi1> to vector<8x154xi32>
    %145 = arith.sitofp %144 : vector<8x154xi32> to vector<8x154xf32>
    %cst_84 = arith.constant dense<0.000000e+00> : vector<8x128xf32>
    %146 = tpu.matmul %145, %64, %cst_84 {dimension_numbers = #tpu.dot_dimension_numbers<[1], [0], [0], [1], [0, 0, 1, 1], [], []>} : vector<8x154xf32>, vector<154x128xf32>, vector<8x128xf32> -> vector<8x128xf32>
    %c20_i32_85 = arith.constant 20 : i32
    %147 = vector.broadcast %c20_i32_85 : i32 to vector<8x154xi32>
    %148 = arith.muli %65, %147 : vector<8x154xi32>
    %c10_i32 = arith.constant 10 : i32
    %149 = vector.broadcast %c10_i32 : i32 to vector<8x154xi32>
    %150 = arith.addi %148, %149 : vector<8x154xi32>
    %151 = arith.cmpi eq, %66, %150 : vector<8x154xi32>
    %152 = arith.extui %151 : vector<8x154xi1> to vector<8x154xi32>
    %153 = arith.sitofp %152 : vector<8x154xi32> to vector<8x154xf32>
    %cst_86 = arith.constant dense<0.000000e+00> : vector<8x128xf32>
    %154 = tpu.matmul %153, %64, %cst_86 {dimension_numbers = #tpu.dot_dimension_numbers<[1], [0], [0], [1], [0, 0, 1, 1], [], []>} : vector<8x154xf32>, vector<154x128xf32>, vector<8x128xf32> -> vector<8x128xf32>
    %c20_i32_87 = arith.constant 20 : i32
    %155 = vector.broadcast %c20_i32_87 : i32 to vector<8x154xi32>
    %156 = arith.muli %65, %155 : vector<8x154xi32>
    %c11_i32 = arith.constant 11 : i32
    %157 = vector.broadcast %c11_i32 : i32 to vector<8x154xi32>
    %158 = arith.addi %156, %157 : vector<8x154xi32>
    %159 = arith.cmpi eq, %66, %158 : vector<8x154xi32>
    %160 = arith.extui %159 : vector<8x154xi1> to vector<8x154xi32>
    %161 = arith.sitofp %160 : vector<8x154xi32> to vector<8x154xf32>
    %cst_88 = arith.constant dense<0.000000e+00> : vector<8x128xf32>
    %162 = tpu.matmul %161, %64, %cst_88 {dimension_numbers = #tpu.dot_dimension_numbers<[1], [0], [0], [1], [0, 0, 1, 1], [], []>} : vector<8x154xf32>, vector<154x128xf32>, vector<8x128xf32> -> vector<8x128xf32>
    %c20_i32_89 = arith.constant 20 : i32
    %163 = vector.broadcast %c20_i32_89 : i32 to vector<8x154xi32>
    %164 = arith.muli %65, %163 : vector<8x154xi32>
    %c12_i32 = arith.constant 12 : i32
    %165 = vector.broadcast %c12_i32 : i32 to vector<8x154xi32>
    %166 = arith.addi %164, %165 : vector<8x154xi32>
    %167 = arith.cmpi eq, %66, %166 : vector<8x154xi32>
    %168 = arith.extui %167 : vector<8x154xi1> to vector<8x154xi32>
    %169 = arith.sitofp %168 : vector<8x154xi32> to vector<8x154xf32>
    %cst_90 = arith.constant dense<0.000000e+00> : vector<8x128xf32>
    %170 = tpu.matmul %169, %64, %cst_90 {dimension_numbers = #tpu.dot_dimension_numbers<[1], [0], [0], [1], [0, 0, 1, 1], [], []>} : vector<8x154xf32>, vector<154x128xf32>, vector<8x128xf32> -> vector<8x128xf32>
    %c20_i32_91 = arith.constant 20 : i32
    %171 = vector.broadcast %c20_i32_91 : i32 to vector<8x154xi32>
    %172 = arith.muli %65, %171 : vector<8x154xi32>
    %c13_i32 = arith.constant 13 : i32
    %173 = vector.broadcast %c13_i32 : i32 to vector<8x154xi32>
    %174 = arith.addi %172, %173 : vector<8x154xi32>
    %175 = arith.cmpi eq, %66, %174 : vector<8x154xi32>
    %176 = arith.extui %175 : vector<8x154xi1> to vector<8x154xi32>
    %177 = arith.sitofp %176 : vector<8x154xi32> to vector<8x154xf32>
    %cst_92 = arith.constant dense<0.000000e+00> : vector<8x128xf32>
    %178 = tpu.matmul %177, %64, %cst_92 {dimension_numbers = #tpu.dot_dimension_numbers<[1], [0], [0], [1], [0, 0, 1, 1], [], []>} : vector<8x154xf32>, vector<154x128xf32>, vector<8x128xf32> -> vector<8x128xf32>
    %179 = tpu.concatenate %74, %82, %90, %98, %106, %114, %122, %130, %138, %146, %154, %162, %170, %178 in 1 : vector<8x128xf32>, vector<8x128xf32>, vector<8x128xf32>, vector<8x128xf32>, vector<8x128xf32>, vector<8x128xf32>, vector<8x128xf32>, vector<8x128xf32>, vector<8x128xf32>, vector<8x128xf32>, vector<8x128xf32>, vector<8x128xf32>, vector<8x128xf32>, vector<8x128xf32> -> vector<8x1792xf32>
    %180 = arith.truncf %179 : vector<8x1792xf32> to vector<8x1792xbf16>
    %c0_93 = arith.constant 0 : index
    %c0_94 = arith.constant 0 : index
    %181 = vector.load %arg8[%c0_93, %c0_94] : memref<1792x256xbf16, #tpu.memory_space<vmem>>, vector<1792x256xbf16>
    %cst_95 = arith.constant dense<0.000000e+00> : vector<8x256xf32>
    %182 = tpu.matmul %180, %181, %cst_95 {dimension_numbers = #tpu.dot_dimension_numbers<[1], [0], [0], [1], [0, 0, 1, 1], [], []>} : vector<8x1792xbf16>, vector<1792x256xbf16>, vector<8x256xf32> -> vector<8x256xf32>
    %c0_96 = arith.constant 0 : index
    %c0_97 = arith.constant 0 : index
    %183 = vector.load %arg9[%c0_96, %c0_97] : memref<1x256xf32, #tpu.memory_space<vmem>>, vector<1x256xf32>
    %184 = vector.broadcast %183 : vector<1x256xf32> to vector<8x256xf32>
    %185 = arith.addf %182, %184 : vector<8x256xf32>
    %cst_98 = arith.constant 0.000000e+00 : f32
    %186 = vector.broadcast %cst_98 : f32 to vector<8x256xf32>
    %187 = arith.maximumf %185, %186 : vector<8x256xf32>
    %c0_99 = arith.constant 0 : index
    %c0_100 = arith.constant 0 : index
    %188 = vector.load %arg10[%c0_99, %c0_100] : memref<256x2xf32, #tpu.memory_space<vmem>>, vector<256x2xf32>
    %cst_101 = arith.constant dense<0.000000e+00> : vector<8x2xf32>
    %189 = tpu.matmul %187, %188, %cst_101 {dimension_numbers = #tpu.dot_dimension_numbers<[1], [0], [0], [1], [0, 0, 1, 1], [], []>} : vector<8x256xf32>, vector<256x2xf32>, vector<8x2xf32> -> vector<8x2xf32>
    %c0_102 = arith.constant 0 : index
    %c0_103 = arith.constant 0 : index
    %190 = vector.load %arg11[%c0_102, %c0_103] : memref<1x2xf32, #tpu.memory_space<vmem>>, vector<1x2xf32>
    %191 = vector.broadcast %190 : vector<1x2xf32> to vector<8x2xf32>
    %192 = arith.addf %189, %191 : vector<8x2xf32>
    %c0_104 = arith.constant 0 : index
    %c0_105 = arith.constant 0 : index
    %193 = vector.load %arg12[%c0_104, %c0_105] : memref<2x2xf32, #tpu.memory_space<vmem>>, vector<2x2xf32>
    %194 = arith.negf %192 : vector<8x2xf32>
    %195 = math.exp %194 : vector<8x2xf32>
    %cst_106 = arith.constant 1.000000e+00 : f32
    %196 = vector.broadcast %cst_106 : f32 to vector<8x2xf32>
    %197 = arith.addf %196, %195 : vector<8x2xf32>
    %198 = arith.divf %196, %197 : vector<8x2xf32>
    %199 = vector.extract_strided_slice %193 {offsets = [0, 0], sizes = [1, 2], strides = [1, 1]} : vector<2x2xf32> to vector<1x2xf32>
    %200 = vector.broadcast %199 : vector<1x2xf32> to vector<8x2xf32>
    %201 = arith.mulf %198, %200 : vector<8x2xf32>
    %202 = vector.extract_strided_slice %193 {offsets = [1, 0], sizes = [1, 2], strides = [1, 1]} : vector<2x2xf32> to vector<1x2xf32>
    %203 = vector.broadcast %202 : vector<1x2xf32> to vector<8x2xf32>
    %204 = arith.addf %201, %203 : vector<8x2xf32>
    %c0_107 = arith.constant 0 : index
    %c0_108 = arith.constant 0 : index
    %205 = vector.load %arg13[%c0_107, %c0_108] : memref<8x2xf32, #tpu.memory_space<vmem>>, vector<8x2xf32>
    tpu.vector_store %arg13[%c0_107, %c0_108], %204 {strides = array<i32>} : memref<8x2xf32, #tpu.memory_space<vmem>>, vector<8x2xf32>,
    return
  }
  func.func @transform_0(%arg0: i32) -> (i32, i32) {
    %c0_i32 = arith.constant 0 : i32
    %c0_i32_0 = arith.constant 0 : i32
    return %arg0, %c0_i32 : i32, i32
  }
  func.func @transform_1(%arg0: i32) -> (i32, i32, i32) {
    %c0_i32 = arith.constant 0 : i32
    %c0_i32_0 = arith.constant 0 : i32
    %c0_i32_1 = arith.constant 0 : i32
    %c0_i32_2 = arith.constant 0 : i32
    return %c0_i32, %c0_i32_0, %c0_i32_1 : i32, i32, i32
  }
  func.func @transform_2(%arg0: i32) -> (i32, i32) {
    %c0_i32 = arith.constant 0 : i32
    %c0_i32_0 = arith.constant 0 : i32
    %c0_i32_1 = arith.constant 0 : i32
    return %c0_i32, %c0_i32_0 : i32, i32
  }
  func.func @transform_3(%arg0: i32) -> (i32, i32, i32) {
    %c0_i32 = arith.constant 0 : i32
    %c0_i32_0 = arith.constant 0 : i32
    %c0_i32_1 = arith.constant 0 : i32
    %c0_i32_2 = arith.constant 0 : i32
    return %c0_i32, %c0_i32_0, %c0_i32_1 : i32, i32, i32
  }
  func.func @transform_4(%arg0: i32) -> (i32, i32) {
    %c0_i32 = arith.constant 0 : i32
    %c0_i32_0 = arith.constant 0 : i32
    %c0_i32_1 = arith.constant 0 : i32
    return %c0_i32, %c0_i32_0 : i32, i32
  }
  func.func @transform_5(%arg0: i32) -> (i32, i32, i32) {
    %c0_i32 = arith.constant 0 : i32
    %c0_i32_0 = arith.constant 0 : i32
    %c0_i32_1 = arith.constant 0 : i32
    %c0_i32_2 = arith.constant 0 : i32
    return %c0_i32, %c0_i32_0, %c0_i32_1 : i32, i32, i32
  }
  func.func @transform_6(%arg0: i32) -> (i32, i32) {
    %c0_i32 = arith.constant 0 : i32
    %c0_i32_0 = arith.constant 0 : i32
    %c0_i32_1 = arith.constant 0 : i32
    return %c0_i32, %c0_i32_0 : i32, i32
  }
  func.func @transform_7(%arg0: i32) -> (i32, i32) {
    %c0_i32 = arith.constant 0 : i32
    %c0_i32_0 = arith.constant 0 : i32
    %c0_i32_1 = arith.constant 0 : i32
    return %c0_i32, %c0_i32_0 : i32, i32
  }
  func.func @transform_8(%arg0: i32) -> (i32, i32) {
    %c0_i32 = arith.constant 0 : i32
    %c0_i32_0 = arith.constant 0 : i32
    %c0_i32_1 = arith.constant 0 : i32
    return %c0_i32, %c0_i32_0 : i32, i32
  }
  func.func @transform_9(%arg0: i32) -> (i32, i32) {
    %c0_i32 = arith.constant 0 : i32
    %c0_i32_0 = arith.constant 0 : i32
    %c0_i32_1 = arith.constant 0 : i32
    return %c0_i32, %c0_i32_0 : i32, i32
  }
  func.func @transform_10(%arg0: i32) -> (i32, i32) {
    %c0_i32 = arith.constant 0 : i32
    %c0_i32_0 = arith.constant 0 : i32
    %c0_i32_1 = arith.constant 0 : i32
    return %c0_i32, %c0_i32_0 : i32, i32
  }
  func.func @transform_11(%arg0: i32) -> (i32, i32) {
    %c0_i32 = arith.constant 0 : i32
    %c0_i32_0 = arith.constant 0 : i32
    %c0_i32_1 = arith.constant 0 : i32
    return %c0_i32, %c0_i32_0 : i32, i32
  }
  func.func @transform_12(%arg0: i32) -> (i32, i32) {
    %c0_i32 = arith.constant 0 : i32
    %c0_i32_0 = arith.constant 0 : i32
    return %arg0, %c0_i32 : i32, i32
  }
}

</mosaic_0001>

<llo_original>
// kernel: net_forward.1
$region0: #{net_forward.1}
  #allocation0 [shape = 'u32[]', space=smem, size = 0x4, offset = 0x4, fixed_abs, tag = 'smem constant byte address 0x4 - core index']
  #allocation1 [shape = 'u32[144,128]{1,0:T(1,128)}', space=vmem, size = 0x12000, scoped, tag = 'internal scratch']
  #allocation2 [shape = 'f32[158,256]{1,0:T(8,128)}', space=vmem, size = 0x28000, scoped, tag = 'scratch operand']
  #allocation3 [shape = 'f32[156,192]{1,0:T(8,128)}', space=vmem, size = 0x28000, scoped, tag = 'scratch operand']
  %s0 = inlined_call_operand.vmem [shape: f32[160,10], index: 0, kind: input, shape index: {}]
  %s1 = inlined_call_operand.vmem [shape: f32[3,10,256], index: 1, kind: input, shape index: {}]
  %s2 = inlined_call_operand.vmem [shape: f32[1,256], index: 2, kind: input, shape index: {}]
  %s3 = inlined_call_operand.vmem [shape: f32[3,256,192], index: 3, kind: input, shape index: {}]
  %s4 = inlined_call_operand.vmem [shape: f32[1,192], index: 4, kind: input, shape index: {}]
  %s5 = inlined_call_operand.vmem [shape: f32[3,192,128], index: 5, kind: input, shape index: {}]
  %s6 = inlined_call_operand.vmem [shape: f32[1,128], index: 6, kind: input, shape index: {}]
  %s7 = inlined_call_operand.vmem [shape: bf16[1792,256], index: 7, kind: input, shape index: {}]
  %s8 = inlined_call_operand.vmem [shape: f32[1,256], index: 8, kind: input, shape index: {}]
  %s9 = inlined_call_operand.vmem [shape: f32[256,2], index: 9, kind: input, shape index: {}]
  %s10 = inlined_call_operand.vmem [shape: f32[1,2], index: 10, kind: input, shape index: {}]
  %s11 = inlined_call_operand.vmem [shape: f32[2,2], index: 11, kind: input, shape index: {}]
  %s12 = inlined_call_operand.vmem [shape: f32[8,2], index: 12, kind: output, shape index: {}]
  %s13 = sld [smem:[#allocation0]]
  $region58: #{net_forward.1} parent=0
    _
  %s15 = ssub.s32 1, %s13
  %s16 = scalar_select 0, %s15, %s13
  // Predicated region
  $region2: #{net_forward.1} parent=0 // pred_check
    _
  $region3: #{net_forward.1} parent=0 // pred_check_branch
    %18 = sbr.rel (0) target = $region5
  $region4: #{net_forward.1} parent=0 // pred_region
    _
  $region5: #{net_forward.1} parent=0 // pred_fallthru
    _
  // Predicated region
  $region6: #{net_forward.1} parent=0 // pred_check
    _
  $region7: #{net_forward.1} parent=0 // pred_check_branch
    %20 = sbr.rel (0) target = $region9
  $region8: #{net_forward.1} parent=0 // pred_region
    _
  $region9: #{net_forward.1} parent=0 // pred_fallthru
    _
  // Predicated region
  $region10: #{net_forward.1} parent=0 // pred_check
    _
  $region11: #{net_forward.1} parent=0 // pred_check_branch
    %22 = sbr.rel (0) target = $region13
  $region12: #{net_forward.1} parent=0 // pred_region
    _
  $region13: #{net_forward.1} parent=0 // pred_fallthru
    _
  // Predicated region
  $region14: #{net_forward.1} parent=0 // pred_check
    _
  $region15: #{net_forward.1} parent=0 // pred_check_branch
    %24 = sbr.rel (0) target = $region17
  $region16: #{net_forward.1} parent=0 // pred_region
    _
  $region17: #{net_forward.1} parent=0 // pred_fallthru
    _
  // Predicated region
  $region18: #{net_forward.1} parent=0 // pred_check
    _
  $region19: #{net_forward.1} parent=0 // pred_check_branch
    %26 = sbr.rel (0) target = $region21
  $region20: #{net_forward.1} parent=0 // pred_region
    _
  $region21: #{net_forward.1} parent=0 // pred_fallthru
    _
  // Predicated region
  $region22: #{net_forward.1} parent=0 // pred_check
    _
  $region23: #{net_forward.1} parent=0 // pred_check_branch
    %28 = sbr.rel (0) target = $region25
  $region24: #{net_forward.1} parent=0 // pred_region
    _
  $region25: #{net_forward.1} parent=0 // pred_fallthru
    _
  // Predicated region
  $region26: #{net_forward.1} parent=0 // pred_check
    _
  $region27: #{net_forward.1} parent=0 // pred_check_branch
    %30 = sbr.rel (0) target = $region29
  $region28: #{net_forward.1} parent=0 // pred_region
    _
  $region29: #{net_forward.1} parent=0 // pred_fallthru
    _
  // Predicated region
  $region30: #{net_forward.1} parent=0 // pred_check
    _
  $region31: #{net_forward.1} parent=0 // pred_check_branch
    %32 = sbr.rel (0) target = $region33
  $region32: #{net_forward.1} parent=0 // pred_region
    _
  $region33: #{net_forward.1} parent=0 // pred_fallthru
    _
  // Predicated region
  $region34: #{net_forward.1} parent=0 // pred_check
    _
  $region35: #{net_forward.1} parent=0 // pred_check_branch
    %34 = sbr.rel (0) target = $region37
  $region36: #{net_forward.1} parent=0 // pred_region
    _
  $region37: #{net_forward.1} parent=0 // pred_fallthru
    _
  // Predicated region
  $region38: #{net_forward.1} parent=0 // pred_check
    _
  $region39: #{net_forward.1} parent=0 // pred_check_branch
    %36 = sbr.rel (0) target = $region41
  $region40: #{net_forward.1} parent=0 // pred_region
    _
  $region41: #{net_forward.1} parent=0 // pred_fallthru
    _
  // Predicated region
  $region42: #{net_forward.1} parent=0 // pred_check
    _
  $region43: #{net_forward.1} parent=0 // pred_check_branch
    %38 = sbr.rel (0) target = $region45
  $region44: #{net_forward.1} parent=0 // pred_region
    _
  $region45: #{net_forward.1} parent=0 // pred_fallthru
    _
  // Predicated region
  $region46: #{net_forward.1} parent=0 // pred_check
    _
  $region47: #{net_forward.1} parent=0 // pred_check_branch
    %40 = sbr.rel (0) target = $region49
  $region48: #{net_forward.1} parent=0 // pred_region
    _
  $region49: #{net_forward.1} parent=0 // pred_fallthru
    _
  %v41 = vld [vmem:[%s0] sm:$0xff]
  %v42 = vld [vmem:[%s0 + $0x8] sm:$0xff]
  %v43 = vld [vmem:[%s0 + $0x10] sm:$0xff]
  %v44 = vld [vmem:[%s0 + $0x18] sm:$0xff]
  %v45 = vld [vmem:[%s0 + $0x20] sm:$0xff]
  %v46 = vld [vmem:[%s0 + $0x28] sm:$0xff]
  %v47 = vld [vmem:[%s0 + $0x30] sm:$0xff]
  %v48 = vld [vmem:[%s0 + $0x38] sm:$0xff]
  %v49 = vld [vmem:[%s0 + $0x40] sm:$0xff]
  %v50 = vld [vmem:[%s0 + $0x48] sm:$0xff]
  %v51 = vld [vmem:[%s0 + $0x50] sm:$0xff]
  %v52 = vld [vmem:[%s0 + $0x58] sm:$0xff]
  %v53 = vld [vmem:[%s0 + $0x60] sm:$0xff]
  %v54 = vld [vmem:[%s0 + $0x68] sm:$0xff]
  %v55 = vld [vmem:[%s0 + $0x70] sm:$0xff]
  %v56 = vld [vmem:[%s0 + $0x78] sm:$0xff]
  %v57 = vld [vmem:[%s0 + $0x80] sm:$0xff]
  %v58 = vld [vmem:[%s0 + $0x88] sm:$0xff]
  %v59 = vld [vmem:[%s0 + $0x90] sm:$0xff]
  %v60 = vld [vmem:[%s0 + $0x98] sm:$0x3f]
  %v61 = vld [vmem:[%s1] sm:$0xff]
  %v62 = vld [vmem:[%s1 + $0x8] sm:$0xff]
  %v63 = vld [vmem:[%s1 + $0x10] sm:$0x3]
  %v64 = vld [vmem:[%s1 + $0x18] sm:$0x3]
  %v65 = vld [vmem:[%s0 + $0x1] sm:$0xff]
  %v66 = vld [vmem:[%s0 + $0x9] sm:$0xff]
  %v67 = vld [vmem:[%s0 + $0x11] sm:$0xff]
  %v68 = vld [vmem:[%s0 + $0x19] sm:$0xff]
  %v69 = vld [vmem:[%s0 + $0x21] sm:$0xff]
  %v70 = vld [vmem:[%s0 + $0x29] sm:$0xff]
  %v71 = vld [vmem:[%s0 + $0x31] sm:$0xff]
  %v72 = vld [vmem:[%s0 + $0x39] sm:$0xff]
  %v73 = vld [vmem:[%s0 + $0x41] sm:$0xff]
  %v74 = vld [vmem:[%s0 + $0x49] sm:$0xff]
  %v75 = vld [vmem:[%s0 + $0x51] sm:$0xff]
  %v76 = vld [vmem:[%s0 + $0x59] sm:$0xff]
  %v77 = vld [vmem:[%s0 + $0x61] sm:$0xff]
  %v78 = vld [vmem:[%s0 + $0x69] sm:$0xff]
  %v79 = vld [vmem:[%s0 + $0x71] sm:$0xff]
  %v80 = vld [vmem:[%s0 + $0x79] sm:$0xff]
  %v81 = vld [vmem:[%s0 + $0x81] sm:$0xff]
  %v82 = vld [vmem:[%s0 + $0x89] sm:$0xff]
  %v83 = vld [vmem:[%s0 + $0x91] sm:$0xff]
  %v84 = vld [vmem:[%s0 + $0x99] sm:$0x3f]
  %s85 = scalar_lea.vmem %s1, 32
  %v86 = vld [vmem:[%s85] sm:$0xff]
  %v87 = vld [vmem:[%s85 + $0x8] sm:$0xff]
  %v88 = vld [vmem:[%s85 + $0x10] sm:$0x3]
  %v89 = vld [vmem:[%s85 + $0x18] sm:$0x3]
  %vm90 = vcmask 80896
  %v92 = vsel %vm90, %v65, 0
  %v95 = vsel %vm90, %v66, 0
  %v98 = vsel %vm90, %v67, 0
  %v101 = vsel %vm90, %v68, 0
  %v104 = vsel %vm90, %v69, 0
  %v107 = vsel %vm90, %v70, 0
  %v110 = vsel %vm90, %v71, 0
  %v113 = vsel %vm90, %v72, 0
  %v116 = vsel %vm90, %v73, 0
  %v119 = vsel %vm90, %v74, 0
  %v122 = vsel %vm90, %v75, 0
  %v125 = vsel %vm90, %v76, 0
  %v128 = vsel %vm90, %v77, 0
  %v131 = vsel %vm90, %v78, 0
  %v134 = vsel %vm90, %v79, 0
  %v137 = vsel %vm90, %v80, 0
  %v140 = vsel %vm90, %v81, 0
  %v143 = vsel %vm90, %v82, 0
  %v146 = vsel %vm90, %v83, 0
  %v149 = vsel %vm90, %v84, 0
  %vm151 = vcmask 1041408
  %v153 = vsel %vm151, %v88, 0
  %v156 = vsel %vm151, %v89, 0
  %158 = vmatprep.subr.mxu0 0.0
  %159 = vmatpush1.msra.mxu0 0.0
  %160 = vmatprep.subr.mxu0 0.0
  %161 = vmatpush1.msra.mxu0 0.0
  %162 = vmatprep.subr.mxu0 0.0
  %163 = vmatpush1.msra.mxu0 0.0
  %164 = vmatprep.subr.mxu0 0.0
  %165 = vmatpush1.msra.mxu0 0.0
  %166 = vmatprep.subr.mxu0 0.0
  %167 = vmatpush1.msra.mxu0 0.0
  %168 = vmatprep.subr.mxu0 0.0
  %169 = vmatpush1.msra.mxu0 0.0
  %170 = vmatprep.subr.mxu0 0.0
  %171 = vmatpush1.msra.mxu0 0.0
  %172 = vmatprep.subr.mxu0 0.0
  %173 = vmatpush1.msra.mxu0 0.0
  %174 = vmatprep.subr.mxu0 0.0
  %175 = vmatpush1.msra.mxu0 0.0
  %176 = vmatprep.subr.mxu0 0.0
  %177 = vmatpush1.msra.mxu0 0.0
  %178 = vmatprep.subr.mxu0 0.0
  %179 = vmatpush1.msra.mxu0 0.0
  %180 = vmatprep.subr.mxu0 0.0
  %181 = vmatpush1.msra.mxu0 0.0
  %182 = vmatprep.subr.mxu0 0.0
  %183 = vmatpush1.msra.mxu0 0.0
  %184 = vmatprep.subr.mxu0 0.0
  %185 = vmatpush1.msra.mxu0 0.0
  %186 = vmatprep.subr.mxu0 %v156
  %187 = vmatpush1.msra.mxu0 %v153
  %188 = vmatprep.subr.mxu0 %v87
  %189 = vmatpush1.msra.mxu0 %v86
  %190 = vmatprep.subr.mxu0 0.0
  %191 = vmatpush2.msra.mxu0 0.0
  %192 = vmatprep.subr.mxu0 0.0
  %193 = vmatpush2.msra.mxu0 0.0
  %194 = vmatprep.subr.mxu0 0.0
  %195 = vmatpush2.msra.mxu0 0.0
  %196 = vmatprep.subr.mxu0 0.0
  %197 = vmatpush2.msra.mxu0 0.0
  %198 = vmatprep.subr.mxu0 0.0
  %199 = vmatpush2.msra.mxu0 0.0
  %200 = vmatprep.subr.mxu0 0.0
  %201 = vmatpush2.msra.mxu0 0.0
  %202 = vmatprep.subr.mxu0 0.0
  %203 = vmatpush2.msra.mxu0 0.0
  %204 = vmatprep.subr.mxu0 0.0
  %205 = vmatpush2.msra.mxu0 0.0
  %206 = vmatprep.subr.mxu0 0.0
  %207 = vmatpush2.msra.mxu0 0.0
  %208 = vmatprep.subr.mxu0 0.0
  %209 = vmatpush2.msra.mxu0 0.0
  %210 = vmatprep.subr.mxu0 0.0
  %211 = vmatpush2.msra.mxu0 0.0
  %212 = vmatprep.subr.mxu0 0.0
  %213 = vmatpush2.msra.mxu0 0.0
  %214 = vmatprep.subr.mxu0 0.0
  %215 = vmatpush2.msra.mxu0 0.0
  %216 = vmatprep.subr.mxu0 0.0
  %217 = vmatpush2.msra.mxu0 0.0
  %218 = vmatprep.subr.mxu0 0.0
  %219 = vmatpush2.msra.mxu0 0.0
  %220 = vmatprep.subr.mxu0 0.0
  %221 = vmatpush2.msra.mxu0 0.0
  %222 = vmatprep.mubr.f32.mxu0 0.0
  %223 = vmatmul.mubr.f32.gmra.mxu0 %v92
  %v224 = vpop.f32.mrf.mxu0
  %v225 = vadd.f32 0.0, %v224
  %v226 = vpop.f32.mrf.mxu0
  %v227 = vadd.f32 0.0, %v226
  %228 = vmatprep.mubr.f32.mxu0 0.0
  %229 = vmatmul.mubr.f32.gmra.mxu0 %v95
  %v230 = vpop.f32.mrf.mxu0
  %v231 = vadd.f32 0.0, %v230
  %v232 = vpop.f32.mrf.mxu0
  %v233 = vadd.f32 0.0, %v232
  %234 = vmatprep.mubr.f32.mxu0 0.0
  %235 = vmatmul.mubr.f32.gmra.mxu0 %v98
  %v236 = vpop.f32.mrf.mxu0
  %v237 = vadd.f32 0.0, %v236
  %v238 = vpop.f32.mrf.mxu0
  %v239 = vadd.f32 0.0, %v238
  %240 = vmatprep.mubr.f32.mxu0 0.0
  %241 = vmatmul.mubr.f32.gmra.mxu0 %v101
  %v242 = vpop.f32.mrf.mxu0
  %v243 = vadd.f32 0.0, %v242
  %v244 = vpop.f32.mrf.mxu0
  %v245 = vadd.f32 0.0, %v244
  %246 = vmatprep.mubr.f32.mxu0 0.0
  %247 = vmatmul.mubr.f32.gmra.mxu0 %v104
  %v248 = vpop.f32.mrf.mxu0
  %v249 = vadd.f32 0.0, %v248
  %v250 = vpop.f32.mrf.mxu0
  %v251 = vadd.f32 0.0, %v250
  %252 = vmatprep.mubr.f32.mxu0 0.0
  %253 = vmatmul.mubr.f32.gmra.mxu0 %v107
  %v254 = vpop.f32.mrf.mxu0
  %v255 = vadd.f32 0.0, %v254
  %v256 = vpop.f32.mrf.mxu0
  %v257 = vadd.f32 0.0, %v256
  %258 = vmatprep.mubr.f32.mxu0 0.0
  %259 = vmatmul.mubr.f32.gmra.mxu0 %v110
  %v260 = vpop.f32.mrf.mxu0
  %v261 = vadd.f32 0.0, %v260
  %v262 = vpop.f32.mrf.mxu0
  %v263 = vadd.f32 0.0, %v262
  %264 = vmatprep.mubr.f32.mxu0 0.0
  %265 = vmatmul.mubr.f32.gmra.mxu0 %v113
  %v266 = vpop.f32.mrf.mxu0
  %v267 = vadd.f32 0.0, %v266
  %v268 = vpop.f32.mrf.mxu0
  %v269 = vadd.f32 0.0, %v268
  %270 = vmatprep.mubr.f32.mxu0 0.0
  %271 = vmatmul.mubr.f32.gmra.mxu0 %v116
  %v272 = vpop.f32.mrf.mxu0
  %v273 = vadd.f32 0.0, %v272
  %v274 = vpop.f32.mrf.mxu0
  %v275 = vadd.f32 0.0, %v274
  %276 = vmatprep.mubr.f32.mxu0 0.0
  %277 = vmatmul.mubr.f32.gmra.mxu0 %v119
  %v278 = vpop.f32.mrf.mxu0
  %v279 = vadd.f32 0.0, %v278
  %v280 = vpop.f32.mrf.mxu0
  %v281 = vadd.f32 0.0, %v280
  %282 = vmatprep.mubr.f32.mxu0 0.0
  %283 = vmatmul.mubr.f32.gmra.mxu0 %v122
  %v284 = vpop.f32.mrf.mxu0
  %v285 = vadd.f32 0.0, %v284
  %v286 = vpop.f32.mrf.mxu0
  %v287 = vadd.f32 0.0, %v286
  %288 = vmatprep.mubr.f32.mxu0 0.0
  %289 = vmatmul.mubr.f32.gmra.mxu0 %v125
  %v290 = vpop.f32.mrf.mxu0
  %v291 = vadd.f32 0.0, %v290
  %v292 = vpop.f32.mrf.mxu0
  %v293 = vadd.f32 0.0, %v292
  %294 = vmatprep.mubr.f32.mxu0 0.0
  %295 = vmatmul.mubr.f32.gmra.mxu0 %v128
  %v296 = vpop.f32.mrf.mxu0
  %v297 = vadd.f32 0.0, %v296
  %v298 = vpop.f32.mrf.mxu0
  %v299 = vadd.f32 0.0, %v298
  %300 = vmatprep.mubr.f32.mxu0 0.0
  %301 = vmatmul.mubr.f32.gmra.mxu0 %v131
  %v302 = vpop.f32.mrf.mxu0
  %v303 = vadd.f32 0.0, %v302
  %v304 = vpop.f32.mrf.mxu0
  %v305 = vadd.f32 0.0, %v304
  %306 = vmatprep.mubr.f32.mxu0 0.0
  %307 = vmatmul.mubr.f32.gmra.mxu0 %v134
  %v308 = vpop.f32.mrf.mxu0
  %v309 = vadd.f32 0.0, %v308
  %v310 = vpop.f32.mrf.mxu0
  %v311 = vadd.f32 0.0, %v310
  %312 = vmatprep.mubr.f32.mxu0 0.0
  %313 = vmatmul.mubr.f32.gmra.mxu0 %v137
  %v314 = vpop.f32.mrf.mxu0
  %v315 = vadd.f32 0.0, %v314
  %v316 = vpop.f32.mrf.mxu0
  %v317 = vadd.f32 0.0, %v316
  %318 = vmatprep.mubr.f32.mxu0 0.0
  %319 = vmatmul.mubr.f32.gmra.mxu0 %v140
  %v320 = vpop.f32.mrf.mxu0
  %v321 = vadd.f32 0.0, %v320
  %v322 = vpop.f32.mrf.mxu0
  %v323 = vadd.f32 0.0, %v322
  %324 = vmatprep.mubr.f32.mxu0 0.0
  %325 = vmatmul.mubr.f32.gmra.mxu0 %v143
  %v326 = vpop.f32.mrf.mxu0
  %v327 = vadd.f32 0.0, %v326
  %v328 = vpop.f32.mrf.mxu0
  %v329 = vadd.f32 0.0, %v328
  %330 = vmatprep.mubr.f32.mxu0 0.0
  %331 = vmatmul.mubr.f32.gmra.mxu0 %v146
  %v332 = vpop.f32.mrf.mxu0
  %v333 = vadd.f32 0.0, %v332
  %v334 = vpop.f32.mrf.mxu0
  %v335 = vadd.f32 0.0, %v334
  %336 = vmatprep.mubr.f32.mxu0 0.0
  %337 = vmatmul.mubr.f32.gmra.mxu0 %v149
  %v338 = vpop.f32.mrf.mxu0
  %v339 = vadd.f32 0.0, %v338
  %v340 = vpop.f32.mrf.mxu0
  %v341 = vadd.f32 0.0, %v340
  %342 = vdwg.mxu0
  %v344 = vsel %vm90, %v41, 0
  %v347 = vsel %vm90, %v42, 0
  %v350 = vsel %vm90, %v43, 0
  %v353 = vsel %vm90, %v44, 0
  %v356 = vsel %vm90, %v45, 0
  %v359 = vsel %vm90, %v46, 0
  %v362 = vsel %vm90, %v47, 0
  %v365 = vsel %vm90, %v48, 0
  %v368 = vsel %vm90, %v49, 0
  %v371 = vsel %vm90, %v50, 0
  %v374 = vsel %vm90, %v51, 0
  %v377 = vsel %vm90, %v52, 0
  %v380 = vsel %vm90, %v53, 0
  %v383 = vsel %vm90, %v54, 0
  %v386 = vsel %vm90, %v55, 0
  %v389 = vsel %vm90, %v56, 0
  %v392 = vsel %vm90, %v57, 0
  %v395 = vsel %vm90, %v58, 0
  %v398 = vsel %vm90, %v59, 0
  %v401 = vsel %vm90, %v60, 0
  %v404 = vsel %vm151, %v63, 0
  %v407 = vsel %vm151, %v64, 0
  %409 = vmatprep.subr.mxu0 0.0
  %410 = vmatpush1.msra.mxu0 0.0
  %411 = vmatprep.subr.mxu0 0.0
  %412 = vmatpush1.msra.mxu0 0.0
  %413 = vmatprep.subr.mxu0 0.0
  %414 = vmatpush1.msra.mxu0 0.0
  %415 = vmatprep.subr.mxu0 0.0
  %416 = vmatpush1.msra.mxu0 0.0
  %417 = vmatprep.subr.mxu0 0.0
  %418 = vmatpush1.msra.mxu0 0.0
  %419 = vmatprep.subr.mxu0 0.0
  %420 = vmatpush1.msra.mxu0 0.0
  %421 = vmatprep.subr.mxu0 0.0
  %422 = vmatpush1.msra.mxu0 0.0
  %423 = vmatprep.subr.mxu0 0.0
  %424 = vmatpush1.msra.mxu0 0.0
  %425 = vmatprep.subr.mxu0 0.0
  %426 = vmatpush1.msra.mxu0 0.0
  %427 = vmatprep.subr.mxu0 0.0
  %428 = vmatpush1.msra.mxu0 0.0
  %429 = vmatprep.subr.mxu0 0.0
  %430 = vmatpush1.msra.mxu0 0.0
  %431 = vmatprep.subr.mxu0 0.0
  %432 = vmatpush1.msra.mxu0 0.0
  %433 = vmatprep.subr.mxu0 0.0
  %434 = vmatpush1.msra.mxu0 0.0
  %435 = vmatprep.subr.mxu0 0.0
  %436 = vmatpush1.msra.mxu0 0.0
  %437 = vmatprep.subr.mxu0 %v407
  %438 = vmatpush1.msra.mxu0 %v404
  %439 = vmatprep.subr.mxu0 %v62
  %440 = vmatpush1.msra.mxu0 %v61
  %441 = vmatprep.subr.mxu0 0.0
  %442 = vmatpush2.msra.mxu0 0.0
  %443 = vmatprep.subr.mxu0 0.0
  %444 = vmatpush2.msra.mxu0 0.0
  %445 = vmatprep.subr.mxu0 0.0
  %446 = vmatpush2.msra.mxu0 0.0
  %447 = vmatprep.subr.mxu0 0.0
  %448 = vmatpush2.msra.mxu0 0.0
  %449 = vmatprep.subr.mxu0 0.0
  %450 = vmatpush2.msra.mxu0 0.0
  %451 = vmatprep.subr.mxu0 0.0
  %452 = vmatpush2.msra.mxu0 0.0
  %453 = vmatprep.subr.mxu0 0.0
  %454 = vmatpush2.msra.mxu0 0.0
  %455 = vmatprep.subr.mxu0 0.0
  %456 = vmatpush2.msra.mxu0 0.0
  %457 = vmatprep.subr.mxu0 0.0
  %458 = vmatpush2.msra.mxu0 0.0
  %459 = vmatprep.subr.mxu0 0.0
  %460 = vmatpush2.msra.mxu0 0.0
  %461 = vmatprep.subr.mxu0 0.0
  %462 = vmatpush2.msra.mxu0 0.0
  %463 = vmatprep.subr.mxu0 0.0
  %464 = vmatpush2.msra.mxu0 0.0
  %465 = vmatprep.subr.mxu0 0.0
  %466 = vmatpush2.msra.mxu0 0.0
  %467 = vmatprep.subr.mxu0 0.0
  %468 = vmatpush2.msra.mxu0 0.0
  %469 = vmatprep.subr.mxu0 0.0
  %470 = vmatpush2.msra.mxu0 0.0
  %471 = vmatprep.subr.mxu0 0.0
  %472 = vmatpush2.msra.mxu0 0.0
  %473 = vmatprep.mubr.f32.mxu0 0.0
  %474 = vmatmul.mubr.f32.gmra.mxu0 %v344
  %v475 = vpop.f32.mrf.mxu0
  %v476 = vadd.f32 %v225, %v475
  %v477 = vpop.f32.mrf.mxu0
  %v478 = vadd.f32 %v227, %v477
  %479 = vmatprep.mubr.f32.mxu0 0.0
  %480 = vmatmul.mubr.f32.gmra.mxu0 %v347
  %v481 = vpop.f32.mrf.mxu0
  %v482 = vadd.f32 %v231, %v481
  %v483 = vpop.f32.mrf.mxu0
  %v484 = vadd.f32 %v233, %v483
  %485 = vmatprep.mubr.f32.mxu0 0.0
  %486 = vmatmul.mubr.f32.gmra.mxu0 %v350
  %v487 = vpop.f32.mrf.mxu0
  %v488 = vadd.f32 %v237, %v487
  %v489 = vpop.f32.mrf.mxu0
  %v490 = vadd.f32 %v239, %v489
  %491 = vmatprep.mubr.f32.mxu0 0.0
  %492 = vmatmul.mubr.f32.gmra.mxu0 %v353
  %v493 = vpop.f32.mrf.mxu0
  %v494 = vadd.f32 %v243, %v493
  %v495 = vpop.f32.mrf.mxu0
  %v496 = vadd.f32 %v245, %v495
  %497 = vmatprep.mubr.f32.mxu0 0.0
  %498 = vmatmul.mubr.f32.gmra.mxu0 %v356
  %v499 = vpop.f32.mrf.mxu0
  %v500 = vadd.f32 %v249, %v499
  %v501 = vpop.f32.mrf.mxu0
  %v502 = vadd.f32 %v251, %v501
  %503 = vmatprep.mubr.f32.mxu0 0.0
  %504 = vmatmul.mubr.f32.gmra.mxu0 %v359
  %v505 = vpop.f32.mrf.mxu0
  %v506 = vadd.f32 %v255, %v505
  %v507 = vpop.f32.mrf.mxu0
  %v508 = vadd.f32 %v257, %v507
  %509 = vmatprep.mubr.f32.mxu0 0.0
  %510 = vmatmul.mubr.f32.gmra.mxu0 %v362
  %v511 = vpop.f32.mrf.mxu0
  %v512 = vadd.f32 %v261, %v511
  %v513 = vpop.f32.mrf.mxu0
  %v514 = vadd.f32 %v263, %v513
  %515 = vmatprep.mubr.f32.mxu0 0.0
  %516 = vmatmul.mubr.f32.gmra.mxu0 %v365
  %v517 = vpop.f32.mrf.mxu0
  %v518 = vadd.f32 %v267, %v517
  %v519 = vpop.f32.mrf.mxu0
  %v520 = vadd.f32 %v269, %v519
  %521 = vmatprep.mubr.f32.mxu0 0.0
  %522 = vmatmul.mubr.f32.gmra.mxu0 %v368
  %v523 = vpop.f32.mrf.mxu0
  %v524 = vadd.f32 %v273, %v523
  %v525 = vpop.f32.mrf.mxu0
  %v526 = vadd.f32 %v275, %v525
  %527 = vmatprep.mubr.f32.mxu0 0.0
  %528 = vmatmul.mubr.f32.gmra.mxu0 %v371
  %v529 = vpop.f32.mrf.mxu0
  %v530 = vadd.f32 %v279, %v529
  %v531 = vpop.f32.mrf.mxu0
  %v532 = vadd.f32 %v281, %v531
  %533 = vmatprep.mubr.f32.mxu0 0.0
  %534 = vmatmul.mubr.f32.gmra.mxu0 %v374
  %v535 = vpop.f32.mrf.mxu0
  %v536 = vadd.f32 %v285, %v535
  %v537 = vpop.f32.mrf.mxu0
  %v538 = vadd.f32 %v287, %v537
  %539 = vmatprep.mubr.f32.mxu0 0.0
  %540 = vmatmul.mubr.f32.gmra.mxu0 %v377
  %v541 = vpop.f32.mrf.mxu0
  %v542 = vadd.f32 %v291, %v541
  %v543 = vpop.f32.mrf.mxu0
  %v544 = vadd.f32 %v293, %v543
  %545 = vmatprep.mubr.f32.mxu0 0.0
  %546 = vmatmul.mubr.f32.gmra.mxu0 %v380
  %v547 = vpop.f32.mrf.mxu0
  %v548 = vadd.f32 %v297, %v547
  %v549 = vpop.f32.mrf.mxu0
  %v550 = vadd.f32 %v299, %v549
  %551 = vmatprep.mubr.f32.mxu0 0.0
  %552 = vmatmul.mubr.f32.gmra.mxu0 %v383
  %v553 = vpop.f32.mrf.mxu0
  %v554 = vadd.f32 %v303, %v553
  %v555 = vpop.f32.mrf.mxu0
  %v556 = vadd.f32 %v305, %v555
  %557 = vmatprep.mubr.f32.mxu0 0.0
  %558 = vmatmul.mubr.f32.gmra.mxu0 %v386
  %v559 = vpop.f32.mrf.mxu0
  %v560 = vadd.f32 %v309, %v559
  %v561 = vpop.f32.mrf.mxu0
  %v562 = vadd.f32 %v311, %v561
  %563 = vmatprep.mubr.f32.mxu0 0.0
  %564 = vmatmul.mubr.f32.gmra.mxu0 %v389
  %v565 = vpop.f32.mrf.mxu0
  %v566 = vadd.f32 %v315, %v565
  %v567 = vpop.f32.mrf.mxu0
  %v568 = vadd.f32 %v317, %v567
  %569 = vmatprep.mubr.f32.mxu0 0.0
  %570 = vmatmul.mubr.f32.gmra.mxu0 %v392
  %v571 = vpop.f32.mrf.mxu0
  %v572 = vadd.f32 %v321, %v571
  %v573 = vpop.f32.mrf.mxu0
  %v574 = vadd.f32 %v323, %v573
  %575 = vmatprep.mubr.f32.mxu0 0.0
  %576 = vmatmul.mubr.f32.gmra.mxu0 %v395
  %v577 = vpop.f32.mrf.mxu0
  %v578 = vadd.f32 %v327, %v577
  %v579 = vpop.f32.mrf.mxu0
  %v580 = vadd.f32 %v329, %v579
  %581 = vmatprep.mubr.f32.mxu0 0.0
  %582 = vmatmul.mubr.f32.gmra.mxu0 %v398
  %v583 = vpop.f32.mrf.mxu0
  %v584 = vadd.f32 %v333, %v583
  %v585 = vpop.f32.mrf.mxu0
  %v586 = vadd.f32 %v335, %v585
  %587 = vmatprep.mubr.f32.mxu0 0.0
  %588 = vmatmul.mubr.f32.gmra.mxu0 %v401
  %v589 = vpop.f32.mrf.mxu0
  %v590 = vadd.f32 %v339, %v589
  %v591 = vpop.f32.mrf.mxu0
  %v592 = vadd.f32 %v341, %v591
  %593 = vdwg.mxu0
  %v594 = vld [vmem:[%s0 + $0x2] sm:$0xff]
  %v595 = vld [vmem:[%s0 + $0xa] sm:$0xff]
  %v596 = vld [vmem:[%s0 + $0x12] sm:$0xff]
  %v597 = vld [vmem:[%s0 + $0x1a] sm:$0xff]
  %v598 = vld [vmem:[%s0 + $0x22] sm:$0xff]
  %v599 = vld [vmem:[%s0 + $0x2a] sm:$0xff]
  %v600 = vld [vmem:[%s0 + $0x32] sm:$0xff]
  %v601 = vld [vmem:[%s0 + $0x3a] sm:$0xff]
  %v602 = vld [vmem:[%s0 + $0x42] sm:$0xff]
  %v603 = vld [vmem:[%s0 + $0x4a] sm:$0xff]
  %v604 = vld [vmem:[%s0 + $0x52] sm:$0xff]
  %v605 = vld [vmem:[%s0 + $0x5a] sm:$0xff]
  %v606 = vld [vmem:[%s0 + $0x62] sm:$0xff]
  %v607 = vld [vmem:[%s0 + $0x6a] sm:$0xff]
  %v608 = vld [vmem:[%s0 + $0x72] sm:$0xff]
  %v609 = vld [vmem:[%s0 + $0x7a] sm:$0xff]
  %v610 = vld [vmem:[%s0 + $0x82] sm:$0xff]
  %v611 = vld [vmem:[%s0 + $0x8a] sm:$0xff]
  %v612 = vld [vmem:[%s0 + $0x92] sm:$0xff]
  %v613 = vld [vmem:[%s0 + $0x9a] sm:$0x3f]
  %s614 = scalar_lea.vmem %s1, 64
  %v615 = vld [vmem:[%s614] sm:$0xff]
  %v616 = vld [vmem:[%s614 + $0x8] sm:$0xff]
  %v617 = vld [vmem:[%s614 + $0x10] sm:$0x3]
  %v618 = vld [vmem:[%s614 + $0x18] sm:$0x3]
  %v620 = vsel %vm90, %v594, 0
  %v623 = vsel %vm90, %v595, 0
  %v626 = vsel %vm90, %v596, 0
  %v629 = vsel %vm90, %v597, 0
  %v632 = vsel %vm90, %v598, 0
  %v635 = vsel %vm90, %v599, 0
  %v638 = vsel %vm90, %v600, 0
  %v641 = vsel %vm90, %v601, 0
  %v644 = vsel %vm90, %v602, 0
  %v647 = vsel %vm90, %v603, 0
  %v650 = vsel %vm90, %v604, 0
  %v653 = vsel %vm90, %v605, 0
  %v656 = vsel %vm90, %v606, 0
  %v659 = vsel %vm90, %v607, 0
  %v662 = vsel %vm90, %v608, 0
  %v665 = vsel %vm90, %v609, 0
  %v668 = vsel %vm90, %v610, 0
  %v671 = vsel %vm90, %v611, 0
  %v674 = vsel %vm90, %v612, 0
  %v677 = vsel %vm90, %v613, 0
  %v680 = vsel %vm151, %v617, 0
  %v683 = vsel %vm151, %v618, 0
  %685 = vmatprep.subr.mxu0 0.0
  %686 = vmatpush1.msra.mxu0 0.0
  %687 = vmatprep.subr.mxu0 0.0
  %688 = vmatpush1.msra.mxu0 0.0
  %689 = vmatprep.subr.mxu0 0.0
  %690 = vmatpush1.msra.mxu0 0.0
  %691 = vmatprep.subr.mxu0 0.0
  %692 = vmatpush1.msra.mxu0 0.0
  %693 = vmatprep.subr.mxu0 0.0
  %694 = vmatpush1.msra.mxu0 0.0
  %695 = vmatprep.subr.mxu0 0.0
  %696 = vmatpush1.msra.mxu0 0.0
  %697 = vmatprep.subr.mxu0 0.0
  %698 = vmatpush1.msra.mxu0 0.0
  %699 = vmatprep.subr.mxu0 0.0
  %700 = vmatpush1.msra.mxu0 0.0
  %701 = vmatprep.subr.mxu0 0.0
  %702 = vmatpush1.msra.mxu0 0.0
  %703 = vmatprep.subr.mxu0 0.0
  %704 = vmatpush1.msra.mxu0 0.0
  %705 = vmatprep.subr.mxu0 0.0
  %706 = vmatpush1.msra.mxu0 0.0
  %707 = vmatprep.subr.mxu0 0.0
  %708 = vmatpush1.msra.mxu0 0.0
  %709 = vmatprep.subr.mxu0 0.0
  %710 = vmatpush1.msra.mxu0 0.0
  %711 = vmatprep.subr.mxu0 0.0
  %712 = vmatpush1.msra.mxu0 0.0
  %713 = vmatprep.subr.mxu0 %v683
  %714 = vmatpush1.msra.mxu0 %v680
  %715 = vmatprep.subr.mxu0 %v616
  %716 = vmatpush1.msra.mxu0 %v615
  %717 = vmatprep.subr.mxu0 0.0
  %718 = vmatpush2.msra.mxu0 0.0
  %719 = vmatprep.subr.mxu0 0.0
  %720 = vmatpush2.msra.mxu0 0.0
  %721 = vmatprep.subr.mxu0 0.0
  %722 = vmatpush2.msra.mxu0 0.0
  %723 = vmatprep.subr.mxu0 0.0
  %724 = vmatpush2.msra.mxu0 0.0
  %725 = vmatprep.subr.mxu0 0.0
  %726 = vmatpush2.msra.mxu0 0.0
  %727 = vmatprep.subr.mxu0 0.0
  %728 = vmatpush2.msra.mxu0 0.0
  %729 = vmatprep.subr.mxu0 0.0
  %730 = vmatpush2.msra.mxu0 0.0
  %731 = vmatprep.subr.mxu0 0.0
  %732 = vmatpush2.msra.mxu0 0.0
  %733 = vmatprep.subr.mxu0 0.0
  %734 = vmatpush2.msra.mxu0 0.0
  %735 = vmatprep.subr.mxu0 0.0
  %736 = vmatpush2.msra.mxu0 0.0
  %737 = vmatprep.subr.mxu0 0.0
  %738 = vmatpush2.msra.mxu0 0.0
  %739 = vmatprep.subr.mxu0 0.0
  %740 = vmatpush2.msra.mxu0 0.0
  %741 = vmatprep.subr.mxu0 0.0
  %742 = vmatpush2.msra.mxu0 0.0
  %743 = vmatprep.subr.mxu0 0.0
  %744 = vmatpush2.msra.mxu0 0.0
  %745 = vmatprep.subr.mxu0 0.0
  %746 = vmatpush2.msra.mxu0 0.0
  %747 = vmatprep.subr.mxu0 0.0
  %748 = vmatpush2.msra.mxu0 0.0
  %749 = vmatprep.mubr.f32.mxu0 0.0
  %750 = vmatmul.mubr.f32.gmra.mxu0 %v620
  %v751 = vpop.f32.mrf.mxu0
  %v752 = vadd.f32 0.0, %v751
  %v753 = vpop.f32.mrf.mxu0
  %v754 = vadd.f32 0.0, %v753
  %755 = vmatprep.mubr.f32.mxu0 0.0
  %756 = vmatmul.mubr.f32.gmra.mxu0 %v623
  %v757 = vpop.f32.mrf.mxu0
  %v758 = vadd.f32 0.0, %v757
  %v759 = vpop.f32.mrf.mxu0
  %v760 = vadd.f32 0.0, %v759
  %761 = vmatprep.mubr.f32.mxu0 0.0
  %762 = vmatmul.mubr.f32.gmra.mxu0 %v626
  %v763 = vpop.f32.mrf.mxu0
  %v764 = vadd.f32 0.0, %v763
  %v765 = vpop.f32.mrf.mxu0
  %v766 = vadd.f32 0.0, %v765
  %767 = vmatprep.mubr.f32.mxu0 0.0
  %768 = vmatmul.mubr.f32.gmra.mxu0 %v629
  %v769 = vpop.f32.mrf.mxu0
  %v770 = vadd.f32 0.0, %v769
  %v771 = vpop.f32.mrf.mxu0
  %v772 = vadd.f32 0.0, %v771
  %773 = vmatprep.mubr.f32.mxu0 0.0
  %774 = vmatmul.mubr.f32.gmra.mxu0 %v632
  %v775 = vpop.f32.mrf.mxu0
  %v776 = vadd.f32 0.0, %v775
  %v777 = vpop.f32.mrf.mxu0
  %v778 = vadd.f32 0.0, %v777
  %779 = vmatprep.mubr.f32.mxu0 0.0
  %780 = vmatmul.mubr.f32.gmra.mxu0 %v635
  %v781 = vpop.f32.mrf.mxu0
  %v782 = vadd.f32 0.0, %v781
  %v783 = vpop.f32.mrf.mxu0
  %v784 = vadd.f32 0.0, %v783
  %785 = vmatprep.mubr.f32.mxu0 0.0
  %786 = vmatmul.mubr.f32.gmra.mxu0 %v638
  %v787 = vpop.f32.mrf.mxu0
  %v788 = vadd.f32 0.0, %v787
  %v789 = vpop.f32.mrf.mxu0
  %v790 = vadd.f32 0.0, %v789
  %791 = vmatprep.mubr.f32.mxu0 0.0
  %792 = vmatmul.mubr.f32.gmra.mxu0 %v641
  %v793 = vpop.f32.mrf.mxu0
  %v794 = vadd.f32 0.0, %v793
  %v795 = vpop.f32.mrf.mxu0
  %v796 = vadd.f32 0.0, %v795
  %797 = vmatprep.mubr.f32.mxu0 0.0
  %798 = vmatmul.mubr.f32.gmra.mxu0 %v644
  %v799 = vpop.f32.mrf.mxu0
  %v800 = vadd.f32 0.0, %v799
  %v801 = vpop.f32.mrf.mxu0
  %v802 = vadd.f32 0.0, %v801
  %803 = vmatprep.mubr.f32.mxu0 0.0
  %804 = vmatmul.mubr.f32.gmra.mxu0 %v647
  %v805 = vpop.f32.mrf.mxu0
  %v806 = vadd.f32 0.0, %v805
  %v807 = vpop.f32.mrf.mxu0
  %v808 = vadd.f32 0.0, %v807
  %809 = vmatprep.mubr.f32.mxu0 0.0
  %810 = vmatmul.mubr.f32.gmra.mxu0 %v650
  %v811 = vpop.f32.mrf.mxu0
  %v812 = vadd.f32 0.0, %v811
  %v813 = vpop.f32.mrf.mxu0
  %v814 = vadd.f32 0.0, %v813
  %815 = vmatprep.mubr.f32.mxu0 0.0
  %816 = vmatmul.mubr.f32.gmra.mxu0 %v653
  %v817 = vpop.f32.mrf.mxu0
  %v818 = vadd.f32 0.0, %v817
  %v819 = vpop.f32.mrf.mxu0
  %v820 = vadd.f32 0.0, %v819
  %821 = vmatprep.mubr.f32.mxu0 0.0
  %822 = vmatmul.mubr.f32.gmra.mxu0 %v656
  %v823 = vpop.f32.mrf.mxu0
  %v824 = vadd.f32 0.0, %v823
  %v825 = vpop.f32.mrf.mxu0
  %v826 = vadd.f32 0.0, %v825
  %827 = vmatprep.mubr.f32.mxu0 0.0
  %828 = vmatmul.mubr.f32.gmra.mxu0 %v659
  %v829 = vpop.f32.mrf.mxu0
  %v830 = vadd.f32 0.0, %v829
  %v831 = vpop.f32.mrf.mxu0
  %v832 = vadd.f32 0.0, %v831
  %833 = vmatprep.mubr.f32.mxu0 0.0
  %834 = vmatmul.mubr.f32.gmra.mxu0 %v662
  %v835 = vpop.f32.mrf.mxu0
  %v836 = vadd.f32 0.0, %v835
  %v837 = vpop.f32.mrf.mxu0
  %v838 = vadd.f32 0.0, %v837
  %839 = vmatprep.mubr.f32.mxu0 0.0
  %840 = vmatmul.mubr.f32.gmra.mxu0 %v665
  %v841 = vpop.f32.mrf.mxu0
  %v842 = vadd.f32 0.0, %v841
  %v843 = vpop.f32.mrf.mxu0
  %v844 = vadd.f32 0.0, %v843
  %845 = vmatprep.mubr.f32.mxu0 0.0
  %846 = vmatmul.mubr.f32.gmra.mxu0 %v668
  %v847 = vpop.f32.mrf.mxu0
  %v848 = vadd.f32 0.0, %v847
  %v849 = vpop.f32.mrf.mxu0
  %v850 = vadd.f32 0.0, %v849
  %851 = vmatprep.mubr.f32.mxu0 0.0
  %852 = vmatmul.mubr.f32.gmra.mxu0 %v671
  %v853 = vpop.f32.mrf.mxu0
  %v854 = vadd.f32 0.0, %v853
  %v855 = vpop.f32.mrf.mxu0
  %v856 = vadd.f32 0.0, %v855
  %857 = vmatprep.mubr.f32.mxu0 0.0
  %858 = vmatmul.mubr.f32.gmra.mxu0 %v674
  %v859 = vpop.f32.mrf.mxu0
  %v860 = vadd.f32 0.0, %v859
  %v861 = vpop.f32.mrf.mxu0
  %v862 = vadd.f32 0.0, %v861
  %863 = vmatprep.mubr.f32.mxu0 0.0
  %864 = vmatmul.mubr.f32.gmra.mxu0 %v677
  %v865 = vpop.f32.mrf.mxu0
  %v866 = vadd.f32 0.0, %v865
  %v867 = vpop.f32.mrf.mxu0
  %v868 = vadd.f32 0.0, %v867
  %869 = vdwg.mxu0
  %v870 = vadd.f32 %v476, %v752
  %v871 = vadd.f32 %v478, %v754
  %v872 = vadd.f32 %v482, %v758
  %v873 = vadd.f32 %v484, %v760
  %v874 = vadd.f32 %v488, %v764
  %v875 = vadd.f32 %v490, %v766
  %v876 = vadd.f32 %v494, %v770
  %v877 = vadd.f32 %v496, %v772
  %v878 = vadd.f32 %v500, %v776
  %v879 = vadd.f32 %v502, %v778
  %v880 = vadd.f32 %v506, %v782
  %v881 = vadd.f32 %v508, %v784
  %v882 = vadd.f32 %v512, %v788
  %v883 = vadd.f32 %v514, %v790
  %v884 = vadd.f32 %v518, %v794
  %v885 = vadd.f32 %v520, %v796
  %v886 = vadd.f32 %v524, %v800
  %v887 = vadd.f32 %v526, %v802
  %v888 = vadd.f32 %v530, %v806
  %v889 = vadd.f32 %v532, %v808
  %v890 = vadd.f32 %v536, %v812
  %v891 = vadd.f32 %v538, %v814
  %v892 = vadd.f32 %v542, %v818
  %v893 = vadd.f32 %v544, %v820
  %v894 = vadd.f32 %v548, %v824
  %v895 = vadd.f32 %v550, %v826
  %v896 = vadd.f32 %v554, %v830
  %v897 = vadd.f32 %v556, %v832
  %v898 = vadd.f32 %v560, %v836
  %v899 = vadd.f32 %v562, %v838
  %v900 = vadd.f32 %v566, %v842
  %v901 = vadd.f32 %v568, %v844
  %v902 = vadd.f32 %v572, %v848
  %v903 = vadd.f32 %v574, %v850
  %v904 = vadd.f32 %v578, %v854
  %v905 = vadd.f32 %v580, %v856
  %v906 = vadd.f32 %v584, %v860
  %v907 = vadd.f32 %v586, %v862
  %v908 = vadd.f32 %v590, %v866
  %v909 = vadd.f32 %v592, %v868
  %v910 = vld [vmem:[%s2] sm:$0x3]
  %v912 = vlaneseq
  %v913 = vshrl.u32 %v912, 7
  %v914 = vsub.s32 0, %v913
  %v915 = vrot.slane %v910, %v914
  %v916 = vlaneseq
  %v917 = vshrl.u32 %v916, 7
  %v918 = vsub.s32 1, %v917
  %v919 = vrot.slane %v910, %v918
  %v922 = vadd.f32 %v870, %v915
  %v923 = vadd.f32 %v871, %v919
  %v924 = vadd.f32 %v872, %v915
  %v925 = vadd.f32 %v873, %v919
  %v926 = vadd.f32 %v874, %v915
  %v927 = vadd.f32 %v875, %v919
  %v928 = vadd.f32 %v876, %v915
  %v929 = vadd.f32 %v877, %v919
  %v930 = vadd.f32 %v878, %v915
  %v931 = vadd.f32 %v879, %v919
  %v932 = vadd.f32 %v880, %v915
  %v933 = vadd.f32 %v881, %v919
  %v934 = vadd.f32 %v882, %v915
  %v935 = vadd.f32 %v883, %v919
  %v936 = vadd.f32 %v884, %v915
  %v937 = vadd.f32 %v885, %v919
  %v938 = vadd.f32 %v886, %v915
  %v939 = vadd.f32 %v887, %v919
  %v940 = vadd.f32 %v888, %v915
  %v941 = vadd.f32 %v889, %v919
  %v942 = vadd.f32 %v890, %v915
  %v943 = vadd.f32 %v891, %v919
  %v944 = vadd.f32 %v892, %v915
  %v945 = vadd.f32 %v893, %v919
  %v946 = vadd.f32 %v894, %v915
  %v947 = vadd.f32 %v895, %v919
  %v948 = vadd.f32 %v896, %v915
  %v949 = vadd.f32 %v897, %v919
  %v950 = vadd.f32 %v898, %v915
  %v951 = vadd.f32 %v899, %v919
  %v952 = vadd.f32 %v900, %v915
  %v953 = vadd.f32 %v901, %v919
  %v954 = vadd.f32 %v902, %v915
  %v955 = vadd.f32 %v903, %v919
  %v956 = vadd.f32 %v904, %v915
  %v957 = vadd.f32 %v905, %v919
  %v958 = vadd.f32 %v906, %v915
  %v959 = vadd.f32 %v907, %v919
  %v960 = vadd.f32 %v908, %v915
  %v961 = vadd.f32 %v909, %v919
  %v962 = vmax.f32 %v922, 0.0
  %v963 = vmax.f32 %v923, 0.0
  %v964 = vmax.f32 %v924, 0.0
  %v965 = vmax.f32 %v925, 0.0
  %v966 = vmax.f32 %v926, 0.0
  %v967 = vmax.f32 %v927, 0.0
  %v968 = vmax.f32 %v928, 0.0
  %v969 = vmax.f32 %v929, 0.0
  %v970 = vmax.f32 %v930, 0.0
  %v971 = vmax.f32 %v931, 0.0
  %v972 = vmax.f32 %v932, 0.0
  %v973 = vmax.f32 %v933, 0.0
  %v974 = vmax.f32 %v934, 0.0
  %v975 = vmax.f32 %v935, 0.0
  %v976 = vmax.f32 %v936, 0.0
  %v977 = vmax.f32 %v937, 0.0
  %v978 = vmax.f32 %v938, 0.0
  %v979 = vmax.f32 %v939, 0.0
  %v980 = vmax.f32 %v940, 0.0
  %v981 = vmax.f32 %v941, 0.0
  %v982 = vmax.f32 %v942, 0.0
  %v983 = vmax.f32 %v943, 0.0
  %v984 = vmax.f32 %v944, 0.0
  %v985 = vmax.f32 %v945, 0.0
  %v986 = vmax.f32 %v946, 0.0
  %v987 = vmax.f32 %v947, 0.0
  %v988 = vmax.f32 %v948, 0.0
  %v989 = vmax.f32 %v949, 0.0
  %v990 = vmax.f32 %v950, 0.0
  %v991 = vmax.f32 %v951, 0.0
  %v992 = vmax.f32 %v952, 0.0
  %v993 = vmax.f32 %v953, 0.0
  %v994 = vmax.f32 %v954, 0.0
  %v995 = vmax.f32 %v955, 0.0
  %v996 = vmax.f32 %v956, 0.0
  %v997 = vmax.f32 %v957, 0.0
  %v998 = vmax.f32 %v958, 0.0
  %v999 = vmax.f32 %v959, 0.0
  %v1000 = vmax.f32 %v960, 0.0
  %v1001 = vmax.f32 %v961, 0.0
  %1002 = vst [vmem:[#allocation2] sm:$0xff] %v962
  %1003 = vst [vmem:[#allocation2 + $0x8] sm:$0xff] %v963
  %1004 = vst [vmem:[#allocation2 + $0x10] sm:$0xff] %v964
  %1005 = vst [vmem:[#allocation2 + $0x18] sm:$0xff] %v965
  %1006 = vst [vmem:[#allocation2 + $0x20] sm:$0xff] %v966
  %1007 = vst [vmem:[#allocation2 + $0x28] sm:$0xff] %v967
  %1008 = vst [vmem:[#allocation2 + $0x30] sm:$0xff] %v968
  %1009 = vst [vmem:[#allocation2 + $0x38] sm:$0xff] %v969
  %1010 = vst [vmem:[#allocation2 + $0x40] sm:$0xff] %v970
  %1011 = vst [vmem:[#allocation2 + $0x48] sm:$0xff] %v971
  %1012 = vst [vmem:[#allocation2 + $0x50] sm:$0xff] %v972
  %1013 = vst [vmem:[#allocation2 + $0x58] sm:$0xff] %v973
  %1014 = vst [vmem:[#allocation2 + $0x60] sm:$0xff] %v974
  %1015 = vst [vmem:[#allocation2 + $0x68] sm:$0xff] %v975
  %1016 = vst [vmem:[#allocation2 + $0x70] sm:$0xff] %v976
  %1017 = vst [vmem:[#allocation2 + $0x78] sm:$0xff] %v977
  %1018 = vst [vmem:[#allocation2 + $0x80] sm:$0xff] %v978
  %1019 = vst [vmem:[#allocation2 + $0x88] sm:$0xff] %v979
  %1020 = vst [vmem:[#allocation2 + $0x90] sm:$0xff] %v980
  %1021 = vst [vmem:[#allocation2 + $0x98] sm:$0xff] %v981
  %1022 = vst [vmem:[#allocation2 + $0xa0] sm:$0xff] %v982
  %1023 = vst [vmem:[#allocation2 + $0xa8] sm:$0xff] %v983
  %1024 = vst [vmem:[#allocation2 + $0xb0] sm:$0xff] %v984
  %1025 = vst [vmem:[#allocation2 + $0xb8] sm:$0xff] %v985
  %1026 = vst [vmem:[#allocation2 + $0xc0] sm:$0xff] %v986
  %1027 = vst [vmem:[#allocation2 + $0xc8] sm:$0xff] %v987
  %1028 = vst [vmem:[#allocation2 + $0xd0] sm:$0xff] %v988
  %1029 = vst [vmem:[#allocation2 + $0xd8] sm:$0xff] %v989
  %1030 = vst [vmem:[#allocation2 + $0xe0] sm:$0xff] %v990
  %1031 = vst [vmem:[#allocation2 + $0xe8] sm:$0xff] %v991
  %1032 = vst [vmem:[#allocation2 + $0xf0] sm:$0xff] %v992
  %1033 = vst [vmem:[#allocation2 + $0xf8] sm:$0xff] %v993
  %1034 = vst [vmem:[#allocation2 + $0x100] sm:$0xff] %v994
  %1035 = vst [vmem:[#allocation2 + $0x108] sm:$0xff] %v995
  %1036 = vst [vmem:[#allocation2 + $0x110] sm:$0xff] %v996
  %1037 = vst [vmem:[#allocation2 + $0x118] sm:$0xff] %v997
  %1038 = vst [vmem:[#allocation2 + $0x120] sm:$0xff] %v998
  %1039 = vst [vmem:[#allocation2 + $0x128] sm:$0xff] %v999
  %1040 = vst [vmem:[#allocation2 + $0x130] sm:$0x3f] %v1000
  %1041 = vst [vmem:[#allocation2 + $0x138] sm:$0x3f] %v1001
  %v1042 = vld [vmem:[#allocation2] sm:$0xff]
  %v1043 = vld [vmem:[#allocation2 + $0x8] sm:$0xff]
  %v1044 = vld [vmem:[#allocation2 + $0x10] sm:$0xff]
  %v1045 = vld [vmem:[#allocation2 + $0x18] sm:$0xff]
  %v1046 = vld [vmem:[#allocation2 + $0x20] sm:$0xff]
  %v1047 = vld [vmem:[#allocation2 + $0x28] sm:$0xff]
  %v1048 = vld [vmem:[#allocation2 + $0x30] sm:$0xff]
  %v1049 = vld [vmem:[#allocation2 + $0x38] sm:$0xff]
  %v1050 = vld [vmem:[#allocation2 + $0x40] sm:$0xff]
  %v1051 = vld [vmem:[#allocation2 + $0x48] sm:$0xff]
  %v1052 = vld [vmem:[#allocation2 + $0x50] sm:$0xff]
  %v1053 = vld [vmem:[#allocation2 + $0x58] sm:$0xff]
  %v1054 = vld [vmem:[#allocation2 + $0x60] sm:$0xff]
  %v1055 = vld [vmem:[#allocation2 + $0x68] sm:$0xff]
  %v1056 = vld [vmem:[#allocation2 + $0x70] sm:$0xff]
  %v1057 = vld [vmem:[#allocation2 + $0x78] sm:$0xff]
  %v1058 = vld [vmem:[#allocation2 + $0x80] sm:$0xff]
  %v1059 = vld [vmem:[#allocation2 + $0x88] sm:$0xff]
  %v1060 = vld [vmem:[#allocation2 + $0x90] sm:$0xff]
  %v1061 = vld [vmem:[#allocation2 + $0x98] sm:$0xff]
  %v1062 = vld [vmem:[#allocation2 + $0xa0] sm:$0xff]
  %v1063 = vld [vmem:[#allocation2 + $0xa8] sm:$0xff]
  %v1064 = vld [vmem:[#allocation2 + $0xb0] sm:$0xff]
  %v1065 = vld [vmem:[#allocation2 + $0xb8] sm:$0xff]
  %v1066 = vld [vmem:[#allocation2 + $0xc0] sm:$0xff]
  %v1067 = vld [vmem:[#allocation2 + $0xc8] sm:$0xff]
  %v1068 = vld [vmem:[#allocation2 + $0xd0] sm:$0xff]
  %v1069 = vld [vmem:[#allocation2 + $0xd8] sm:$0xff]
  %v1070 = vld [vmem:[#allocation2 + $0xe0] sm:$0xff]
  %v1071 = vld [vmem:[#allocation2 + $0xe8] sm:$0xff]
  %v1072 = vld [vmem:[#allocation2 + $0xf0] sm:$0xff]
  %v1073 = vld [vmem:[#allocation2 + $0xf8] sm:$0xff]
  %v1074 = vld [vmem:[#allocation2 + $0x100] sm:$0xff]
  %v1075 = vld [vmem:[#allocation2 + $0x108] sm:$0xff]
  %v1076 = vld [vmem:[#allocation2 + $0x110] sm:$0xff]
  %v1077 = vld [vmem:[#allocation2 + $0x118] sm:$0xff]
  %v1078 = vld [vmem:[#allocation2 + $0x120] sm:$0xff]
  %v1079 = vld [vmem:[#allocation2 + $0x128] sm:$0xff]
  %v1080 = vld [vmem:[#allocation2 + $0x130] sm:$0xf]
  %v1081 = vld [vmem:[#allocation2 + $0x138] sm:$0xf]
  %v1082 = vld [vmem:[%s3] sm:$0xff]
  %v1083 = vld [vmem:[%s3 + $0x8] sm:$0xff]
  %v1084 = vld [vmem:[%s3 + $0x10] sm:$0xff]
  %v1085 = vld [vmem:[%s3 + $0x18] sm:$0xff]
  %v1086 = vld [vmem:[%s3 + $0x20] sm:$0xff]
  %v1087 = vld [vmem:[%s3 + $0x28] sm:$0xff]
  %v1088 = vld [vmem:[%s3 + $0x30] sm:$0xff]
  %v1089 = vld [vmem:[%s3 + $0x38] sm:$0xff]
  %v1090 = vld [vmem:[%s3 + $0x40] sm:$0xff]
  %v1091 = vld [vmem:[%s3 + $0x48] sm:$0xff]
  %v1092 = vld [vmem:[%s3 + $0x50] sm:$0xff]
  %v1093 = vld [vmem:[%s3 + $0x58] sm:$0xff]
  %v1094 = vld [vmem:[%s3 + $0x60] sm:$0xff]
  %v1095 = vld [vmem:[%s3 + $0x68] sm:$0xff]
  %v1096 = vld [vmem:[%s3 + $0x70] sm:$0xff]
  %v1097 = vld [vmem:[%s3 + $0x78] sm:$0xff]
  %v1098 = vld [vmem:[%s3 + $0x80] sm:$0xff]
  %v1099 = vld [vmem:[%s3 + $0x88] sm:$0xff]
  %v1100 = vld [vmem:[%s3 + $0x90] sm:$0xff]
  %v1101 = vld [vmem:[%s3 + $0x98] sm:$0xff]
  %v1102 = vld [vmem:[%s3 + $0xa0] sm:$0xff]
  %v1103 = vld [vmem:[%s3 + $0xa8] sm:$0xff]
  %v1104 = vld [vmem:[%s3 + $0xb0] sm:$0xff]
  %v1105 = vld [vmem:[%s3 + $0xb8] sm:$0xff]
  %v1106 = vld [vmem:[%s3 + $0xc0] sm:$0xff]
  %v1107 = vld [vmem:[%s3 + $0xc8] sm:$0xff]
  %v1108 = vld [vmem:[%s3 + $0xd0] sm:$0xff]
  %v1109 = vld [vmem:[%s3 + $0xd8] sm:$0xff]
  %v1110 = vld [vmem:[%s3 + $0xe0] sm:$0xff]
  %v1111 = vld [vmem:[%s3 + $0xe8] sm:$0xff]
  %v1112 = vld [vmem:[%s3 + $0xf0] sm:$0xff]
  %v1113 = vld [vmem:[%s3 + $0xf8] sm:$0xff]
  %v1114 = vld [vmem:[%s3 + $0x100] sm:$0xff]
  %v1115 = vld [vmem:[%s3 + $0x108] sm:$0xff]
  %v1116 = vld [vmem:[%s3 + $0x110] sm:$0xff]
  %v1117 = vld [vmem:[%s3 + $0x118] sm:$0xff]
  %v1118 = vld [vmem:[%s3 + $0x120] sm:$0xff]
  %v1119 = vld [vmem:[%s3 + $0x128] sm:$0xff]
  %v1120 = vld [vmem:[%s3 + $0x130] sm:$0xff]
  %v1121 = vld [vmem:[%s3 + $0x138] sm:$0xff]
  %v1122 = vld [vmem:[%s3 + $0x140] sm:$0xff]
  %v1123 = vld [vmem:[%s3 + $0x148] sm:$0xff]
  %v1124 = vld [vmem:[%s3 + $0x150] sm:$0xff]
  %v1125 = vld [vmem:[%s3 + $0x158] sm:$0xff]
  %v1126 = vld [vmem:[%s3 + $0x160] sm:$0xff]
  %v1127 = vld [vmem:[%s3 + $0x168] sm:$0xff]
  %v1128 = vld [vmem:[%s3 + $0x170] sm:$0xff]
  %v1129 = vld [vmem:[%s3 + $0x178] sm:$0xff]
  %v1130 = vld [vmem:[%s3 + $0x180] sm:$0xff]
  %v1131 = vld [vmem:[%s3 + $0x188] sm:$0xff]
  %v1132 = vld [vmem:[%s3 + $0x190] sm:$0xff]
  %v1133 = vld [vmem:[%s3 + $0x198] sm:$0xff]
  %v1134 = vld [vmem:[%s3 + $0x1a0] sm:$0xff]
  %v1135 = vld [vmem:[%s3 + $0x1a8] sm:$0xff]
  %v1136 = vld [vmem:[%s3 + $0x1b0] sm:$0xff]
  %v1137 = vld [vmem:[%s3 + $0x1b8] sm:$0xff]
  %v1138 = vld [vmem:[%s3 + $0x1c0] sm:$0xff]
  %v1139 = vld [vmem:[%s3 + $0x1c8] sm:$0xff]
  %v1140 = vld [vmem:[%s3 + $0x1d0] sm:$0xff]
  %v1141 = vld [vmem:[%s3 + $0x1d8] sm:$0xff]
  %v1142 = vld [vmem:[%s3 + $0x1e0] sm:$0xff]
  %v1143 = vld [vmem:[%s3 + $0x1e8] sm:$0xff]
  %v1144 = vld [vmem:[%s3 + $0x1f0] sm:$0xff]
  %v1145 = vld [vmem:[%s3 + $0x1f8] sm:$0xff]
  %v1146 = vld [vmem:[#allocation2] sm:$0xfe]
  %v1147 = vld [vmem:[#allocation2 + $0x8] sm:$0xfe]
  %v1148 = vld [vmem:[#allocation2 + $0x130] sm:$0x1f]
  %v1149 = vld [vmem:[#allocation2 + $0x138] sm:$0x1f]
  %s1150 = scalar_lea.vmem %s3, 512
  %v1151 = vld [vmem:[%s1150] sm:$0xff]
  %v1152 = vld [vmem:[%s1150 + $0x8] sm:$0xff]
  %v1153 = vld [vmem:[%s1150 + $0x10] sm:$0xff]
  %v1154 = vld [vmem:[%s1150 + $0x18] sm:$0xff]
  %v1155 = vld [vmem:[%s1150 + $0x20] sm:$0xff]
  %v1156 = vld [vmem:[%s1150 + $0x28] sm:$0xff]
  %v1157 = vld [vmem:[%s1150 + $0x30] sm:$0xff]
  %v1158 = vld [vmem:[%s1150 + $0x38] sm:$0xff]
  %v1159 = vld [vmem:[%s1150 + $0x40] sm:$0xff]
  %v1160 = vld [vmem:[%s1150 + $0x48] sm:$0xff]
  %v1161 = vld [vmem:[%s1150 + $0x50] sm:$0xff]
  %v1162 = vld [vmem:[%s1150 + $0x58] sm:$0xff]
  %v1163 = vld [vmem:[%s1150 + $0x60] sm:$0xff]
  %v1164 = vld [vmem:[%s1150 + $0x68] sm:$0xff]
  %v1165 = vld [vmem:[%s1150 + $0x70] sm:$0xff]
  %v1166 = vld [vmem:[%s1150 + $0x78] sm:$0xff]
  %v1167 = vld [vmem:[%s1150 + $0x80] sm:$0xff]
  %v1168 = vld [vmem:[%s1150 + $0x88] sm:$0xff]
  %v1169 = vld [vmem:[%s1150 + $0x90] sm:$0xff]
  %v1170 = vld [vmem:[%s1150 + $0x98] sm:$0xff]
  %v1171 = vld [vmem:[%s1150 + $0xa0] sm:$0xff]
  %v1172 = vld [vmem:[%s1150 + $0xa8] sm:$0xff]
  %v1173 = vld [vmem:[%s1150 + $0xb0] sm:$0xff]
  %v1174 = vld [vmem:[%s1150 + $0xb8] sm:$0xff]
  %v1175 = vld [vmem:[%s1150 + $0xc0] sm:$0xff]
  %v1176 = vld [vmem:[%s1150 + $0xc8] sm:$0xff]
  %v1177 = vld [vmem:[%s1150 + $0xd0] sm:$0xff]
  %v1178 = vld [vmem:[%s1150 + $0xd8] sm:$0xff]
  %v1179 = vld [vmem:[%s1150 + $0xe0] sm:$0xff]
  %v1180 = vld [vmem:[%s1150 + $0xe8] sm:$0xff]
  %v1181 = vld [vmem:[%s1150 + $0xf0] sm:$0xff]
  %v1182 = vld [vmem:[%s1150 + $0xf8] sm:$0xff]
  %v1183 = vld [vmem:[%s1150 + $0x100] sm:$0xff]
  %v1184 = vld [vmem:[%s1150 + $0x108] sm:$0xff]
  %v1185 = vld [vmem:[%s1150 + $0x110] sm:$0xff]
  %v1186 = vld [vmem:[%s1150 + $0x118] sm:$0xff]
  %v1187 = vld [vmem:[%s1150 + $0x120] sm:$0xff]
  %v1188 = vld [vmem:[%s1150 + $0x128] sm:$0xff]
  %v1189 = vld [vmem:[%s1150 + $0x130] sm:$0xff]
  %v1190 = vld [vmem:[%s1150 + $0x138] sm:$0xff]
  %v1191 = vld [vmem:[%s1150 + $0x140] sm:$0xff]
  %v1192 = vld [vmem:[%s1150 + $0x148] sm:$0xff]
  %v1193 = vld [vmem:[%s1150 + $0x150] sm:$0xff]
  %v1194 = vld [vmem:[%s1150 + $0x158] sm:$0xff]
  %v1195 = vld [vmem:[%s1150 + $0x160] sm:$0xff]
  %v1196 = vld [vmem:[%s1150 + $0x168] sm:$0xff]
  %v1197 = vld [vmem:[%s1150 + $0x170] sm:$0xff]
  %v1198 = vld [vmem:[%s1150 + $0x178] sm:$0xff]
  %v1199 = vld [vmem:[%s1150 + $0x180] sm:$0xff]
  %v1200 = vld [vmem:[%s1150 + $0x188] sm:$0xff]
  %v1201 = vld [vmem:[%s1150 + $0x190] sm:$0xff]
  %v1202 = vld [vmem:[%s1150 + $0x198] sm:$0xff]
  %v1203 = vld [vmem:[%s1150 + $0x1a0] sm:$0xff]
  %v1204 = vld [vmem:[%s1150 + $0x1a8] sm:$0xff]
  %v1205 = vld [vmem:[%s1150 + $0x1b0] sm:$0xff]
  %v1206 = vld [vmem:[%s1150 + $0x1b8] sm:$0xff]
  %v1207 = vld [vmem:[%s1150 + $0x1c0] sm:$0xff]
  %v1208 = vld [vmem:[%s1150 + $0x1c8] sm:$0xff]
  %v1209 = vld [vmem:[%s1150 + $0x1d0] sm:$0xff]
  %v1210 = vld [vmem:[%s1150 + $0x1d8] sm:$0xff]
  %v1211 = vld [vmem:[%s1150 + $0x1e0] sm:$0xff]
  %v1212 = vld [vmem:[%s1150 + $0x1e8] sm:$0xff]
  %v1213 = vld [vmem:[%s1150 + $0x1f0] sm:$0xff]
  %v1214 = vld [vmem:[%s1150 + $0x1f8] sm:$0xff]
  %vm1255 = vcmask 1046528
  %v1256 = vrot.slane %v1146, 1
  %v1257 = vrot.slane %v1044, 1
  %v1258 = vsel %vm1255, %v1256, %v1257
  %v1259 = vrot.slane %v1147, 1
  %v1260 = vrot.slane %v1045, 1
  %v1261 = vsel %vm1255, %v1259, %v1260
  %v1262 = vrot.slane %v1046, 1
  %v1263 = vsel %vm1255, %v1257, %v1262
  %v1264 = vrot.slane %v1047, 1
  %v1265 = vsel %vm1255, %v1260, %v1264
  %v1266 = vrot.slane %v1048, 1
  %v1267 = vsel %vm1255, %v1262, %v1266
  %v1268 = vrot.slane %v1049, 1
  %v1269 = vsel %vm1255, %v1264, %v1268
  %v1270 = vrot.slane %v1050, 1
  %v1271 = vsel %vm1255, %v1266, %v1270
  %v1272 = vrot.slane %v1051, 1
  %v1273 = vsel %vm1255, %v1268, %v1272
  %v1274 = vrot.slane %v1052, 1
  %v1275 = vsel %vm1255, %v1270, %v1274
  %v1276 = vrot.slane %v1053, 1
  %v1277 = vsel %vm1255, %v1272, %v1276
  %v1278 = vrot.slane %v1054, 1
  %v1279 = vsel %vm1255, %v1274, %v1278
  %v1280 = vrot.slane %v1055, 1
  %v1281 = vsel %vm1255, %v1276, %v1280
  %v1282 = vrot.slane %v1056, 1
  %v1283 = vsel %vm1255, %v1278, %v1282
  %v1284 = vrot.slane %v1057, 1
  %v1285 = vsel %vm1255, %v1280, %v1284
  %v1286 = vrot.slane %v1058, 1
  %v1287 = vsel %vm1255, %v1282, %v1286
  %v1288 = vrot.slane %v1059, 1
  %v1289 = vsel %vm1255, %v1284, %v1288
  %v1290 = vrot.slane %v1060, 1
  %v1291 = vsel %vm1255, %v1286, %v1290
  %v1292 = vrot.slane %v1061, 1
  %v1293 = vsel %vm1255, %v1288, %v1292
  %v1294 = vrot.slane %v1062, 1
  %v1295 = vsel %vm1255, %v1290, %v1294
  %v1296 = vrot.slane %v1063, 1
  %v1297 = vsel %vm1255, %v1292, %v1296
  %v1298 = vrot.slane %v1064, 1
  %v1299 = vsel %vm1255, %v1294, %v1298
  %v1300 = vrot.slane %v1065, 1
  %v1301 = vsel %vm1255, %v1296, %v1300
  %v1302 = vrot.slane %v1066, 1
  %v1303 = vsel %vm1255, %v1298, %v1302
  %v1304 = vrot.slane %v1067, 1
  %v1305 = vsel %vm1255, %v1300, %v1304
  %v1306 = vrot.slane %v1068, 1
  %v1307 = vsel %vm1255, %v1302, %v1306
  %v1308 = vrot.slane %v1069, 1
  %v1309 = vsel %vm1255, %v1304, %v1308
  %v1310 = vrot.slane %v1070, 1
  %v1311 = vsel %vm1255, %v1306, %v1310
  %v1312 = vrot.slane %v1071, 1
  %v1313 = vsel %vm1255, %v1308, %v1312
  %v1314 = vrot.slane %v1072, 1
  %v1315 = vsel %vm1255, %v1310, %v1314
  %v1316 = vrot.slane %v1073, 1
  %v1317 = vsel %vm1255, %v1312, %v1316
  %v1318 = vrot.slane %v1074, 1
  %v1319 = vsel %vm1255, %v1314, %v1318
  %v1320 = vrot.slane %v1075, 1
  %v1321 = vsel %vm1255, %v1316, %v1320
  %v1322 = vrot.slane %v1076, 1
  %v1323 = vsel %vm1255, %v1318, %v1322
  %v1324 = vrot.slane %v1077, 1
  %v1325 = vsel %vm1255, %v1320, %v1324
  %v1326 = vrot.slane %v1078, 1
  %v1327 = vsel %vm1255, %v1322, %v1326
  %v1328 = vrot.slane %v1079, 1
  %v1329 = vsel %vm1255, %v1324, %v1328
  %v1330 = vrot.slane %v1148, 1
  %v1331 = vsel %vm1255, %v1326, %v1330
  %v1332 = vrot.slane %v1149, 1
  %v1333 = vsel %vm1255, %v1328, %v1332
  %1374 = vmatprep.subr.mxu0 %v1182
  %1375 = vmatpush1.msra.mxu0 %v1181
  %1376 = vmatprep.subr.mxu0 %v1180
  %1377 = vmatpush1.msra.mxu0 %v1179
  %1378 = vmatprep.subr.mxu0 %v1178
  %1379 = vmatpush1.msra.mxu0 %v1177
  %1380 = vmatprep.subr.mxu0 %v1176
  %1381 = vmatpush1.msra.mxu0 %v1175
  %1382 = vmatprep.subr.mxu0 %v1174
  %1383 = vmatpush1.msra.mxu0 %v1173
  %1384 = vmatprep.subr.mxu0 %v1172
  %1385 = vmatpush1.msra.mxu0 %v1171
  %1386 = vmatprep.subr.mxu0 %v1170
  %1387 = vmatpush1.msra.mxu0 %v1169
  %1388 = vmatprep.subr.mxu0 %v1168
  %1389 = vmatpush1.msra.mxu0 %v1167
  %1390 = vmatprep.subr.mxu0 %v1166
  %1391 = vmatpush1.msra.mxu0 %v1165
  %1392 = vmatprep.subr.mxu0 %v1164
  %1393 = vmatpush1.msra.mxu0 %v1163
  %1394 = vmatprep.subr.mxu0 %v1162
  %1395 = vmatpush1.msra.mxu0 %v1161
  %1396 = vmatprep.subr.mxu0 %v1160
  %1397 = vmatpush1.msra.mxu0 %v1159
  %1398 = vmatprep.subr.mxu0 %v1158
  %1399 = vmatpush1.msra.mxu0 %v1157
  %1400 = vmatprep.subr.mxu0 %v1156
  %1401 = vmatpush1.msra.mxu0 %v1155
  %1402 = vmatprep.subr.mxu0 %v1154
  %1403 = vmatpush1.msra.mxu0 %v1153
  %1404 = vmatprep.subr.mxu0 %v1152
  %1405 = vmatpush1.msra.mxu0 %v1151
  %1406 = vmatprep.subr.mxu0 %v1214
  %1407 = vmatpush2.msra.mxu0 %v1213
  %1408 = vmatprep.subr.mxu0 %v1212
  %1409 = vmatpush2.msra.mxu0 %v1211
  %1410 = vmatprep.subr.mxu0 %v1210
  %1411 = vmatpush2.msra.mxu0 %v1209
  %1412 = vmatprep.subr.mxu0 %v1208
  %1413 = vmatpush2.msra.mxu0 %v1207
  %1414 = vmatprep.subr.mxu0 %v1206
  %1415 = vmatpush2.msra.mxu0 %v1205
  %1416 = vmatprep.subr.mxu0 %v1204
  %1417 = vmatpush2.msra.mxu0 %v1203
  %1418 = vmatprep.subr.mxu0 %v1202
  %1419 = vmatpush2.msra.mxu0 %v1201
  %1420 = vmatprep.subr.mxu0 %v1200
  %1421 = vmatpush2.msra.mxu0 %v1199
  %1422 = vmatprep.subr.mxu0 %v1198
  %1423 = vmatpush2.msra.mxu0 %v1197
  %1424 = vmatprep.subr.mxu0 %v1196
  %1425 = vmatpush2.msra.mxu0 %v1195
  %1426 = vmatprep.subr.mxu0 %v1194
  %1427 = vmatpush2.msra.mxu0 %v1193
  %1428 = vmatprep.subr.mxu0 %v1192
  %1429 = vmatpush2.msra.mxu0 %v1191
  %1430 = vmatprep.subr.mxu0 %v1190
  %1431 = vmatpush2.msra.mxu0 %v1189
  %1432 = vmatprep.subr.mxu0 %v1188
  %1433 = vmatpush2.msra.mxu0 %v1187
  %1434 = vmatprep.subr.mxu0 %v1186
  %1435 = vmatpush2.msra.mxu0 %v1185
  %1436 = vmatprep.subr.mxu0 %v1184
  %1437 = vmatpush2.msra.mxu0 %v1183
  %1438 = vmatprep.mubr.f32.mxu0 %v1261
  %1439 = vmatmul.mubr.f32.gmra.mxu0 %v1258
  %v1440 = vpop.f32.mrf.mxu0
  %v1441 = vadd.f32 0.0, %v1440
  %v1442 = vpop.f32.mrf.mxu0
  %v1443 = vadd.f32 0.0, %v1442
  %1444 = vmatprep.mubr.f32.mxu0 %v1265
  %1445 = vmatmul.mubr.f32.gmra.mxu0 %v1263
  %v1446 = vpop.f32.mrf.mxu0
  %v1447 = vadd.f32 0.0, %v1446
  %v1448 = vpop.f32.mrf.mxu0
  %v1449 = vadd.f32 0.0, %v1448
  %1450 = vmatprep.mubr.f32.mxu0 %v1269
  %1451 = vmatmul.mubr.f32.gmra.mxu0 %v1267
  %v1452 = vpop.f32.mrf.mxu0
  %v1453 = vadd.f32 0.0, %v1452
  %v1454 = vpop.f32.mrf.mxu0
  %v1455 = vadd.f32 0.0, %v1454
  %1456 = vmatprep.mubr.f32.mxu0 %v1273
  %1457 = vmatmul.mubr.f32.gmra.mxu0 %v1271
  %v1458 = vpop.f32.mrf.mxu0
  %v1459 = vadd.f32 0.0, %v1458
  %v1460 = vpop.f32.mrf.mxu0
  %v1461 = vadd.f32 0.0, %v1460
  %1462 = vmatprep.mubr.f32.mxu0 %v1277
  %1463 = vmatmul.mubr.f32.gmra.mxu0 %v1275
  %v1464 = vpop.f32.mrf.mxu0
  %v1465 = vadd.f32 0.0, %v1464
  %v1466 = vpop.f32.mrf.mxu0
  %v1467 = vadd.f32 0.0, %v1466
  %1468 = vmatprep.mubr.f32.mxu0 %v1281
  %1469 = vmatmul.mubr.f32.gmra.mxu0 %v1279
  %v1470 = vpop.f32.mrf.mxu0
  %v1471 = vadd.f32 0.0, %v1470
  %v1472 = vpop.f32.mrf.mxu0
  %v1473 = vadd.f32 0.0, %v1472
  %1474 = vmatprep.mubr.f32.mxu0 %v1285
  %1475 = vmatmul.mubr.f32.gmra.mxu0 %v1283
  %v1476 = vpop.f32.mrf.mxu0
  %v1477 = vadd.f32 0.0, %v1476
  %v1478 = vpop.f32.mrf.mxu0
  %v1479 = vadd.f32 0.0, %v1478
  %1480 = vmatprep.mubr.f32.mxu0 %v1289
  %1481 = vmatmul.mubr.f32.gmra.mxu0 %v1287
  %v1482 = vpop.f32.mrf.mxu0
  %v1483 = vadd.f32 0.0, %v1482
  %v1484 = vpop.f32.mrf.mxu0
  %v1485 = vadd.f32 0.0, %v1484
  %1486 = vmatprep.mubr.f32.mxu0 %v1293
  %1487 = vmatmul.mubr.f32.gmra.mxu0 %v1291
  %v1488 = vpop.f32.mrf.mxu0
  %v1489 = vadd.f32 0.0, %v1488
  %v1490 = vpop.f32.mrf.mxu0
  %v1491 = vadd.f32 0.0, %v1490
  %1492 = vmatprep.mubr.f32.mxu0 %v1297
  %1493 = vmatmul.mubr.f32.gmra.mxu0 %v1295
  %v1494 = vpop.f32.mrf.mxu0
  %v1495 = vadd.f32 0.0, %v1494
  %v1496 = vpop.f32.mrf.mxu0
  %v1497 = vadd.f32 0.0, %v1496
  %1498 = vmatprep.mubr.f32.mxu0 %v1301
  %1499 = vmatmul.mubr.f32.gmra.mxu0 %v1299
  %v1500 = vpop.f32.mrf.mxu0
  %v1501 = vadd.f32 0.0, %v1500
  %v1502 = vpop.f32.mrf.mxu0
  %v1503 = vadd.f32 0.0, %v1502
  %1504 = vmatprep.mubr.f32.mxu0 %v1305
  %1505 = vmatmul.mubr.f32.gmra.mxu0 %v1303
  %v1506 = vpop.f32.mrf.mxu0
  %v1507 = vadd.f32 0.0, %v1506
  %v1508 = vpop.f32.mrf.mxu0
  %v1509 = vadd.f32 0.0, %v1508
  %1510 = vmatprep.mubr.f32.mxu0 %v1309
  %1511 = vmatmul.mubr.f32.gmra.mxu0 %v1307
  %v1512 = vpop.f32.mrf.mxu0
  %v1513 = vadd.f32 0.0, %v1512
  %v1514 = vpop.f32.mrf.mxu0
  %v1515 = vadd.f32 0.0, %v1514
  %1516 = vmatprep.mubr.f32.mxu0 %v1313
  %1517 = vmatmul.mubr.f32.gmra.mxu0 %v1311
  %v1518 = vpop.f32.mrf.mxu0
  %v1519 = vadd.f32 0.0, %v1518
  %v1520 = vpop.f32.mrf.mxu0
  %v1521 = vadd.f32 0.0, %v1520
  %1522 = vmatprep.mubr.f32.mxu0 %v1317
  %1523 = vmatmul.mubr.f32.gmra.mxu0 %v1315
  %v1524 = vpop.f32.mrf.mxu0
  %v1525 = vadd.f32 0.0, %v1524
  %v1526 = vpop.f32.mrf.mxu0
  %v1527 = vadd.f32 0.0, %v1526
  %1528 = vmatprep.mubr.f32.mxu0 %v1321
  %1529 = vmatmul.mubr.f32.gmra.mxu0 %v1319
  %v1530 = vpop.f32.mrf.mxu0
  %v1531 = vadd.f32 0.0, %v1530
  %v1532 = vpop.f32.mrf.mxu0
  %v1533 = vadd.f32 0.0, %v1532
  %1534 = vmatprep.mubr.f32.mxu0 %v1325
  %1535 = vmatmul.mubr.f32.gmra.mxu0 %v1323
  %v1536 = vpop.f32.mrf.mxu0
  %v1537 = vadd.f32 0.0, %v1536
  %v1538 = vpop.f32.mrf.mxu0
  %v1539 = vadd.f32 0.0, %v1538
  %1540 = vmatprep.mubr.f32.mxu0 %v1329
  %1541 = vmatmul.mubr.f32.gmra.mxu0 %v1327
  %v1542 = vpop.f32.mrf.mxu0
  %v1543 = vadd.f32 0.0, %v1542
  %v1544 = vpop.f32.mrf.mxu0
  %v1545 = vadd.f32 0.0, %v1544
  %1546 = vmatprep.mubr.f32.mxu0 %v1333
  %1547 = vmatmul.mubr.f32.gmra.mxu0 %v1331
  %v1548 = vpop.f32.mrf.mxu0
  %v1549 = vadd.f32 0.0, %v1548
  %v1550 = vpop.f32.mrf.mxu0
  %v1551 = vadd.f32 0.0, %v1550
  %1552 = vmatprep.mubr.f32.mxu0 %v1332
  %1553 = vmatmul.mubr.f32.gmra.mxu0 %v1330
  %v1554 = vpop.f32.mrf.mxu0
  %v1555 = vadd.f32 0.0, %v1554
  %v1556 = vpop.f32.mrf.mxu0
  %v1557 = vadd.f32 0.0, %v1556
  %1558 = vdwg.mxu0
  %1559 = vmatprep.subr.mxu0 %v1113
  %1560 = vmatpush1.msra.mxu0 %v1112
  %1561 = vmatprep.subr.mxu0 %v1111
  %1562 = vmatpush1.msra.mxu0 %v1110
  %1563 = vmatprep.subr.mxu0 %v1109
  %1564 = vmatpush1.msra.mxu0 %v1108
  %1565 = vmatprep.subr.mxu0 %v1107
  %1566 = vmatpush1.msra.mxu0 %v1106
  %1567 = vmatprep.subr.mxu0 %v1105
  %1568 = vmatpush1.msra.mxu0 %v1104
  %1569 = vmatprep.subr.mxu0 %v1103
  %1570 = vmatpush1.msra.mxu0 %v1102
  %1571 = vmatprep.subr.mxu0 %v1101
  %1572 = vmatpush1.msra.mxu0 %v1100
  %1573 = vmatprep.subr.mxu0 %v1099
  %1574 = vmatpush1.msra.mxu0 %v1098
  %1575 = vmatprep.subr.mxu0 %v1097
  %1576 = vmatpush1.msra.mxu0 %v1096
  %1577 = vmatprep.subr.mxu0 %v1095
  %1578 = vmatpush1.msra.mxu0 %v1094
  %1579 = vmatprep.subr.mxu0 %v1093
  %1580 = vmatpush1.msra.mxu0 %v1092
  %1581 = vmatprep.subr.mxu0 %v1091
  %1582 = vmatpush1.msra.mxu0 %v1090
  %1583 = vmatprep.subr.mxu0 %v1089
  %1584 = vmatpush1.msra.mxu0 %v1088
  %1585 = vmatprep.subr.mxu0 %v1087
  %1586 = vmatpush1.msra.mxu0 %v1086
  %1587 = vmatprep.subr.mxu0 %v1085
  %1588 = vmatpush1.msra.mxu0 %v1084
  %1589 = vmatprep.subr.mxu0 %v1083
  %1590 = vmatpush1.msra.mxu0 %v1082
  %1591 = vmatprep.subr.mxu0 %v1145
  %1592 = vmatpush2.msra.mxu0 %v1144
  %1593 = vmatprep.subr.mxu0 %v1143
  %1594 = vmatpush2.msra.mxu0 %v1142
  %1595 = vmatprep.subr.mxu0 %v1141
  %1596 = vmatpush2.msra.mxu0 %v1140
  %1597 = vmatprep.subr.mxu0 %v1139
  %1598 = vmatpush2.msra.mxu0 %v1138
  %1599 = vmatprep.subr.mxu0 %v1137
  %1600 = vmatpush2.msra.mxu0 %v1136
  %1601 = vmatprep.subr.mxu0 %v1135
  %1602 = vmatpush2.msra.mxu0 %v1134
  %1603 = vmatprep.subr.mxu0 %v1133
  %1604 = vmatpush2.msra.mxu0 %v1132
  %1605 = vmatprep.subr.mxu0 %v1131
  %1606 = vmatpush2.msra.mxu0 %v1130
  %1607 = vmatprep.subr.mxu0 %v1129
  %1608 = vmatpush2.msra.mxu0 %v1128
  %1609 = vmatprep.subr.mxu0 %v1127
  %1610 = vmatpush2.msra.mxu0 %v1126
  %1611 = vmatprep.subr.mxu0 %v1125
  %1612 = vmatpush2.msra.mxu0 %v1124
  %1613 = vmatprep.subr.mxu0 %v1123
  %1614 = vmatpush2.msra.mxu0 %v1122
  %1615 = vmatprep.subr.mxu0 %v1121
  %1616 = vmatpush2.msra.mxu0 %v1120
  %1617 = vmatprep.subr.mxu0 %v1119
  %1618 = vmatpush2.msra.mxu0 %v1118
  %1619 = vmatprep.subr.mxu0 %v1117
  %1620 = vmatpush2.msra.mxu0 %v1116
  %1621 = vmatprep.subr.mxu0 %v1115
  %1622 = vmatpush2.msra.mxu0 %v1114
  %1623 = vmatprep.mubr.f32.mxu0 %v1043
  %1624 = vmatmul.mubr.f32.gmra.mxu0 %v1042
  %v1625 = vpop.f32.mrf.mxu0
  %v1626 = vadd.f32 %v1441, %v1625
  %v1627 = vpop.f32.mrf.mxu0
  %v1628 = vadd.f32 %v1443, %v1627
  %1629 = vmatprep.mubr.f32.mxu0 %v1045
  %1630 = vmatmul.mubr.f32.gmra.mxu0 %v1044
  %v1631 = vpop.f32.mrf.mxu0
  %v1632 = vadd.f32 %v1447, %v1631
  %v1633 = vpop.f32.mrf.mxu0
  %v1634 = vadd.f32 %v1449, %v1633
  %1635 = vmatprep.mubr.f32.mxu0 %v1047
  %1636 = vmatmul.mubr.f32.gmra.mxu0 %v1046
  %v1637 = vpop.f32.mrf.mxu0
  %v1638 = vadd.f32 %v1453, %v1637
  %v1639 = vpop.f32.mrf.mxu0
  %v1640 = vadd.f32 %v1455, %v1639
  %1641 = vmatprep.mubr.f32.mxu0 %v1049
  %1642 = vmatmul.mubr.f32.gmra.mxu0 %v1048
  %v1643 = vpop.f32.mrf.mxu0
  %v1644 = vadd.f32 %v1459, %v1643
  %v1645 = vpop.f32.mrf.mxu0
  %v1646 = vadd.f32 %v1461, %v1645
  %1647 = vmatprep.mubr.f32.mxu0 %v1051
  %1648 = vmatmul.mubr.f32.gmra.mxu0 %v1050
  %v1649 = vpop.f32.mrf.mxu0
  %v1650 = vadd.f32 %v1465, %v1649
  %v1651 = vpop.f32.mrf.mxu0
  %v1652 = vadd.f32 %v1467, %v1651
  %1653 = vmatprep.mubr.f32.mxu0 %v1053
  %1654 = vmatmul.mubr.f32.gmra.mxu0 %v1052
  %v1655 = vpop.f32.mrf.mxu0
  %v1656 = vadd.f32 %v1471, %v1655
  %v1657 = vpop.f32.mrf.mxu0
  %v1658 = vadd.f32 %v1473, %v1657
  %1659 = vmatprep.mubr.f32.mxu0 %v1055
  %1660 = vmatmul.mubr.f32.gmra.mxu0 %v1054
  %v1661 = vpop.f32.mrf.mxu0
  %v1662 = vadd.f32 %v1477, %v1661
  %v1663 = vpop.f32.mrf.mxu0
  %v1664 = vadd.f32 %v1479, %v1663
  %1665 = vmatprep.mubr.f32.mxu0 %v1057
  %1666 = vmatmul.mubr.f32.gmra.mxu0 %v1056
  %v1667 = vpop.f32.mrf.mxu0
  %v1668 = vadd.f32 %v1483, %v1667
  %v1669 = vpop.f32.mrf.mxu0
  %v1670 = vadd.f32 %v1485, %v1669
  %1671 = vmatprep.mubr.f32.mxu0 %v1059
  %1672 = vmatmul.mubr.f32.gmra.mxu0 %v1058
  %v1673 = vpop.f32.mrf.mxu0
  %v1674 = vadd.f32 %v1489, %v1673
  %v1675 = vpop.f32.mrf.mxu0
  %v1676 = vadd.f32 %v1491, %v1675
  %1677 = vmatprep.mubr.f32.mxu0 %v1061
  %1678 = vmatmul.mubr.f32.gmra.mxu0 %v1060
  %v1679 = vpop.f32.mrf.mxu0
  %v1680 = vadd.f32 %v1495, %v1679
  %v1681 = vpop.f32.mrf.mxu0
  %v1682 = vadd.f32 %v1497, %v1681
  %1683 = vmatprep.mubr.f32.mxu0 %v1063
  %1684 = vmatmul.mubr.f32.gmra.mxu0 %v1062
  %v1685 = vpop.f32.mrf.mxu0
  %v1686 = vadd.f32 %v1501, %v1685
  %v1687 = vpop.f32.mrf.mxu0
  %v1688 = vadd.f32 %v1503, %v1687
  %1689 = vmatprep.mubr.f32.mxu0 %v1065
  %1690 = vmatmul.mubr.f32.gmra.mxu0 %v1064
  %v1691 = vpop.f32.mrf.mxu0
  %v1692 = vadd.f32 %v1507, %v1691
  %v1693 = vpop.f32.mrf.mxu0
  %v1694 = vadd.f32 %v1509, %v1693
  %1695 = vmatprep.mubr.f32.mxu0 %v1067
  %1696 = vmatmul.mubr.f32.gmra.mxu0 %v1066
  %v1697 = vpop.f32.mrf.mxu0
  %v1698 = vadd.f32 %v1513, %v1697
  %v1699 = vpop.f32.mrf.mxu0
  %v1700 = vadd.f32 %v1515, %v1699
  %1701 = vmatprep.mubr.f32.mxu0 %v1069
  %1702 = vmatmul.mubr.f32.gmra.mxu0 %v1068
  %v1703 = vpop.f32.mrf.mxu0
  %v1704 = vadd.f32 %v1519, %v1703
  %v1705 = vpop.f32.mrf.mxu0
  %v1706 = vadd.f32 %v1521, %v1705
  %1707 = vmatprep.mubr.f32.mxu0 %v1071
  %1708 = vmatmul.mubr.f32.gmra.mxu0 %v1070
  %v1709 = vpop.f32.mrf.mxu0
  %v1710 = vadd.f32 %v1525, %v1709
  %v1711 = vpop.f32.mrf.mxu0
  %v1712 = vadd.f32 %v1527, %v1711
  %1713 = vmatprep.mubr.f32.mxu0 %v1073
  %1714 = vmatmul.mubr.f32.gmra.mxu0 %v1072
  %v1715 = vpop.f32.mrf.mxu0
  %v1716 = vadd.f32 %v1531, %v1715
  %v1717 = vpop.f32.mrf.mxu0
  %v1718 = vadd.f32 %v1533, %v1717
  %1719 = vmatprep.mubr.f32.mxu0 %v1075
  %1720 = vmatmul.mubr.f32.gmra.mxu0 %v1074
  %v1721 = vpop.f32.mrf.mxu0
  %v1722 = vadd.f32 %v1537, %v1721
  %v1723 = vpop.f32.mrf.mxu0
  %v1724 = vadd.f32 %v1539, %v1723
  %1725 = vmatprep.mubr.f32.mxu0 %v1077
  %1726 = vmatmul.mubr.f32.gmra.mxu0 %v1076
  %v1727 = vpop.f32.mrf.mxu0
  %v1728 = vadd.f32 %v1543, %v1727
  %v1729 = vpop.f32.mrf.mxu0
  %v1730 = vadd.f32 %v1545, %v1729
  %1731 = vmatprep.mubr.f32.mxu0 %v1079
  %1732 = vmatmul.mubr.f32.gmra.mxu0 %v1078
  %v1733 = vpop.f32.mrf.mxu0
  %v1734 = vadd.f32 %v1549, %v1733
  %v1735 = vpop.f32.mrf.mxu0
  %v1736 = vadd.f32 %v1551, %v1735
  %1737 = vmatprep.mubr.f32.mxu0 %v1081
  %1738 = vmatmul.mubr.f32.gmra.mxu0 %v1080
  %v1739 = vpop.f32.mrf.mxu0
  %v1740 = vadd.f32 %v1555, %v1739
  %v1741 = vpop.f32.mrf.mxu0
  %v1742 = vadd.f32 %v1557, %v1741
  %1743 = vdwg.mxu0
  %v1744 = vld [vmem:[#allocation2] sm:$0xfc]
  %v1745 = vld [vmem:[#allocation2 + $0x8] sm:$0xfc]
  %v1746 = vld [vmem:[#allocation2 + $0x130] sm:$0x3f]
  %v1747 = vld [vmem:[#allocation2 + $0x138] sm:$0x3f]
  %s1748 = scalar_lea.vmem %s3, 1024
  %v1749 = vld [vmem:[%s1748] sm:$0xff]
  %v1750 = vld [vmem:[%s1748 + $0x8] sm:$0xff]
  %v1751 = vld [vmem:[%s1748 + $0x10] sm:$0xff]
  %v1752 = vld [vmem:[%s1748 + $0x18] sm:$0xff]
  %v1753 = vld [vmem:[%s1748 + $0x20] sm:$0xff]
  %v1754 = vld [vmem:[%s1748 + $0x28] sm:$0xff]
  %v1755 = vld [vmem:[%s1748 + $0x30] sm:$0xff]
  %v1756 = vld [vmem:[%s1748 + $0x38] sm:$0xff]
  %v1757 = vld [vmem:[%s1748 + $0x40] sm:$0xff]
  %v1758 = vld [vmem:[%s1748 + $0x48] sm:$0xff]
  %v1759 = vld [vmem:[%s1748 + $0x50] sm:$0xff]
  %v1760 = vld [vmem:[%s1748 + $0x58] sm:$0xff]
  %v1761 = vld [vmem:[%s1748 + $0x60] sm:$0xff]
  %v1762 = vld [vmem:[%s1748 + $0x68] sm:$0xff]
  %v1763 = vld [vmem:[%s1748 + $0x70] sm:$0xff]
  %v1764 = vld [vmem:[%s1748 + $0x78] sm:$0xff]
  %v1765 = vld [vmem:[%s1748 + $0x80] sm:$0xff]
  %v1766 = vld [vmem:[%s1748 + $0x88] sm:$0xff]
  %v1767 = vld [vmem:[%s1748 + $0x90] sm:$0xff]
  %v1768 = vld [vmem:[%s1748 + $0x98] sm:$0xff]
  %v1769 = vld [vmem:[%s1748 + $0xa0] sm:$0xff]
  %v1770 = vld [vmem:[%s1748 + $0xa8] sm:$0xff]
  %v1771 = vld [vmem:[%s1748 + $0xb0] sm:$0xff]
  %v1772 = vld [vmem:[%s1748 + $0xb8] sm:$0xff]
  %v1773 = vld [vmem:[%s1748 + $0xc0] sm:$0xff]
  %v1774 = vld [vmem:[%s1748 + $0xc8] sm:$0xff]
  %v1775 = vld [vmem:[%s1748 + $0xd0] sm:$0xff]
  %v1776 = vld [vmem:[%s1748 + $0xd8] sm:$0xff]
  %v1777 = vld [vmem:[%s1748 + $0xe0] sm:$0xff]
  %v1778 = vld [vmem:[%s1748 + $0xe8] sm:$0xff]
  %v1779 = vld [vmem:[%s1748 + $0xf0] sm:$0xff]
  %v1780 = vld [vmem:[%s1748 + $0xf8] sm:$0xff]
  %v1781 = vld [vmem:[%s1748 + $0x100] sm:$0xff]
  %v1782 = vld [vmem:[%s1748 + $0x108] sm:$0xff]
  %v1783 = vld [vmem:[%s1748 + $0x110] sm:$0xff]
  %v1784 = vld [vmem:[%s1748 + $0x118] sm:$0xff]
  %v1785 = vld [vmem:[%s1748 + $0x120] sm:$0xff]
  %v1786 = vld [vmem:[%s1748 + $0x128] sm:$0xff]
  %v1787 = vld [vmem:[%s1748 + $0x130] sm:$0xff]
  %v1788 = vld [vmem:[%s1748 + $0x138] sm:$0xff]
  %v1789 = vld [vmem:[%s1748 + $0x140] sm:$0xff]
  %v1790 = vld [vmem:[%s1748 + $0x148] sm:$0xff]
  %v1791 = vld [vmem:[%s1748 + $0x150] sm:$0xff]
  %v1792 = vld [vmem:[%s1748 + $0x158] sm:$0xff]
  %v1793 = vld [vmem:[%s1748 + $0x160] sm:$0xff]
  %v1794 = vld [vmem:[%s1748 + $0x168] sm:$0xff]
  %v1795 = vld [vmem:[%s1748 + $0x170] sm:$0xff]
  %v1796 = vld [vmem:[%s1748 + $0x178] sm:$0xff]
  %v1797 = vld [vmem:[%s1748 + $0x180] sm:$0xff]
  %v1798 = vld [vmem:[%s1748 + $0x188] sm:$0xff]
  %v1799 = vld [vmem:[%s1748 + $0x190] sm:$0xff]
  %v1800 = vld [vmem:[%s1748 + $0x198] sm:$0xff]
  %v1801 = vld [vmem:[%s1748 + $0x1a0] sm:$0xff]
  %v1802 = vld [vmem:[%s1748 + $0x1a8] sm:$0xff]
  %v1803 = vld [vmem:[%s1748 + $0x1b0] sm:$0xff]
  %v1804 = vld [vmem:[%s1748 + $0x1b8] sm:$0xff]
  %v1805 = vld [vmem:[%s1748 + $0x1c0] sm:$0xff]
  %v1806 = vld [vmem:[%s1748 + $0x1c8] sm:$0xff]
  %v1807 = vld [vmem:[%s1748 + $0x1d0] sm:$0xff]
  %v1808 = vld [vmem:[%s1748 + $0x1d8] sm:$0xff]
  %v1809 = vld [vmem:[%s1748 + $0x1e0] sm:$0xff]
  %v1810 = vld [vmem:[%s1748 + $0x1e8] sm:$0xff]
  %v1811 = vld [vmem:[%s1748 + $0x1f0] sm:$0xff]
  %v1812 = vld [vmem:[%s1748 + $0x1f8] sm:$0xff]
  %vm1817 = vcmask 1045504
  %v1818 = vrot.slane %v1744, 2
  %v1819 = vrot.slane %v1044, 2
  %v1820 = vsel %vm1817, %v1818, %v1819
  %v1821 = vrot.slane %v1745, 2
  %v1822 = vrot.slane %v1045, 2
  %v1823 = vsel %vm1817, %v1821, %v1822
  %v1824 = vrot.slane %v1046, 2
  %v1825 = vsel %vm1817, %v1819, %v1824
  %v1826 = vrot.slane %v1047, 2
  %v1827 = vsel %vm1817, %v1822, %v1826
  %v1828 = vrot.slane %v1048, 2
  %v1829 = vsel %vm1817, %v1824, %v1828
  %v1830 = vrot.slane %v1049, 2
  %v1831 = vsel %vm1817, %v1826, %v1830
  %v1832 = vrot.slane %v1050, 2
  %v1833 = vsel %vm1817, %v1828, %v1832
  %v1834 = vrot.slane %v1051, 2
  %v1835 = vsel %vm1817, %v1830, %v1834
  %v1836 = vrot.slane %v1052, 2
  %v1837 = vsel %vm1817, %v1832, %v1836
  %v1838 = vrot.slane %v1053, 2
  %v1839 = vsel %vm1817, %v1834, %v1838
  %v1840 = vrot.slane %v1054, 2
  %v1841 = vsel %vm1817, %v1836, %v1840
  %v1842 = vrot.slane %v1055, 2
  %v1843 = vsel %vm1817, %v1838, %v1842
  %v1844 = vrot.slane %v1056, 2
  %v1845 = vsel %vm1817, %v1840, %v1844
  %v1846 = vrot.slane %v1057, 2
  %v1847 = vsel %vm1817, %v1842, %v1846
  %v1848 = vrot.slane %v1058, 2
  %v1849 = vsel %vm1817, %v1844, %v1848
  %v1850 = vrot.slane %v1059, 2
  %v1851 = vsel %vm1817, %v1846, %v1850
  %v1852 = vrot.slane %v1060, 2
  %v1853 = vsel %vm1817, %v1848, %v1852
  %v1854 = vrot.slane %v1061, 2
  %v1855 = vsel %vm1817, %v1850, %v1854
  %v1856 = vrot.slane %v1062, 2
  %v1857 = vsel %vm1817, %v1852, %v1856
  %v1858 = vrot.slane %v1063, 2
  %v1859 = vsel %vm1817, %v1854, %v1858
  %v1860 = vrot.slane %v1064, 2
  %v1861 = vsel %vm1817, %v1856, %v1860
  %v1862 = vrot.slane %v1065, 2
  %v1863 = vsel %vm1817, %v1858, %v1862
  %v1864 = vrot.slane %v1066, 2
  %v1865 = vsel %vm1817, %v1860, %v1864
  %v1866 = vrot.slane %v1067, 2
  %v1867 = vsel %vm1817, %v1862, %v1866
  %v1868 = vrot.slane %v1068, 2
  %v1869 = vsel %vm1817, %v1864, %v1868
  %v1870 = vrot.slane %v1069, 2
  %v1871 = vsel %vm1817, %v1866, %v1870
  %v1872 = vrot.slane %v1070, 2
  %v1873 = vsel %vm1817, %v1868, %v1872
  %v1874 = vrot.slane %v1071, 2
  %v1875 = vsel %vm1817, %v1870, %v1874
  %v1876 = vrot.slane %v1072, 2
  %v1877 = vsel %vm1817, %v1872, %v1876
  %v1878 = vrot.slane %v1073, 2
  %v1879 = vsel %vm1817, %v1874, %v1878
  %v1880 = vrot.slane %v1074, 2
  %v1881 = vsel %vm1817, %v1876, %v1880
  %v1882 = vrot.slane %v1075, 2
  %v1883 = vsel %vm1817, %v1878, %v1882
  %v1884 = vrot.slane %v1076, 2
  %v1885 = vsel %vm1817, %v1880, %v1884
  %v1886 = vrot.slane %v1077, 2
  %v1887 = vsel %vm1817, %v1882, %v1886
  %v1888 = vrot.slane %v1078, 2
  %v1889 = vsel %vm1817, %v1884, %v1888
  %v1890 = vrot.slane %v1079, 2
  %v1891 = vsel %vm1817, %v1886, %v1890
  %v1892 = vrot.slane %v1746, 2
  %v1893 = vsel %vm1817, %v1888, %v1892
  %v1894 = vrot.slane %v1747, 2
  %v1895 = vsel %vm1817, %v1890, %v1894
  %1936 = vmatprep.subr.mxu0 %v1780
  %1937 = vmatpush1.msra.mxu0 %v1779
  %1938 = vmatprep.subr.mxu0 %v1778
  %1939 = vmatpush1.msra.mxu0 %v1777
  %1940 = vmatprep.subr.mxu0 %v1776
  %1941 = vmatpush1.msra.mxu0 %v1775
  %1942 = vmatprep.subr.mxu0 %v1774
  %1943 = vmatpush1.msra.mxu0 %v1773
  %1944 = vmatprep.subr.mxu0 %v1772
  %1945 = vmatpush1.msra.mxu0 %v1771
  %1946 = vmatprep.subr.mxu0 %v1770
  %1947 = vmatpush1.msra.mxu0 %v1769
  %1948 = vmatprep.subr.mxu0 %v1768
  %1949 = vmatpush1.msra.mxu0 %v1767
  %1950 = vmatprep.subr.mxu0 %v1766
  %1951 = vmatpush1.msra.mxu0 %v1765
  %1952 = vmatprep.subr.mxu0 %v1764
  %1953 = vmatpush1.msra.mxu0 %v1763
  %1954 = vmatprep.subr.mxu0 %v1762
  %1955 = vmatpush1.msra.mxu0 %v1761
  %1956 = vmatprep.subr.mxu0 %v1760
  %1957 = vmatpush1.msra.mxu0 %v1759
  %1958 = vmatprep.subr.mxu0 %v1758
  %1959 = vmatpush1.msra.mxu0 %v1757
  %1960 = vmatprep.subr.mxu0 %v1756
  %1961 = vmatpush1.msra.mxu0 %v1755
  %1962 = vmatprep.subr.mxu0 %v1754
  %1963 = vmatpush1.msra.mxu0 %v1753
  %1964 = vmatprep.subr.mxu0 %v1752
  %1965 = vmatpush1.msra.mxu0 %v1751
  %1966 = vmatprep.subr.mxu0 %v1750
  %1967 = vmatpush1.msra.mxu0 %v1749
  %1968 = vmatprep.subr.mxu0 %v1812
  %1969 = vmatpush2.msra.mxu0 %v1811
  %1970 = vmatprep.subr.mxu0 %v1810
  %1971 = vmatpush2.msra.mxu0 %v1809
  %1972 = vmatprep.subr.mxu0 %v1808
  %1973 = vmatpush2.msra.mxu0 %v1807
  %1974 = vmatprep.subr.mxu0 %v1806
  %1975 = vmatpush2.msra.mxu0 %v1805
  %1976 = vmatprep.subr.mxu0 %v1804
  %1977 = vmatpush2.msra.mxu0 %v1803
  %1978 = vmatprep.subr.mxu0 %v1802
  %1979 = vmatpush2.msra.mxu0 %v1801
  %1980 = vmatprep.subr.mxu0 %v1800
  %1981 = vmatpush2.msra.mxu0 %v1799
  %1982 = vmatprep.subr.mxu0 %v1798
  %1983 = vmatpush2.msra.mxu0 %v1797
  %1984 = vmatprep.subr.mxu0 %v1796
  %1985 = vmatpush2.msra.mxu0 %v1795
  %1986 = vmatprep.subr.mxu0 %v1794
  %1987 = vmatpush2.msra.mxu0 %v1793
  %1988 = vmatprep.subr.mxu0 %v1792
  %1989 = vmatpush2.msra.mxu0 %v1791
  %1990 = vmatprep.subr.mxu0 %v1790
  %1991 = vmatpush2.msra.mxu0 %v1789
  %1992 = vmatprep.subr.mxu0 %v1788
  %1993 = vmatpush2.msra.mxu0 %v1787
  %1994 = vmatprep.subr.mxu0 %v1786
  %1995 = vmatpush2.msra.mxu0 %v1785
  %1996 = vmatprep.subr.mxu0 %v1784
  %1997 = vmatpush2.msra.mxu0 %v1783
  %1998 = vmatprep.subr.mxu0 %v1782
  %1999 = vmatpush2.msra.mxu0 %v1781
  %2000 = vmatprep.mubr.f32.mxu0 %v1823
  %2001 = vmatmul.mubr.f32.gmra.mxu0 %v1820
  %v2002 = vpop.f32.mrf.mxu0
  %v2003 = vadd.f32 0.0, %v2002
  %v2004 = vpop.f32.mrf.mxu0
  %v2005 = vadd.f32 0.0, %v2004
  %2006 = vmatprep.mubr.f32.mxu0 %v1827
  %2007 = vmatmul.mubr.f32.gmra.mxu0 %v1825
  %v2008 = vpop.f32.mrf.mxu0
  %v2009 = vadd.f32 0.0, %v2008
  %v2010 = vpop.f32.mrf.mxu0
  %v2011 = vadd.f32 0.0, %v2010
  %2012 = vmatprep.mubr.f32.mxu0 %v1831
  %2013 = vmatmul.mubr.f32.gmra.mxu0 %v1829
  %v2014 = vpop.f32.mrf.mxu0
  %v2015 = vadd.f32 0.0, %v2014
  %v2016 = vpop.f32.mrf.mxu0
  %v2017 = vadd.f32 0.0, %v2016
  %2018 = vmatprep.mubr.f32.mxu0 %v1835
  %2019 = vmatmul.mubr.f32.gmra.mxu0 %v1833
  %v2020 = vpop.f32.mrf.mxu0
  %v2021 = vadd.f32 0.0, %v2020
  %v2022 = vpop.f32.mrf.mxu0
  %v2023 = vadd.f32 0.0, %v2022
  %2024 = vmatprep.mubr.f32.mxu0 %v1839
  %2025 = vmatmul.mubr.f32.gmra.mxu0 %v1837
  %v2026 = vpop.f32.mrf.mxu0
  %v2027 = vadd.f32 0.0, %v2026
  %v2028 = vpop.f32.mrf.mxu0
  %v2029 = vadd.f32 0.0, %v2028
  %2030 = vmatprep.mubr.f32.mxu0 %v1843
  %2031 = vmatmul.mubr.f32.gmra.mxu0 %v1841
  %v2032 = vpop.f32.mrf.mxu0
  %v2033 = vadd.f32 0.0, %v2032
  %v2034 = vpop.f32.mrf.mxu0
  %v2035 = vadd.f32 0.0, %v2034
  %2036 = vmatprep.mubr.f32.mxu0 %v1847
  %2037 = vmatmul.mubr.f32.gmra.mxu0 %v1845
  %v2038 = vpop.f32.mrf.mxu0
  %v2039 = vadd.f32 0.0, %v2038
  %v2040 = vpop.f32.mrf.mxu0
  %v2041 = vadd.f32 0.0, %v2040
  %2042 = vmatprep.mubr.f32.mxu0 %v1851
  %2043 = vmatmul.mubr.f32.gmra.mxu0 %v1849
  %v2044 = vpop.f32.mrf.mxu0
  %v2045 = vadd.f32 0.0, %v2044
  %v2046 = vpop.f32.mrf.mxu0
  %v2047 = vadd.f32 0.0, %v2046
  %2048 = vmatprep.mubr.f32.mxu0 %v1855
  %2049 = vmatmul.mubr.f32.gmra.mxu0 %v1853
  %v2050 = vpop.f32.mrf.mxu0
  %v2051 = vadd.f32 0.0, %v2050
  %v2052 = vpop.f32.mrf.mxu0
  %v2053 = vadd.f32 0.0, %v2052
  %2054 = vmatprep.mubr.f32.mxu0 %v1859
  %2055 = vmatmul.mubr.f32.gmra.mxu0 %v1857
  %v2056 = vpop.f32.mrf.mxu0
  %v2057 = vadd.f32 0.0, %v2056
  %v2058 = vpop.f32.mrf.mxu0
  %v2059 = vadd.f32 0.0, %v2058
  %2060 = vmatprep.mubr.f32.mxu0 %v1863
  %2061 = vmatmul.mubr.f32.gmra.mxu0 %v1861
  %v2062 = vpop.f32.mrf.mxu0
  %v2063 = vadd.f32 0.0, %v2062
  %v2064 = vpop.f32.mrf.mxu0
  %v2065 = vadd.f32 0.0, %v2064
  %2066 = vmatprep.mubr.f32.mxu0 %v1867
  %2067 = vmatmul.mubr.f32.gmra.mxu0 %v1865
  %v2068 = vpop.f32.mrf.mxu0
  %v2069 = vadd.f32 0.0, %v2068
  %v2070 = vpop.f32.mrf.mxu0
  %v2071 = vadd.f32 0.0, %v2070
  %2072 = vmatprep.mubr.f32.mxu0 %v1871
  %2073 = vmatmul.mubr.f32.gmra.mxu0 %v1869
  %v2074 = vpop.f32.mrf.mxu0
  %v2075 = vadd.f32 0.0, %v2074
  %v2076 = vpop.f32.mrf.mxu0
  %v2077 = vadd.f32 0.0, %v2076
  %2078 = vmatprep.mubr.f32.mxu0 %v1875
  %2079 = vmatmul.mubr.f32.gmra.mxu0 %v1873
  %v2080 = vpop.f32.mrf.mxu0
  %v2081 = vadd.f32 0.0, %v2080
  %v2082 = vpop.f32.mrf.mxu0
  %v2083 = vadd.f32 0.0, %v2082
  %2084 = vmatprep.mubr.f32.mxu0 %v1879
  %2085 = vmatmul.mubr.f32.gmra.mxu0 %v1877
  %v2086 = vpop.f32.mrf.mxu0
  %v2087 = vadd.f32 0.0, %v2086
  %v2088 = vpop.f32.mrf.mxu0
  %v2089 = vadd.f32 0.0, %v2088
  %2090 = vmatprep.mubr.f32.mxu0 %v1883
  %2091 = vmatmul.mubr.f32.gmra.mxu0 %v1881
  %v2092 = vpop.f32.mrf.mxu0
  %v2093 = vadd.f32 0.0, %v2092
  %v2094 = vpop.f32.mrf.mxu0
  %v2095 = vadd.f32 0.0, %v2094
  %2096 = vmatprep.mubr.f32.mxu0 %v1887
  %2097 = vmatmul.mubr.f32.gmra.mxu0 %v1885
  %v2098 = vpop.f32.mrf.mxu0
  %v2099 = vadd.f32 0.0, %v2098
  %v2100 = vpop.f32.mrf.mxu0
  %v2101 = vadd.f32 0.0, %v2100
  %2102 = vmatprep.mubr.f32.mxu0 %v1891
  %2103 = vmatmul.mubr.f32.gmra.mxu0 %v1889
  %v2104 = vpop.f32.mrf.mxu0
  %v2105 = vadd.f32 0.0, %v2104
  %v2106 = vpop.f32.mrf.mxu0
  %v2107 = vadd.f32 0.0, %v2106
  %2108 = vmatprep.mubr.f32.mxu0 %v1895
  %2109 = vmatmul.mubr.f32.gmra.mxu0 %v1893
  %v2110 = vpop.f32.mrf.mxu0
  %v2111 = vadd.f32 0.0, %v2110
  %v2112 = vpop.f32.mrf.mxu0
  %v2113 = vadd.f32 0.0, %v2112
  %2114 = vmatprep.mubr.f32.mxu0 %v1894
  %2115 = vmatmul.mubr.f32.gmra.mxu0 %v1892
  %v2116 = vpop.f32.mrf.mxu0
  %v2117 = vadd.f32 0.0, %v2116
  %v2118 = vpop.f32.mrf.mxu0
  %v2119 = vadd.f32 0.0, %v2118
  %2120 = vdwg.mxu0
  %v2121 = vadd.f32 %v1626, %v2003
  %v2122 = vadd.f32 %v1628, %v2005
  %v2123 = vadd.f32 %v1632, %v2009
  %v2124 = vadd.f32 %v1634, %v2011
  %v2125 = vadd.f32 %v1638, %v2015
  %v2126 = vadd.f32 %v1640, %v2017
  %v2127 = vadd.f32 %v1644, %v2021
  %v2128 = vadd.f32 %v1646, %v2023
  %v2129 = vadd.f32 %v1650, %v2027
  %v2130 = vadd.f32 %v1652, %v2029
  %v2131 = vadd.f32 %v1656, %v2033
  %v2132 = vadd.f32 %v1658, %v2035
  %v2133 = vadd.f32 %v1662, %v2039
  %v2134 = vadd.f32 %v1664, %v2041
  %v2135 = vadd.f32 %v1668, %v2045
  %v2136 = vadd.f32 %v1670, %v2047
  %v2137 = vadd.f32 %v1674, %v2051
  %v2138 = vadd.f32 %v1676, %v2053
  %v2139 = vadd.f32 %v1680, %v2057
  %v2140 = vadd.f32 %v1682, %v2059
  %v2141 = vadd.f32 %v1686, %v2063
  %v2142 = vadd.f32 %v1688, %v2065
  %v2143 = vadd.f32 %v1692, %v2069
  %v2144 = vadd.f32 %v1694, %v2071
  %v2145 = vadd.f32 %v1698, %v2075
  %v2146 = vadd.f32 %v1700, %v2077
  %v2147 = vadd.f32 %v1704, %v2081
  %v2148 = vadd.f32 %v1706, %v2083
  %v2149 = vadd.f32 %v1710, %v2087
  %v2150 = vadd.f32 %v1712, %v2089
  %v2151 = vadd.f32 %v1716, %v2093
  %v2152 = vadd.f32 %v1718, %v2095
  %v2153 = vadd.f32 %v1722, %v2099
  %v2154 = vadd.f32 %v1724, %v2101
  %v2155 = vadd.f32 %v1728, %v2105
  %v2156 = vadd.f32 %v1730, %v2107
  %v2157 = vadd.f32 %v1734, %v2111
  %v2158 = vadd.f32 %v1736, %v2113
  %v2159 = vadd.f32 %v1740, %v2117
  %v2160 = vadd.f32 %v1742, %v2119
  %v2161 = vld [vmem:[%s4] sm:$0x3]
  %v2163 = vlaneseq
  %v2164 = vshrl.u32 %v2163, 7
  %v2165 = vsub.s32 0, %v2164
  %v2166 = vrot.slane %v2161, %v2165
  %v2167 = vlaneseq
  %v2168 = vshrl.u32 %v2167, 7
  %v2169 = vsub.s32 1, %v2168
  %v2170 = vrot.slane %v2161, %v2169
  %v2173 = vadd.f32 %v2121, %v2166
  %v2174 = vadd.f32 %v2122, %v2170
  %v2175 = vadd.f32 %v2123, %v2166
  %v2176 = vadd.f32 %v2124, %v2170
  %v2177 = vadd.f32 %v2125, %v2166
  %v2178 = vadd.f32 %v2126, %v2170
  %v2179 = vadd.f32 %v2127, %v2166
  %v2180 = vadd.f32 %v2128, %v2170
  %v2181 = vadd.f32 %v2129, %v2166
  %v2182 = vadd.f32 %v2130, %v2170
  %v2183 = vadd.f32 %v2131, %v2166
  %v2184 = vadd.f32 %v2132, %v2170
  %v2185 = vadd.f32 %v2133, %v2166
  %v2186 = vadd.f32 %v2134, %v2170
  %v2187 = vadd.f32 %v2135, %v2166
  %v2188 = vadd.f32 %v2136, %v2170
  %v2189 = vadd.f32 %v2137, %v2166
  %v2190 = vadd.f32 %v2138, %v2170
  %v2191 = vadd.f32 %v2139, %v2166
  %v2192 = vadd.f32 %v2140, %v2170
  %v2193 = vadd.f32 %v2141, %v2166
  %v2194 = vadd.f32 %v2142, %v2170
  %v2195 = vadd.f32 %v2143, %v2166
  %v2196 = vadd.f32 %v2144, %v2170
  %v2197 = vadd.f32 %v2145, %v2166
  %v2198 = vadd.f32 %v2146, %v2170
  %v2199 = vadd.f32 %v2147, %v2166
  %v2200 = vadd.f32 %v2148, %v2170
  %v2201 = vadd.f32 %v2149, %v2166
  %v2202 = vadd.f32 %v2150, %v2170
  %v2203 = vadd.f32 %v2151, %v2166
  %v2204 = vadd.f32 %v2152, %v2170
  %v2205 = vadd.f32 %v2153, %v2166
  %v2206 = vadd.f32 %v2154, %v2170
  %v2207 = vadd.f32 %v2155, %v2166
  %v2208 = vadd.f32 %v2156, %v2170
  %v2209 = vadd.f32 %v2157, %v2166
  %v2210 = vadd.f32 %v2158, %v2170
  %v2211 = vadd.f32 %v2159, %v2166
  %v2212 = vadd.f32 %v2160, %v2170
  %v2213 = vmax.f32 %v2173, 0.0
  %v2214 = vmax.f32 %v2174, 0.0
  %v2215 = vmax.f32 %v2175, 0.0
  %v2216 = vmax.f32 %v2176, 0.0
  %v2217 = vmax.f32 %v2177, 0.0
  %v2218 = vmax.f32 %v2178, 0.0
  %v2219 = vmax.f32 %v2179, 0.0
  %v2220 = vmax.f32 %v2180, 0.0
  %v2221 = vmax.f32 %v2181, 0.0
  %v2222 = vmax.f32 %v2182, 0.0
  %v2223 = vmax.f32 %v2183, 0.0
  %v2224 = vmax.f32 %v2184, 0.0
  %v2225 = vmax.f32 %v2185, 0.0
  %v2226 = vmax.f32 %v2186, 0.0
  %v2227 = vmax.f32 %v2187, 0.0
  %v2228 = vmax.f32 %v2188, 0.0
  %v2229 = vmax.f32 %v2189, 0.0
  %v2230 = vmax.f32 %v2190, 0.0
  %v2231 = vmax.f32 %v2191, 0.0
  %v2232 = vmax.f32 %v2192, 0.0
  %v2233 = vmax.f32 %v2193, 0.0
  %v2234 = vmax.f32 %v2194, 0.0
  %v2235 = vmax.f32 %v2195, 0.0
  %v2236 = vmax.f32 %v2196, 0.0
  %v2237 = vmax.f32 %v2197, 0.0
  %v2238 = vmax.f32 %v2198, 0.0
  %v2239 = vmax.f32 %v2199, 0.0
  %v2240 = vmax.f32 %v2200, 0.0
  %v2241 = vmax.f32 %v2201, 0.0
  %v2242 = vmax.f32 %v2202, 0.0
  %v2243 = vmax.f32 %v2203, 0.0
  %v2244 = vmax.f32 %v2204, 0.0
  %v2245 = vmax.f32 %v2205, 0.0
  %v2246 = vmax.f32 %v2206, 0.0
  %v2247 = vmax.f32 %v2207, 0.0
  %v2248 = vmax.f32 %v2208, 0.0
  %v2249 = vmax.f32 %v2209, 0.0
  %v2250 = vmax.f32 %v2210, 0.0
  %v2251 = vmax.f32 %v2211, 0.0
  %v2252 = vmax.f32 %v2212, 0.0
  %2253 = vst [vmem:[#allocation3] sm:$0xff] %v2213
  %vm2254 = vcmask 523264
  %2255 = vst.msk [vmem:[#allocation3 + $0x8] sm:$0xff] %vm2254, %v2214
  %2256 = vst [vmem:[#allocation3 + $0x10] sm:$0xff] %v2215
  %2257 = vst.msk [vmem:[#allocation3 + $0x18] sm:$0xff] %vm2254, %v2216
  %2258 = vst [vmem:[#allocation3 + $0x20] sm:$0xff] %v2217
  %2259 = vst.msk [vmem:[#allocation3 + $0x28] sm:$0xff] %vm2254, %v2218
  %2260 = vst [vmem:[#allocation3 + $0x30] sm:$0xff] %v2219
  %2261 = vst.msk [vmem:[#allocation3 + $0x38] sm:$0xff] %vm2254, %v2220
  %2262 = vst [vmem:[#allocation3 + $0x40] sm:$0xff] %v2221
  %2263 = vst.msk [vmem:[#allocation3 + $0x48] sm:$0xff] %vm2254, %v2222
  %2264 = vst [vmem:[#allocation3 + $0x50] sm:$0xff] %v2223
  %2265 = vst.msk [vmem:[#allocation3 + $0x58] sm:$0xff] %vm2254, %v2224
  %2266 = vst [vmem:[#allocation3 + $0x60] sm:$0xff] %v2225
  %2267 = vst.msk [vmem:[#allocation3 + $0x68] sm:$0xff] %vm2254, %v2226
  %2268 = vst [vmem:[#allocation3 + $0x70] sm:$0xff] %v2227
  %2269 = vst.msk [vmem:[#allocation3 + $0x78] sm:$0xff] %vm2254, %v2228
  %2270 = vst [vmem:[#allocation3 + $0x80] sm:$0xff] %v2229
  %2271 = vst.msk [vmem:[#allocation3 + $0x88] sm:$0xff] %vm2254, %v2230
  %2272 = vst [vmem:[#allocation3 + $0x90] sm:$0xff] %v2231
  %2273 = vst.msk [vmem:[#allocation3 + $0x98] sm:$0xff] %vm2254, %v2232
  %2274 = vst [vmem:[#allocation3 + $0xa0] sm:$0xff] %v2233
  %2275 = vst.msk [vmem:[#allocation3 + $0xa8] sm:$0xff] %vm2254, %v2234
  %2276 = vst [vmem:[#allocation3 + $0xb0] sm:$0xff] %v2235
  %2277 = vst.msk [vmem:[#allocation3 + $0xb8] sm:$0xff] %vm2254, %v2236
  %2278 = vst [vmem:[#allocation3 + $0xc0] sm:$0xff] %v2237
  %2279 = vst.msk [vmem:[#allocation3 + $0xc8] sm:$0xff] %vm2254, %v2238
  %2280 = vst [vmem:[#allocation3 + $0xd0] sm:$0xff] %v2239
  %2281 = vst.msk [vmem:[#allocation3 + $0xd8] sm:$0xff] %vm2254, %v2240
  %2282 = vst [vmem:[#allocation3 + $0xe0] sm:$0xff] %v2241
  %2283 = vst.msk [vmem:[#allocation3 + $0xe8] sm:$0xff] %vm2254, %v2242
  %2284 = vst [vmem:[#allocation3 + $0xf0] sm:$0xff] %v2243
  %2285 = vst.msk [vmem:[#allocation3 + $0xf8] sm:$0xff] %vm2254, %v2244
  %2286 = vst [vmem:[#allocation3 + $0x100] sm:$0xff] %v2245
  %2287 = vst.msk [vmem:[#allocation3 + $0x108] sm:$0xff] %vm2254, %v2246
  %2288 = vst [vmem:[#allocation3 + $0x110] sm:$0xff] %v2247
  %2289 = vst.msk [vmem:[#allocation3 + $0x118] sm:$0xff] %vm2254, %v2248
  %2290 = vst [vmem:[#allocation3 + $0x120] sm:$0xff] %v2249
  %2291 = vst.msk [vmem:[#allocation3 + $0x128] sm:$0xff] %vm2254, %v2250
  %2292 = vst [vmem:[#allocation3 + $0x130] sm:$0xf] %v2251
  %vm2293 = vcmask 519168
  %2294 = vst.msk [vmem:[#allocation3 + $0x138] sm:$0xf] %vm2293, %v2252
  %v2295 = vld [vmem:[#allocation3] sm:$0xff]
  %v2296 = vld [vmem:[#allocation3 + $0x8] sm:$0xff]
  %v2297 = vld [vmem:[#allocation3 + $0x10] sm:$0xff]
  %v2298 = vld [vmem:[#allocation3 + $0x18] sm:$0xff]
  %v2299 = vld [vmem:[#allocation3 + $0x20] sm:$0xff]
  %v2300 = vld [vmem:[#allocation3 + $0x28] sm:$0xff]
  %v2301 = vld [vmem:[#allocation3 + $0x30] sm:$0xff]
  %v2302 = vld [vmem:[#allocation3 + $0x38] sm:$0xff]
  %v2303 = vld [vmem:[#allocation3 + $0x40] sm:$0xff]
  %v2304 = vld [vmem:[#allocation3 + $0x48] sm:$0xff]
  %v2305 = vld [vmem:[#allocation3 + $0x50] sm:$0xff]
  %v2306 = vld [vmem:[#allocation3 + $0x58] sm:$0xff]
  %v2307 = vld [vmem:[#allocation3 + $0x60] sm:$0xff]
  %v2308 = vld [vmem:[#allocation3 + $0x68] sm:$0xff]
  %v2309 = vld [vmem:[#allocation3 + $0x70] sm:$0xff]
  %v2310 = vld [vmem:[#allocation3 + $0x78] sm:$0xff]
  %v2311 = vld [vmem:[#allocation3 + $0x80] sm:$0xff]
  %v2312 = vld [vmem:[#allocation3 + $0x88] sm:$0xff]
  %v2313 = vld [vmem:[#allocation3 + $0x90] sm:$0xff]
  %v2314 = vld [vmem:[#allocation3 + $0x98] sm:$0xff]
  %v2315 = vld [vmem:[#allocation3 + $0xa0] sm:$0xff]
  %v2316 = vld [vmem:[#allocation3 + $0xa8] sm:$0xff]
  %v2317 = vld [vmem:[#allocation3 + $0xb0] sm:$0xff]
  %v2318 = vld [vmem:[#allocation3 + $0xb8] sm:$0xff]
  %v2319 = vld [vmem:[#allocation3 + $0xc0] sm:$0xff]
  %v2320 = vld [vmem:[#allocation3 + $0xc8] sm:$0xff]
  %v2321 = vld [vmem:[#allocation3 + $0xd0] sm:$0xff]
  %v2322 = vld [vmem:[#allocation3 + $0xd8] sm:$0xff]
  %v2323 = vld [vmem:[#allocation3 + $0xe0] sm:$0xff]
  %v2324 = vld [vmem:[#allocation3 + $0xe8] sm:$0xff]
  %v2325 = vld [vmem:[#allocation3 + $0xf0] sm:$0xff]
  %v2326 = vld [vmem:[#allocation3 + $0xf8] sm:$0xff]
  %v2327 = vld [vmem:[#allocation3 + $0x100] sm:$0xff]
  %v2328 = vld [vmem:[#allocation3 + $0x108] sm:$0xff]
  %v2329 = vld [vmem:[#allocation3 + $0x110] sm:$0xff]
  %v2330 = vld [vmem:[#allocation3 + $0x118] sm:$0xff]
  %v2331 = vld [vmem:[#allocation3 + $0x120] sm:$0xff]
  %v2332 = vld [vmem:[#allocation3 + $0x128] sm:$0xff]
  %v2333 = vld [vmem:[#allocation3 + $0x130] sm:$0x3]
  %v2334 = vld [vmem:[#allocation3 + $0x138] sm:$0x3]
  %v2335 = vld [vmem:[%s5] sm:$0xff]
  %v2336 = vld [vmem:[%s5 + $0x8] sm:$0xff]
  %v2337 = vld [vmem:[%s5 + $0x10] sm:$0xff]
  %v2338 = vld [vmem:[%s5 + $0x18] sm:$0xff]
  %v2339 = vld [vmem:[%s5 + $0x20] sm:$0xff]
  %v2340 = vld [vmem:[%s5 + $0x28] sm:$0xff]
  %v2341 = vld [vmem:[%s5 + $0x30] sm:$0xff]
  %v2342 = vld [vmem:[%s5 + $0x38] sm:$0xff]
  %v2343 = vld [vmem:[%s5 + $0x40] sm:$0xff]
  %v2344 = vld [vmem:[%s5 + $0x48] sm:$0xff]
  %v2345 = vld [vmem:[%s5 + $0x50] sm:$0xff]
  %v2346 = vld [vmem:[%s5 + $0x58] sm:$0xff]
  %v2347 = vld [vmem:[%s5 + $0x60] sm:$0xff]
  %v2348 = vld [vmem:[%s5 + $0x68] sm:$0xff]
  %v2349 = vld [vmem:[%s5 + $0x70] sm:$0xff]
  %v2350 = vld [vmem:[%s5 + $0x78] sm:$0xff]
  %v2351 = vld [vmem:[%s5 + $0x80] sm:$0xff]
  %v2352 = vld [vmem:[%s5 + $0x88] sm:$0xff]
  %v2353 = vld [vmem:[%s5 + $0x90] sm:$0xff]
  %v2354 = vld [vmem:[%s5 + $0x98] sm:$0xff]
  %v2355 = vld [vmem:[%s5 + $0xa0] sm:$0xff]
  %v2356 = vld [vmem:[%s5 + $0xa8] sm:$0xff]
  %v2357 = vld [vmem:[%s5 + $0xb0] sm:$0xff]
  %v2358 = vld [vmem:[%s5 + $0xb8] sm:$0xff]
  %v2359 = vld [vmem:[#allocation3] sm:$0xfe]
  %v2360 = vld [vmem:[#allocation3 + $0x8] sm:$0xfe]
  %v2361 = vld [vmem:[#allocation3 + $0x130] sm:$0x7]
  %v2362 = vld [vmem:[#allocation3 + $0x138] sm:$0x7]
  %s2363 = scalar_lea.vmem %s5, 192
  %v2364 = vld [vmem:[%s2363] sm:$0xff]
  %v2365 = vld [vmem:[%s2363 + $0x8] sm:$0xff]
  %v2366 = vld [vmem:[%s2363 + $0x10] sm:$0xff]
  %v2367 = vld [vmem:[%s2363 + $0x18] sm:$0xff]
  %v2368 = vld [vmem:[%s2363 + $0x20] sm:$0xff]
  %v2369 = vld [vmem:[%s2363 + $0x28] sm:$0xff]
  %v2370 = vld [vmem:[%s2363 + $0x30] sm:$0xff]
  %v2371 = vld [vmem:[%s2363 + $0x38] sm:$0xff]
  %v2372 = vld [vmem:[%s2363 + $0x40] sm:$0xff]
  %v2373 = vld [vmem:[%s2363 + $0x48] sm:$0xff]
  %v2374 = vld [vmem:[%s2363 + $0x50] sm:$0xff]
  %v2375 = vld [vmem:[%s2363 + $0x58] sm:$0xff]
  %v2376 = vld [vmem:[%s2363 + $0x60] sm:$0xff]
  %v2377 = vld [vmem:[%s2363 + $0x68] sm:$0xff]
  %v2378 = vld [vmem:[%s2363 + $0x70] sm:$0xff]
  %v2379 = vld [vmem:[%s2363 + $0x78] sm:$0xff]
  %v2380 = vld [vmem:[%s2363 + $0x80] sm:$0xff]
  %v2381 = vld [vmem:[%s2363 + $0x88] sm:$0xff]
  %v2382 = vld [vmem:[%s2363 + $0x90] sm:$0xff]
  %v2383 = vld [vmem:[%s2363 + $0x98] sm:$0xff]
  %v2384 = vld [vmem:[%s2363 + $0xa0] sm:$0xff]
  %v2385 = vld [vmem:[%s2363 + $0xa8] sm:$0xff]
  %v2386 = vld [vmem:[%s2363 + $0xb0] sm:$0xff]
  %v2387 = vld [vmem:[%s2363 + $0xb8] sm:$0xff]
  %v2428 = vrot.slane %v2359, 1
  %v2429 = vrot.slane %v2297, 1
  %v2430 = vsel %vm1255, %v2428, %v2429
  %v2431 = vrot.slane %v2360, 1
  %v2432 = vrot.slane %v2298, 1
  %v2433 = vsel %vm1255, %v2431, %v2432
  %v2434 = vrot.slane %v2299, 1
  %v2435 = vsel %vm1255, %v2429, %v2434
  %v2436 = vrot.slane %v2300, 1
  %v2437 = vsel %vm1255, %v2432, %v2436
  %v2438 = vrot.slane %v2301, 1
  %v2439 = vsel %vm1255, %v2434, %v2438
  %v2440 = vrot.slane %v2302, 1
  %v2441 = vsel %vm1255, %v2436, %v2440
  %v2442 = vrot.slane %v2303, 1
  %v2443 = vsel %vm1255, %v2438, %v2442
  %v2444 = vrot.slane %v2304, 1
  %v2445 = vsel %vm1255, %v2440, %v2444
  %v2446 = vrot.slane %v2305, 1
  %v2447 = vsel %vm1255, %v2442, %v2446
  %v2448 = vrot.slane %v2306, 1
  %v2449 = vsel %vm1255, %v2444, %v2448
  %v2450 = vrot.slane %v2307, 1
  %v2451 = vsel %vm1255, %v2446, %v2450
  %v2452 = vrot.slane %v2308, 1
  %v2453 = vsel %vm1255, %v2448, %v2452
  %v2454 = vrot.slane %v2309, 1
  %v2455 = vsel %vm1255, %v2450, %v2454
  %v2456 = vrot.slane %v2310, 1
  %v2457 = vsel %vm1255, %v2452, %v2456
  %v2458 = vrot.slane %v2311, 1
  %v2459 = vsel %vm1255, %v2454, %v2458
  %v2460 = vrot.slane %v2312, 1
  %v2461 = vsel %vm1255, %v2456, %v2460
  %v2462 = vrot.slane %v2313, 1
  %v2463 = vsel %vm1255, %v2458, %v2462
  %v2464 = vrot.slane %v2314, 1
  %v2465 = vsel %vm1255, %v2460, %v2464
  %v2466 = vrot.slane %v2315, 1
  %v2467 = vsel %vm1255, %v2462, %v2466
  %v2468 = vrot.slane %v2316, 1
  %v2469 = vsel %vm1255, %v2464, %v2468
  %v2470 = vrot.slane %v2317, 1
  %v2471 = vsel %vm1255, %v2466, %v2470
  %v2472 = vrot.slane %v2318, 1
  %v2473 = vsel %vm1255, %v2468, %v2472
  %v2474 = vrot.slane %v2319, 1
  %v2475 = vsel %vm1255, %v2470, %v2474
  %v2476 = vrot.slane %v2320, 1
  %v2477 = vsel %vm1255, %v2472, %v2476
  %v2478 = vrot.slane %v2321, 1
  %v2479 = vsel %vm1255, %v2474, %v2478
  %v2480 = vrot.slane %v2322, 1
  %v2481 = vsel %vm1255, %v2476, %v2480
  %v2482 = vrot.slane %v2323, 1
  %v2483 = vsel %vm1255, %v2478, %v2482
  %v2484 = vrot.slane %v2324, 1
  %v2485 = vsel %vm1255, %v2480, %v2484
  %v2486 = vrot.slane %v2325, 1
  %v2487 = vsel %vm1255, %v2482, %v2486
  %v2488 = vrot.slane %v2326, 1
  %v2489 = vsel %vm1255, %v2484, %v2488
  %v2490 = vrot.slane %v2327, 1
  %v2491 = vsel %vm1255, %v2486, %v2490
  %v2492 = vrot.slane %v2328, 1
  %v2493 = vsel %vm1255, %v2488, %v2492
  %v2494 = vrot.slane %v2329, 1
  %v2495 = vsel %vm1255, %v2490, %v2494
  %v2496 = vrot.slane %v2330, 1
  %v2497 = vsel %vm1255, %v2492, %v2496
  %v2498 = vrot.slane %v2331, 1
  %v2499 = vsel %vm1255, %v2494, %v2498
  %v2500 = vrot.slane %v2332, 1
  %v2501 = vsel %vm1255, %v2496, %v2500
  %v2502 = vrot.slane %v2361, 1
  %v2503 = vsel %vm1255, %v2498, %v2502
  %v2504 = vrot.slane %v2362, 1
  %v2505 = vsel %vm1255, %v2500, %v2504
  %v2526 = vsel %vm2254, %v2433, 0
  %v2528 = vsel %vm2254, %v2437, 0
  %v2530 = vsel %vm2254, %v2441, 0
  %v2532 = vsel %vm2254, %v2445, 0
  %v2534 = vsel %vm2254, %v2449, 0
  %v2536 = vsel %vm2254, %v2453, 0
  %v2538 = vsel %vm2254, %v2457, 0
  %v2540 = vsel %vm2254, %v2461, 0
  %v2542 = vsel %vm2254, %v2465, 0
  %v2544 = vsel %vm2254, %v2469, 0
  %v2546 = vsel %vm2254, %v2473, 0
  %v2548 = vsel %vm2254, %v2477, 0
  %v2550 = vsel %vm2254, %v2481, 0
  %v2552 = vsel %vm2254, %v2485, 0
  %v2554 = vsel %vm2254, %v2489, 0
  %v2556 = vsel %vm2254, %v2493, 0
  %v2558 = vsel %vm2254, %v2497, 0
  %v2560 = vsel %vm2254, %v2501, 0
  %v2562 = vsel %vm2254, %v2505, 0
  %v2564 = vsel %vm2254, %v2504, 0
  %2566 = vmatprep.subr.mxu0 0.0
  %2567 = vmatpush1.msra.mxu0 %v2379
  %2568 = vmatprep.subr.mxu0 0.0
  %2569 = vmatpush1.msra.mxu0 %v2378
  %2570 = vmatprep.subr.mxu0 0.0
  %2571 = vmatpush1.msra.mxu0 %v2377
  %2572 = vmatprep.subr.mxu0 0.0
  %2573 = vmatpush1.msra.mxu0 %v2376
  %2574 = vmatprep.subr.mxu0 0.0
  %2575 = vmatpush1.msra.mxu0 %v2375
  %2576 = vmatprep.subr.mxu0 0.0
  %2577 = vmatpush1.msra.mxu0 %v2374
  %2578 = vmatprep.subr.mxu0 0.0
  %2579 = vmatpush1.msra.mxu0 %v2373
  %2580 = vmatprep.subr.mxu0 0.0
  %2581 = vmatpush1.msra.mxu0 %v2372
  %2582 = vmatprep.subr.mxu0 0.0
  %2583 = vmatpush1.msra.mxu0 %v2371
  %2584 = vmatprep.subr.mxu0 0.0
  %2585 = vmatpush1.msra.mxu0 %v2370
  %2586 = vmatprep.subr.mxu0 0.0
  %2587 = vmatpush1.msra.mxu0 %v2369
  %2588 = vmatprep.subr.mxu0 0.0
  %2589 = vmatpush1.msra.mxu0 %v2368
  %2590 = vmatprep.subr.mxu0 0.0
  %2591 = vmatpush1.msra.mxu0 %v2367
  %2592 = vmatprep.subr.mxu0 0.0
  %2593 = vmatpush1.msra.mxu0 %v2366
  %2594 = vmatprep.subr.mxu0 0.0
  %2595 = vmatpush1.msra.mxu0 %v2365
  %2596 = vmatprep.subr.mxu0 0.0
  %2597 = vmatpush1.msra.mxu0 %v2364
  %2598 = vmatprep.subr.mxu0 0.0
  %2599 = vmatpush2.msra.mxu0 0.0
  %2600 = vmatprep.subr.mxu0 0.0
  %2601 = vmatpush2.msra.mxu0 0.0
  %2602 = vmatprep.subr.mxu0 0.0
  %2603 = vmatpush2.msra.mxu0 0.0
  %2604 = vmatprep.subr.mxu0 0.0
  %2605 = vmatpush2.msra.mxu0 0.0
  %2606 = vmatprep.subr.mxu0 0.0
  %2607 = vmatpush2.msra.mxu0 0.0
  %2608 = vmatprep.subr.mxu0 0.0
  %2609 = vmatpush2.msra.mxu0 0.0
  %2610 = vmatprep.subr.mxu0 0.0
  %2611 = vmatpush2.msra.mxu0 0.0
  %2612 = vmatprep.subr.mxu0 0.0
  %2613 = vmatpush2.msra.mxu0 0.0
  %2614 = vmatprep.subr.mxu0 0.0
  %2615 = vmatpush2.msra.mxu0 %v2387
  %2616 = vmatprep.subr.mxu0 0.0
  %2617 = vmatpush2.msra.mxu0 %v2386
  %2618 = vmatprep.subr.mxu0 0.0
  %2619 = vmatpush2.msra.mxu0 %v2385
  %2620 = vmatprep.subr.mxu0 0.0
  %2621 = vmatpush2.msra.mxu0 %v2384
  %2622 = vmatprep.subr.mxu0 0.0
  %2623 = vmatpush2.msra.mxu0 %v2383
  %2624 = vmatprep.subr.mxu0 0.0
  %2625 = vmatpush2.msra.mxu0 %v2382
  %2626 = vmatprep.subr.mxu0 0.0
  %2627 = vmatpush2.msra.mxu0 %v2381
  %2628 = vmatprep.subr.mxu0 0.0
  %2629 = vmatpush2.msra.mxu0 %v2380
  %2630 = vmatprep.mubr.f32.mxu0 %v2526
  %2631 = vmatmul.mubr.f32.gmra.mxu0 %v2430
  %v2632 = vpop.f32.mrf.mxu0
  %v2633 = vadd.f32 0.0, %v2632
  %v2634 = vpop.f32.mrf.mxu0
  %2635 = vmatprep.mubr.f32.mxu0 %v2528
  %2636 = vmatmul.mubr.f32.gmra.mxu0 %v2435
  %v2637 = vpop.f32.mrf.mxu0
  %v2638 = vadd.f32 0.0, %v2637
  %v2639 = vpop.f32.mrf.mxu0
  %2640 = vmatprep.mubr.f32.mxu0 %v2530
  %2641 = vmatmul.mubr.f32.gmra.mxu0 %v2439
  %v2642 = vpop.f32.mrf.mxu0
  %v2643 = vadd.f32 0.0, %v2642
  %v2644 = vpop.f32.mrf.mxu0
  %2645 = vmatprep.mubr.f32.mxu0 %v2532
  %2646 = vmatmul.mubr.f32.gmra.mxu0 %v2443
  %v2647 = vpop.f32.mrf.mxu0
  %v2648 = vadd.f32 0.0, %v2647
  %v2649 = vpop.f32.mrf.mxu0
  %2650 = vmatprep.mubr.f32.mxu0 %v2534
  %2651 = vmatmul.mubr.f32.gmra.mxu0 %v2447
  %v2652 = vpop.f32.mrf.mxu0
  %v2653 = vadd.f32 0.0, %v2652
  %v2654 = vpop.f32.mrf.mxu0
  %2655 = vmatprep.mubr.f32.mxu0 %v2536
  %2656 = vmatmul.mubr.f32.gmra.mxu0 %v2451
  %v2657 = vpop.f32.mrf.mxu0
  %v2658 = vadd.f32 0.0, %v2657
  %v2659 = vpop.f32.mrf.mxu0
  %2660 = vmatprep.mubr.f32.mxu0 %v2538
  %2661 = vmatmul.mubr.f32.gmra.mxu0 %v2455
  %v2662 = vpop.f32.mrf.mxu0
  %v2663 = vadd.f32 0.0, %v2662
  %v2664 = vpop.f32.mrf.mxu0
  %2665 = vmatprep.mubr.f32.mxu0 %v2540
  %2666 = vmatmul.mubr.f32.gmra.mxu0 %v2459
  %v2667 = vpop.f32.mrf.mxu0
  %v2668 = vadd.f32 0.0, %v2667
  %v2669 = vpop.f32.mrf.mxu0
  %2670 = vmatprep.mubr.f32.mxu0 %v2542
  %2671 = vmatmul.mubr.f32.gmra.mxu0 %v2463
  %v2672 = vpop.f32.mrf.mxu0
  %v2673 = vadd.f32 0.0, %v2672
  %v2674 = vpop.f32.mrf.mxu0
  %2675 = vmatprep.mubr.f32.mxu0 %v2544
  %2676 = vmatmul.mubr.f32.gmra.mxu0 %v2467
  %v2677 = vpop.f32.mrf.mxu0
  %v2678 = vadd.f32 0.0, %v2677
  %v2679 = vpop.f32.mrf.mxu0
  %2680 = vmatprep.mubr.f32.mxu0 %v2546
  %2681 = vmatmul.mubr.f32.gmra.mxu0 %v2471
  %v2682 = vpop.f32.mrf.mxu0
  %v2683 = vadd.f32 0.0, %v2682
  %v2684 = vpop.f32.mrf.mxu0
  %2685 = vmatprep.mubr.f32.mxu0 %v2548
  %2686 = vmatmul.mubr.f32.gmra.mxu0 %v2475
  %v2687 = vpop.f32.mrf.mxu0
  %v2688 = vadd.f32 0.0, %v2687
  %v2689 = vpop.f32.mrf.mxu0
  %2690 = vmatprep.mubr.f32.mxu0 %v2550
  %2691 = vmatmul.mubr.f32.gmra.mxu0 %v2479
  %v2692 = vpop.f32.mrf.mxu0
  %v2693 = vadd.f32 0.0, %v2692
  %v2694 = vpop.f32.mrf.mxu0
  %2695 = vmatprep.mubr.f32.mxu0 %v2552
  %2696 = vmatmul.mubr.f32.gmra.mxu0 %v2483
  %v2697 = vpop.f32.mrf.mxu0
  %v2698 = vadd.f32 0.0, %v2697
  %v2699 = vpop.f32.mrf.mxu0
  %2700 = vmatprep.mubr.f32.mxu0 %v2554
  %2701 = vmatmul.mubr.f32.gmra.mxu0 %v2487
  %v2702 = vpop.f32.mrf.mxu0
  %v2703 = vadd.f32 0.0, %v2702
  %v2704 = vpop.f32.mrf.mxu0
  %2705 = vmatprep.mubr.f32.mxu0 %v2556
  %2706 = vmatmul.mubr.f32.gmra.mxu0 %v2491
  %v2707 = vpop.f32.mrf.mxu0
  %v2708 = vadd.f32 0.0, %v2707
  %v2709 = vpop.f32.mrf.mxu0
  %2710 = vmatprep.mubr.f32.mxu0 %v2558
  %2711 = vmatmul.mubr.f32.gmra.mxu0 %v2495
  %v2712 = vpop.f32.mrf.mxu0
  %v2713 = vadd.f32 0.0, %v2712
  %v2714 = vpop.f32.mrf.mxu0
  %2715 = vmatprep.mubr.f32.mxu0 %v2560
  %2716 = vmatmul.mubr.f32.gmra.mxu0 %v2499
  %v2717 = vpop.f32.mrf.mxu0
  %v2718 = vadd.f32 0.0, %v2717
  %v2719 = vpop.f32.mrf.mxu0
  %2720 = vmatprep.mubr.f32.mxu0 %v2562
  %2721 = vmatmul.mubr.f32.gmra.mxu0 %v2503
  %v2722 = vpop.f32.mrf.mxu0
  %v2723 = vadd.f32 0.0, %v2722
  %v2724 = vpop.f32.mrf.mxu0
  %2725 = vmatprep.mubr.f32.mxu0 %v2564
  %2726 = vmatmul.mubr.f32.gmra.mxu0 %v2502
  %v2727 = vpop.f32.mrf.mxu0
  %v2728 = vadd.f32 0.0, %v2727
  %v2729 = vpop.f32.mrf.mxu0
  %2730 = vdwg.mxu0
  %v2732 = vsel %vm2254, %v2296, 0
  %v2734 = vsel %vm2254, %v2298, 0
  %v2736 = vsel %vm2254, %v2300, 0
  %v2738 = vsel %vm2254, %v2302, 0
  %v2740 = vsel %vm2254, %v2304, 0
  %v2742 = vsel %vm2254, %v2306, 0
  %v2744 = vsel %vm2254, %v2308, 0
  %v2746 = vsel %vm2254, %v2310, 0
  %v2748 = vsel %vm2254, %v2312, 0
  %v2750 = vsel %vm2254, %v2314, 0
  %v2752 = vsel %vm2254, %v2316, 0
  %v2754 = vsel %vm2254, %v2318, 0
  %v2756 = vsel %vm2254, %v2320, 0
  %v2758 = vsel %vm2254, %v2322, 0
  %v2760 = vsel %vm2254, %v2324, 0
  %v2762 = vsel %vm2254, %v2326, 0
  %v2764 = vsel %vm2254, %v2328, 0
  %v2766 = vsel %vm2254, %v2330, 0
  %v2768 = vsel %vm2254, %v2332, 0
  %v2771 = vsel %vm2254, %v2334, 0
  %2773 = vmatprep.subr.mxu0 0.0
  %2774 = vmatpush1.msra.mxu0 %v2350
  %2775 = vmatprep.subr.mxu0 0.0
  %2776 = vmatpush1.msra.mxu0 %v2349
  %2777 = vmatprep.subr.mxu0 0.0
  %2778 = vmatpush1.msra.mxu0 %v2348
  %2779 = vmatprep.subr.mxu0 0.0
  %2780 = vmatpush1.msra.mxu0 %v2347
  %2781 = vmatprep.subr.mxu0 0.0
  %2782 = vmatpush1.msra.mxu0 %v2346
  %2783 = vmatprep.subr.mxu0 0.0
  %2784 = vmatpush1.msra.mxu0 %v2345
  %2785 = vmatprep.subr.mxu0 0.0
  %2786 = vmatpush1.msra.mxu0 %v2344
  %2787 = vmatprep.subr.mxu0 0.0
  %2788 = vmatpush1.msra.mxu0 %v2343
  %2789 = vmatprep.subr.mxu0 0.0
  %2790 = vmatpush1.msra.mxu0 %v2342
  %2791 = vmatprep.subr.mxu0 0.0
  %2792 = vmatpush1.msra.mxu0 %v2341
  %2793 = vmatprep.subr.mxu0 0.0
  %2794 = vmatpush1.msra.mxu0 %v2340
  %2795 = vmatprep.subr.mxu0 0.0
  %2796 = vmatpush1.msra.mxu0 %v2339
  %2797 = vmatprep.subr.mxu0 0.0
  %2798 = vmatpush1.msra.mxu0 %v2338
  %2799 = vmatprep.subr.mxu0 0.0
  %2800 = vmatpush1.msra.mxu0 %v2337
  %2801 = vmatprep.subr.mxu0 0.0
  %2802 = vmatpush1.msra.mxu0 %v2336
  %2803 = vmatprep.subr.mxu0 0.0
  %2804 = vmatpush1.msra.mxu0 %v2335
  %2805 = vmatprep.subr.mxu0 0.0
  %2806 = vmatpush2.msra.mxu0 0.0
  %2807 = vmatprep.subr.mxu0 0.0
  %2808 = vmatpush2.msra.mxu0 0.0
  %2809 = vmatprep.subr.mxu0 0.0
  %2810 = vmatpush2.msra.mxu0 0.0
  %2811 = vmatprep.subr.mxu0 0.0
  %2812 = vmatpush2.msra.mxu0 0.0
  %2813 = vmatprep.subr.mxu0 0.0
  %2814 = vmatpush2.msra.mxu0 0.0
  %2815 = vmatprep.subr.mxu0 0.0
  %2816 = vmatpush2.msra.mxu0 0.0
  %2817 = vmatprep.subr.mxu0 0.0
  %2818 = vmatpush2.msra.mxu0 0.0
  %2819 = vmatprep.subr.mxu0 0.0
  %2820 = vmatpush2.msra.mxu0 0.0
  %2821 = vmatprep.subr.mxu0 0.0
  %2822 = vmatpush2.msra.mxu0 %v2358
  %2823 = vmatprep.subr.mxu0 0.0
  %2824 = vmatpush2.msra.mxu0 %v2357
  %2825 = vmatprep.subr.mxu0 0.0
  %2826 = vmatpush2.msra.mxu0 %v2356
  %2827 = vmatprep.subr.mxu0 0.0
  %2828 = vmatpush2.msra.mxu0 %v2355
  %2829 = vmatprep.subr.mxu0 0.0
  %2830 = vmatpush2.msra.mxu0 %v2354
  %2831 = vmatprep.subr.mxu0 0.0
  %2832 = vmatpush2.msra.mxu0 %v2353
  %2833 = vmatprep.subr.mxu0 0.0
  %2834 = vmatpush2.msra.mxu0 %v2352
  %2835 = vmatprep.subr.mxu0 0.0
  %2836 = vmatpush2.msra.mxu0 %v2351
  %2837 = vmatprep.mubr.f32.mxu0 %v2732
  %2838 = vmatmul.mubr.f32.gmra.mxu0 %v2295
  %v2839 = vpop.f32.mrf.mxu0
  %v2840 = vadd.f32 %v2633, %v2839
  %v2841 = vpop.f32.mrf.mxu0
  %2842 = vmatprep.mubr.f32.mxu0 %v2734
  %2843 = vmatmul.mubr.f32.gmra.mxu0 %v2297
  %v2844 = vpop.f32.mrf.mxu0
  %v2845 = vadd.f32 %v2638, %v2844
  %v2846 = vpop.f32.mrf.mxu0
  %2847 = vmatprep.mubr.f32.mxu0 %v2736
  %2848 = vmatmul.mubr.f32.gmra.mxu0 %v2299
  %v2849 = vpop.f32.mrf.mxu0
  %v2850 = vadd.f32 %v2643, %v2849
  %v2851 = vpop.f32.mrf.mxu0
  %2852 = vmatprep.mubr.f32.mxu0 %v2738
  %2853 = vmatmul.mubr.f32.gmra.mxu0 %v2301
  %v2854 = vpop.f32.mrf.mxu0
  %v2855 = vadd.f32 %v2648, %v2854
  %v2856 = vpop.f32.mrf.mxu0
  %2857 = vmatprep.mubr.f32.mxu0 %v2740
  %2858 = vmatmul.mubr.f32.gmra.mxu0 %v2303
  %v2859 = vpop.f32.mrf.mxu0
  %v2860 = vadd.f32 %v2653, %v2859
  %v2861 = vpop.f32.mrf.mxu0
  %2862 = vmatprep.mubr.f32.mxu0 %v2742
  %2863 = vmatmul.mubr.f32.gmra.mxu0 %v2305
  %v2864 = vpop.f32.mrf.mxu0
  %v2865 = vadd.f32 %v2658, %v2864
  %v2866 = vpop.f32.mrf.mxu0
  %2867 = vmatprep.mubr.f32.mxu0 %v2744
  %2868 = vmatmul.mubr.f32.gmra.mxu0 %v2307
  %v2869 = vpop.f32.mrf.mxu0
  %v2870 = vadd.f32 %v2663, %v2869
  %v2871 = vpop.f32.mrf.mxu0
  %2872 = vmatprep.mubr.f32.mxu0 %v2746
  %2873 = vmatmul.mubr.f32.gmra.mxu0 %v2309
  %v2874 = vpop.f32.mrf.mxu0
  %v2875 = vadd.f32 %v2668, %v2874
  %v2876 = vpop.f32.mrf.mxu0
  %2877 = vmatprep.mubr.f32.mxu0 %v2748
  %2878 = vmatmul.mubr.f32.gmra.mxu0 %v2311
  %v2879 = vpop.f32.mrf.mxu0
  %v2880 = vadd.f32 %v2673, %v2879
  %v2881 = vpop.f32.mrf.mxu0
  %2882 = vmatprep.mubr.f32.mxu0 %v2750
  %2883 = vmatmul.mubr.f32.gmra.mxu0 %v2313
  %v2884 = vpop.f32.mrf.mxu0
  %v2885 = vadd.f32 %v2678, %v2884
  %v2886 = vpop.f32.mrf.mxu0
  %2887 = vmatprep.mubr.f32.mxu0 %v2752
  %2888 = vmatmul.mubr.f32.gmra.mxu0 %v2315
  %v2889 = vpop.f32.mrf.mxu0
  %v2890 = vadd.f32 %v2683, %v2889
  %v2891 = vpop.f32.mrf.mxu0
  %2892 = vmatprep.mubr.f32.mxu0 %v2754
  %2893 = vmatmul.mubr.f32.gmra.mxu0 %v2317
  %v2894 = vpop.f32.mrf.mxu0
  %v2895 = vadd.f32 %v2688, %v2894
  %v2896 = vpop.f32.mrf.mxu0
  %2897 = vmatprep.mubr.f32.mxu0 %v2756
  %2898 = vmatmul.mubr.f32.gmra.mxu0 %v2319
  %v2899 = vpop.f32.mrf.mxu0
  %v2900 = vadd.f32 %v2693, %v2899
  %v2901 = vpop.f32.mrf.mxu0
  %2902 = vmatprep.mubr.f32.mxu0 %v2758
  %2903 = vmatmul.mubr.f32.gmra.mxu0 %v2321
  %v2904 = vpop.f32.mrf.mxu0
  %v2905 = vadd.f32 %v2698, %v2904
  %v2906 = vpop.f32.mrf.mxu0
  %2907 = vmatprep.mubr.f32.mxu0 %v2760
  %2908 = vmatmul.mubr.f32.gmra.mxu0 %v2323
  %v2909 = vpop.f32.mrf.mxu0
  %v2910 = vadd.f32 %v2703, %v2909
  %v2911 = vpop.f32.mrf.mxu0
  %2912 = vmatprep.mubr.f32.mxu0 %v2762
  %2913 = vmatmul.mubr.f32.gmra.mxu0 %v2325
  %v2914 = vpop.f32.mrf.mxu0
  %v2915 = vadd.f32 %v2708, %v2914
  %v2916 = vpop.f32.mrf.mxu0
  %2917 = vmatprep.mubr.f32.mxu0 %v2764
  %2918 = vmatmul.mubr.f32.gmra.mxu0 %v2327
  %v2919 = vpop.f32.mrf.mxu0
  %v2920 = vadd.f32 %v2713, %v2919
  %v2921 = vpop.f32.mrf.mxu0
  %2922 = vmatprep.mubr.f32.mxu0 %v2766
  %2923 = vmatmul.mubr.f32.gmra.mxu0 %v2329
  %v2924 = vpop.f32.mrf.mxu0
  %v2925 = vadd.f32 %v2718, %v2924
  %v2926 = vpop.f32.mrf.mxu0
  %2927 = vmatprep.mubr.f32.mxu0 %v2768
  %2928 = vmatmul.mubr.f32.gmra.mxu0 %v2331
  %v2929 = vpop.f32.mrf.mxu0
  %v2930 = vadd.f32 %v2723, %v2929
  %v2931 = vpop.f32.mrf.mxu0
  %2932 = vmatprep.mubr.f32.mxu0 %v2771
  %2933 = vmatmul.mubr.f32.gmra.mxu0 %v2333
  %v2934 = vpop.f32.mrf.mxu0
  %v2935 = vadd.f32 %v2728, %v2934
  %v2936 = vpop.f32.mrf.mxu0
  %2937 = vdwg.mxu0
  %v2938 = vld [vmem:[#allocation3] sm:$0xfc]
  %v2939 = vld [vmem:[#allocation3 + $0x8] sm:$0xfc]
  %v2940 = vld [vmem:[#allocation3 + $0x130] sm:$0xf]
  %v2941 = vld [vmem:[#allocation3 + $0x138] sm:$0xf]
  %s2942 = scalar_lea.vmem %s5, 384
  %v2943 = vld [vmem:[%s2942] sm:$0xff]
  %v2944 = vld [vmem:[%s2942 + $0x8] sm:$0xff]
  %v2945 = vld [vmem:[%s2942 + $0x10] sm:$0xff]
  %v2946 = vld [vmem:[%s2942 + $0x18] sm:$0xff]
  %v2947 = vld [vmem:[%s2942 + $0x20] sm:$0xff]
  %v2948 = vld [vmem:[%s2942 + $0x28] sm:$0xff]
  %v2949 = vld [vmem:[%s2942 + $0x30] sm:$0xff]
  %v2950 = vld [vmem:[%s2942 + $0x38] sm:$0xff]
  %v2951 = vld [vmem:[%s2942 + $0x40] sm:$0xff]
  %v2952 = vld [vmem:[%s2942 + $0x48] sm:$0xff]
  %v2953 = vld [vmem:[%s2942 + $0x50] sm:$0xff]
  %v2954 = vld [vmem:[%s2942 + $0x58] sm:$0xff]
  %v2955 = vld [vmem:[%s2942 + $0x60] sm:$0xff]
  %v2956 = vld [vmem:[%s2942 + $0x68] sm:$0xff]
  %v2957 = vld [vmem:[%s2942 + $0x70] sm:$0xff]
  %v2958 = vld [vmem:[%s2942 + $0x78] sm:$0xff]
  %v2959 = vld [vmem:[%s2942 + $0x80] sm:$0xff]
  %v2960 = vld [vmem:[%s2942 + $0x88] sm:$0xff]
  %v2961 = vld [vmem:[%s2942 + $0x90] sm:$0xff]
  %v2962 = vld [vmem:[%s2942 + $0x98] sm:$0xff]
  %v2963 = vld [vmem:[%s2942 + $0xa0] sm:$0xff]
  %v2964 = vld [vmem:[%s2942 + $0xa8] sm:$0xff]
  %v2965 = vld [vmem:[%s2942 + $0xb0] sm:$0xff]
  %v2966 = vld [vmem:[%s2942 + $0xb8] sm:$0xff]
  %v2971 = vrot.slane %v2938, 2
  %v2972 = vrot.slane %v2297, 2
  %v2973 = vsel %vm1817, %v2971, %v2972
  %v2974 = vrot.slane %v2939, 2
  %v2975 = vrot.slane %v2298, 2
  %v2976 = vsel %vm1817, %v2974, %v2975
  %v2977 = vrot.slane %v2299, 2
  %v2978 = vsel %vm1817, %v2972, %v2977
  %v2979 = vrot.slane %v2300, 2
  %v2980 = vsel %vm1817, %v2975, %v2979
  %v2981 = vrot.slane %v2301, 2
  %v2982 = vsel %vm1817, %v2977, %v2981
  %v2983 = vrot.slane %v2302, 2
  %v2984 = vsel %vm1817, %v2979, %v2983
  %v2985 = vrot.slane %v2303, 2
  %v2986 = vsel %vm1817, %v2981, %v2985
  %v2987 = vrot.slane %v2304, 2
  %v2988 = vsel %vm1817, %v2983, %v2987
  %v2989 = vrot.slane %v2305, 2
  %v2990 = vsel %vm1817, %v2985, %v2989
  %v2991 = vrot.slane %v2306, 2
  %v2992 = vsel %vm1817, %v2987, %v2991
  %v2993 = vrot.slane %v2307, 2
  %v2994 = vsel %vm1817, %v2989, %v2993
  %v2995 = vrot.slane %v2308, 2
  %v2996 = vsel %vm1817, %v2991, %v2995
  %v2997 = vrot.slane %v2309, 2
  %v2998 = vsel %vm1817, %v2993, %v2997
  %v2999 = vrot.slane %v2310, 2
  %v3000 = vsel %vm1817, %v2995, %v2999
  %v3001 = vrot.slane %v2311, 2
  %v3002 = vsel %vm1817, %v2997, %v3001
  %v3003 = vrot.slane %v2312, 2
  %v3004 = vsel %vm1817, %v2999, %v3003
  %v3005 = vrot.slane %v2313, 2
  %v3006 = vsel %vm1817, %v3001, %v3005
  %v3007 = vrot.slane %v2314, 2
  %v3008 = vsel %vm1817, %v3003, %v3007
  %v3009 = vrot.slane %v2315, 2
  %v3010 = vsel %vm1817, %v3005, %v3009
  %v3011 = vrot.slane %v2316, 2
  %v3012 = vsel %vm1817, %v3007, %v3011
  %v3013 = vrot.slane %v2317, 2
  %v3014 = vsel %vm1817, %v3009, %v3013
  %v3015 = vrot.slane %v2318, 2
  %v3016 = vsel %vm1817, %v3011, %v3015
  %v3017 = vrot.slane %v2319, 2
  %v3018 = vsel %vm1817, %v3013, %v3017
  %v3019 = vrot.slane %v2320, 2
  %v3020 = vsel %vm1817, %v3015, %v3019
  %v3021 = vrot.slane %v2321, 2
  %v3022 = vsel %vm1817, %v3017, %v3021
  %v3023 = vrot.slane %v2322, 2
  %v3024 = vsel %vm1817, %v3019, %v3023
  %v3025 = vrot.slane %v2323, 2
  %v3026 = vsel %vm1817, %v3021, %v3025
  %v3027 = vrot.slane %v2324, 2
  %v3028 = vsel %vm1817, %v3023, %v3027
  %v3029 = vrot.slane %v2325, 2
  %v3030 = vsel %vm1817, %v3025, %v3029
  %v3031 = vrot.slane %v2326, 2
  %v3032 = vsel %vm1817, %v3027, %v3031
  %v3033 = vrot.slane %v2327, 2
  %v3034 = vsel %vm1817, %v3029, %v3033
  %v3035 = vrot.slane %v2328, 2
  %v3036 = vsel %vm1817, %v3031, %v3035
  %v3037 = vrot.slane %v2329, 2
  %v3038 = vsel %vm1817, %v3033, %v3037
  %v3039 = vrot.slane %v2330, 2
  %v3040 = vsel %vm1817, %v3035, %v3039
  %v3041 = vrot.slane %v2331, 2
  %v3042 = vsel %vm1817, %v3037, %v3041
  %v3043 = vrot.slane %v2332, 2
  %v3044 = vsel %vm1817, %v3039, %v3043
  %v3045 = vrot.slane %v2940, 2
  %v3046 = vsel %vm1817, %v3041, %v3045
  %v3047 = vrot.slane %v2941, 2
  %v3048 = vsel %vm1817, %v3043, %v3047
  %v3069 = vsel %vm2254, %v2976, 0
  %v3071 = vsel %vm2254, %v2980, 0
  %v3073 = vsel %vm2254, %v2984, 0
  %v3075 = vsel %vm2254, %v2988, 0
  %v3077 = vsel %vm2254, %v2992, 0
  %v3079 = vsel %vm2254, %v2996, 0
  %v3081 = vsel %vm2254, %v3000, 0
  %v3083 = vsel %vm2254, %v3004, 0
  %v3085 = vsel %vm2254, %v3008, 0
  %v3087 = vsel %vm2254, %v3012, 0
  %v3089 = vsel %vm2254, %v3016, 0
  %v3091 = vsel %vm2254, %v3020, 0
  %v3093 = vsel %vm2254, %v3024, 0
  %v3095 = vsel %vm2254, %v3028, 0
  %v3097 = vsel %vm2254, %v3032, 0
  %v3099 = vsel %vm2254, %v3036, 0
  %v3101 = vsel %vm2254, %v3040, 0
  %v3103 = vsel %vm2254, %v3044, 0
  %v3105 = vsel %vm2254, %v3048, 0
  %v3107 = vsel %vm2254, %v3047, 0
  %3109 = vmatprep.subr.mxu0 0.0
  %3110 = vmatpush1.msra.mxu0 %v2958
  %3111 = vmatprep.subr.mxu0 0.0
  %3112 = vmatpush1.msra.mxu0 %v2957
  %3113 = vmatprep.subr.mxu0 0.0
  %3114 = vmatpush1.msra.mxu0 %v2956
  %3115 = vmatprep.subr.mxu0 0.0
  %3116 = vmatpush1.msra.mxu0 %v2955
  %3117 = vmatprep.subr.mxu0 0.0
  %3118 = vmatpush1.msra.mxu0 %v2954
  %3119 = vmatprep.subr.mxu0 0.0
  %3120 = vmatpush1.msra.mxu0 %v2953
  %3121 = vmatprep.subr.mxu0 0.0
  %3122 = vmatpush1.msra.mxu0 %v2952
  %3123 = vmatprep.subr.mxu0 0.0
  %3124 = vmatpush1.msra.mxu0 %v2951
  %3125 = vmatprep.subr.mxu0 0.0
  %3126 = vmatpush1.msra.mxu0 %v2950
  %3127 = vmatprep.subr.mxu0 0.0
  %3128 = vmatpush1.msra.mxu0 %v2949
  %3129 = vmatprep.subr.mxu0 0.0
  %3130 = vmatpush1.msra.mxu0 %v2948
  %3131 = vmatprep.subr.mxu0 0.0
  %3132 = vmatpush1.msra.mxu0 %v2947
  %3133 = vmatprep.subr.mxu0 0.0
  %3134 = vmatpush1.msra.mxu0 %v2946
  %3135 = vmatprep.subr.mxu0 0.0
  %3136 = vmatpush1.msra.mxu0 %v2945
  %3137 = vmatprep.subr.mxu0 0.0
  %3138 = vmatpush1.msra.mxu0 %v2944
  %3139 = vmatprep.subr.mxu0 0.0
  %3140 = vmatpush1.msra.mxu0 %v2943
  %3141 = vmatprep.subr.mxu0 0.0
  %3142 = vmatpush2.msra.mxu0 0.0
  %3143 = vmatprep.subr.mxu0 0.0
  %3144 = vmatpush2.msra.mxu0 0.0
  %3145 = vmatprep.subr.mxu0 0.0
  %3146 = vmatpush2.msra.mxu0 0.0
  %3147 = vmatprep.subr.mxu0 0.0
  %3148 = vmatpush2.msra.mxu0 0.0
  %3149 = vmatprep.subr.mxu0 0.0
  %3150 = vmatpush2.msra.mxu0 0.0
  %3151 = vmatprep.subr.mxu0 0.0
  %3152 = vmatpush2.msra.mxu0 0.0
  %3153 = vmatprep.subr.mxu0 0.0
  %3154 = vmatpush2.msra.mxu0 0.0
  %3155 = vmatprep.subr.mxu0 0.0
  %3156 = vmatpush2.msra.mxu0 0.0
  %3157 = vmatprep.subr.mxu0 0.0
  %3158 = vmatpush2.msra.mxu0 %v2966
  %3159 = vmatprep.subr.mxu0 0.0
  %3160 = vmatpush2.msra.mxu0 %v2965
  %3161 = vmatprep.subr.mxu0 0.0
  %3162 = vmatpush2.msra.mxu0 %v2964
  %3163 = vmatprep.subr.mxu0 0.0
  %3164 = vmatpush2.msra.mxu0 %v2963
  %3165 = vmatprep.subr.mxu0 0.0
  %3166 = vmatpush2.msra.mxu0 %v2962
  %3167 = vmatprep.subr.mxu0 0.0
  %3168 = vmatpush2.msra.mxu0 %v2961
  %3169 = vmatprep.subr.mxu0 0.0
  %3170 = vmatpush2.msra.mxu0 %v2960
  %3171 = vmatprep.subr.mxu0 0.0
  %3172 = vmatpush2.msra.mxu0 %v2959
  %3173 = vmatprep.mubr.f32.mxu0 %v3069
  %3174 = vmatmul.mubr.f32.gmra.mxu0 %v2973
  %v3175 = vpop.f32.mrf.mxu0
  %v3176 = vadd.f32 0.0, %v3175
  %v3177 = vpop.f32.mrf.mxu0
  %3178 = vmatprep.mubr.f32.mxu0 %v3071
  %3179 = vmatmul.mubr.f32.gmra.mxu0 %v2978
  %v3180 = vpop.f32.mrf.mxu0
  %v3181 = vadd.f32 0.0, %v3180
  %v3182 = vpop.f32.mrf.mxu0
  %3183 = vmatprep.mubr.f32.mxu0 %v3073
  %3184 = vmatmul.mubr.f32.gmra.mxu0 %v2982
  %v3185 = vpop.f32.mrf.mxu0
  %v3186 = vadd.f32 0.0, %v3185
  %v3187 = vpop.f32.mrf.mxu0
  %3188 = vmatprep.mubr.f32.mxu0 %v3075
  %3189 = vmatmul.mubr.f32.gmra.mxu0 %v2986
  %v3190 = vpop.f32.mrf.mxu0
  %v3191 = vadd.f32 0.0, %v3190
  %v3192 = vpop.f32.mrf.mxu0
  %3193 = vmatprep.mubr.f32.mxu0 %v3077
  %3194 = vmatmul.mubr.f32.gmra.mxu0 %v2990
  %v3195 = vpop.f32.mrf.mxu0
  %v3196 = vadd.f32 0.0, %v3195
  %v3197 = vpop.f32.mrf.mxu0
  %3198 = vmatprep.mubr.f32.mxu0 %v3079
  %3199 = vmatmul.mubr.f32.gmra.mxu0 %v2994
  %v3200 = vpop.f32.mrf.mxu0
  %v3201 = vadd.f32 0.0, %v3200
  %v3202 = vpop.f32.mrf.mxu0
  %3203 = vmatprep.mubr.f32.mxu0 %v3081
  %3204 = vmatmul.mubr.f32.gmra.mxu0 %v2998
  %v3205 = vpop.f32.mrf.mxu0
  %v3206 = vadd.f32 0.0, %v3205
  %v3207 = vpop.f32.mrf.mxu0
  %3208 = vmatprep.mubr.f32.mxu0 %v3083
  %3209 = vmatmul.mubr.f32.gmra.mxu0 %v3002
  %v3210 = vpop.f32.mrf.mxu0
  %v3211 = vadd.f32 0.0, %v3210
  %v3212 = vpop.f32.mrf.mxu0
  %3213 = vmatprep.mubr.f32.mxu0 %v3085
  %3214 = vmatmul.mubr.f32.gmra.mxu0 %v3006
  %v3215 = vpop.f32.mrf.mxu0
  %v3216 = vadd.f32 0.0, %v3215
  %v3217 = vpop.f32.mrf.mxu0
  %3218 = vmatprep.mubr.f32.mxu0 %v3087
  %3219 = vmatmul.mubr.f32.gmra.mxu0 %v3010
  %v3220 = vpop.f32.mrf.mxu0
  %v3221 = vadd.f32 0.0, %v3220
  %v3222 = vpop.f32.mrf.mxu0
  %3223 = vmatprep.mubr.f32.mxu0 %v3089
  %3224 = vmatmul.mubr.f32.gmra.mxu0 %v3014
  %v3225 = vpop.f32.mrf.mxu0
  %v3226 = vadd.f32 0.0, %v3225
  %v3227 = vpop.f32.mrf.mxu0
  %3228 = vmatprep.mubr.f32.mxu0 %v3091
  %3229 = vmatmul.mubr.f32.gmra.mxu0 %v3018
  %v3230 = vpop.f32.mrf.mxu0
  %v3231 = vadd.f32 0.0, %v3230
  %v3232 = vpop.f32.mrf.mxu0
  %3233 = vmatprep.mubr.f32.mxu0 %v3093
  %3234 = vmatmul.mubr.f32.gmra.mxu0 %v3022
  %v3235 = vpop.f32.mrf.mxu0
  %v3236 = vadd.f32 0.0, %v3235
  %v3237 = vpop.f32.mrf.mxu0
  %3238 = vmatprep.mubr.f32.mxu0 %v3095
  %3239 = vmatmul.mubr.f32.gmra.mxu0 %v3026
  %v3240 = vpop.f32.mrf.mxu0
  %v3241 = vadd.f32 0.0, %v3240
  %v3242 = vpop.f32.mrf.mxu0
  %3243 = vmatprep.mubr.f32.mxu0 %v3097
  %3244 = vmatmul.mubr.f32.gmra.mxu0 %v3030
  %v3245 = vpop.f32.mrf.mxu0
  %v3246 = vadd.f32 0.0, %v3245
  %v3247 = vpop.f32.mrf.mxu0
  %3248 = vmatprep.mubr.f32.mxu0 %v3099
  %3249 = vmatmul.mubr.f32.gmra.mxu0 %v3034
  %v3250 = vpop.f32.mrf.mxu0
  %v3251 = vadd.f32 0.0, %v3250
  %v3252 = vpop.f32.mrf.mxu0
  %3253 = vmatprep.mubr.f32.mxu0 %v3101
  %3254 = vmatmul.mubr.f32.gmra.mxu0 %v3038
  %v3255 = vpop.f32.mrf.mxu0
  %v3256 = vadd.f32 0.0, %v3255
  %v3257 = vpop.f32.mrf.mxu0
  %3258 = vmatprep.mubr.f32.mxu0 %v3103
  %3259 = vmatmul.mubr.f32.gmra.mxu0 %v3042
  %v3260 = vpop.f32.mrf.mxu0
  %v3261 = vadd.f32 0.0, %v3260
  %v3262 = vpop.f32.mrf.mxu0
  %3263 = vmatprep.mubr.f32.mxu0 %v3105
  %3264 = vmatmul.mubr.f32.gmra.mxu0 %v3046
  %v3265 = vpop.f32.mrf.mxu0
  %v3266 = vadd.f32 0.0, %v3265
  %v3267 = vpop.f32.mrf.mxu0
  %3268 = vmatprep.mubr.f32.mxu0 %v3107
  %3269 = vmatmul.mubr.f32.gmra.mxu0 %v3045
  %v3270 = vpop.f32.mrf.mxu0
  %v3271 = vadd.f32 0.0, %v3270
  %v3272 = vpop.f32.mrf.mxu0
  %3273 = vdwg.mxu0
  %v3274 = vadd.f32 %v2840, %v3176
  %v3275 = vadd.f32 %v2845, %v3181
  %v3276 = vadd.f32 %v2850, %v3186
  %v3277 = vadd.f32 %v2855, %v3191
  %v3278 = vadd.f32 %v2860, %v3196
  %v3279 = vadd.f32 %v2865, %v3201
  %v3280 = vadd.f32 %v2870, %v3206
  %v3281 = vadd.f32 %v2875, %v3211
  %v3282 = vadd.f32 %v2880, %v3216
  %v3283 = vadd.f32 %v2885, %v3221
  %v3284 = vadd.f32 %v2890, %v3226
  %v3285 = vadd.f32 %v2895, %v3231
  %v3286 = vadd.f32 %v2900, %v3236
  %v3287 = vadd.f32 %v2905, %v3241
  %v3288 = vadd.f32 %v2910, %v3246
  %v3289 = vadd.f32 %v2915, %v3251
  %v3290 = vadd.f32 %v2920, %v3256
  %v3291 = vadd.f32 %v2925, %v3261
  %v3292 = vadd.f32 %v2930, %v3266
  %v3293 = vadd.f32 %v2935, %v3271
  %v3294 = vld [vmem:[%s6] sm:$0x1]
  %v3296 = vlaneseq
  %v3297 = vshrl.u32 %v3296, 7
  %v3298 = vsub.s32 0, %v3297
  %v3299 = vrot.slane %v3294, %v3298
  %v3301 = vadd.f32 %v3274, %v3299
  %v3302 = vadd.f32 %v3275, %v3299
  %v3303 = vadd.f32 %v3276, %v3299
  %v3304 = vadd.f32 %v3277, %v3299
  %v3305 = vadd.f32 %v3278, %v3299
  %v3306 = vadd.f32 %v3279, %v3299
  %v3307 = vadd.f32 %v3280, %v3299
  %v3308 = vadd.f32 %v3281, %v3299
  %v3309 = vadd.f32 %v3282, %v3299
  %v3310 = vadd.f32 %v3283, %v3299
  %v3311 = vadd.f32 %v3284, %v3299
  %v3312 = vadd.f32 %v3285, %v3299
  %v3313 = vadd.f32 %v3286, %v3299
  %v3314 = vadd.f32 %v3287, %v3299
  %v3315 = vadd.f32 %v3288, %v3299
  %v3316 = vadd.f32 %v3289, %v3299
  %v3317 = vadd.f32 %v3290, %v3299
  %v3318 = vadd.f32 %v3291, %v3299
  %v3319 = vadd.f32 %v3292, %v3299
  %v3320 = vadd.f32 %v3293, %v3299
  %v3321 = vmax.f32 %v3301, 0.0
  %v3322 = vmax.f32 %v3302, 0.0
  %v3323 = vmax.f32 %v3303, 0.0
  %v3324 = vmax.f32 %v3304, 0.0
  %v3325 = vmax.f32 %v3305, 0.0
  %v3326 = vmax.f32 %v3306, 0.0
  %v3327 = vmax.f32 %v3307, 0.0
  %v3328 = vmax.f32 %v3308, 0.0
  %v3329 = vmax.f32 %v3309, 0.0
  %v3330 = vmax.f32 %v3310, 0.0
  %v3331 = vmax.f32 %v3311, 0.0
  %v3332 = vmax.f32 %v3312, 0.0
  %v3333 = vmax.f32 %v3313, 0.0
  %v3334 = vmax.f32 %v3314, 0.0
  %v3335 = vmax.f32 %v3315, 0.0
  %v3336 = vmax.f32 %v3316, 0.0
  %v3337 = vmax.f32 %v3317, 0.0
  %v3338 = vmax.f32 %v3318, 0.0
  %v3339 = vmax.f32 %v3319, 0.0
  %v3340 = vmax.f32 %v3320, 0.0
  %v3341 = vlaneseq
  %v3342 = vshrl.u32 %v3341, 7
  %v3343 = vlaneseq
  %v3344 = vand.u32 %v3343, 127
  %v3345 = vadd.s32 %v3344, 128
  %v3346 = vmul.u32 %v3342, 20
  %vm3347 = vcmp.eq.s32.totalorder %v3344, %v3346
  %vm3348 = vcmp.eq.s32.totalorder %v3345, %v3346
  %v3349 = vsel %vm3347, 1, 0
  %v3350 = vsel %vm3348, 1, 0
  %v3351 = vcvt.s32.f32 %v3349
  %v3352 = vcvt.s32.f32 %v3350
  %vm3353 = vcmask 211968
  %v3355 = vsel %vm3353, %v3352, 0
  %v3358 = vsel %vm151, %v3340, 0
  %3360 = vmatprep.subr.mxu0 0.0
  %3361 = vmatpush1.msra.mxu0 %v3336
  %3362 = vmatprep.subr.mxu0 0.0
  %3363 = vmatpush1.msra.mxu0 %v3335
  %3364 = vmatprep.subr.mxu0 0.0
  %3365 = vmatpush1.msra.mxu0 %v3334
  %3366 = vmatprep.subr.mxu0 0.0
  %3367 = vmatpush1.msra.mxu0 %v3333
  %3368 = vmatprep.subr.mxu0 0.0
  %3369 = vmatpush1.msra.mxu0 %v3332
  %3370 = vmatprep.subr.mxu0 0.0
  %3371 = vmatpush1.msra.mxu0 %v3331
  %3372 = vmatprep.subr.mxu0 0.0
  %3373 = vmatpush1.msra.mxu0 %v3330
  %3374 = vmatprep.subr.mxu0 0.0
  %3375 = vmatpush1.msra.mxu0 %v3329
  %3376 = vmatprep.subr.mxu0 0.0
  %3377 = vmatpush1.msra.mxu0 %v3328
  %3378 = vmatprep.subr.mxu0 0.0
  %3379 = vmatpush1.msra.mxu0 %v3327
  %3380 = vmatprep.subr.mxu0 0.0
  %3381 = vmatpush1.msra.mxu0 %v3326
  %3382 = vmatprep.subr.mxu0 0.0
  %3383 = vmatpush1.msra.mxu0 %v3325
  %3384 = vmatprep.subr.mxu0 0.0
  %3385 = vmatpush1.msra.mxu0 %v3324
  %3386 = vmatprep.subr.mxu0 0.0
  %3387 = vmatpush1.msra.mxu0 %v3323
  %3388 = vmatprep.subr.mxu0 0.0
  %3389 = vmatpush1.msra.mxu0 %v3322
  %3390 = vmatprep.subr.mxu0 0.0
  %3391 = vmatpush1.msra.mxu0 %v3321
  %3392 = vmatprep.subr.mxu0 0.0
  %3393 = vmatpush2.msra.mxu0 0.0
  %3394 = vmatprep.subr.mxu0 0.0
  %3395 = vmatpush2.msra.mxu0 0.0
  %3396 = vmatprep.subr.mxu0 0.0
  %3397 = vmatpush2.msra.mxu0 0.0
  %3398 = vmatprep.subr.mxu0 0.0
  %3399 = vmatpush2.msra.mxu0 0.0
  %3400 = vmatprep.subr.mxu0 0.0
  %3401 = vmatpush2.msra.mxu0 0.0
  %3402 = vmatprep.subr.mxu0 0.0
  %3403 = vmatpush2.msra.mxu0 0.0
  %3404 = vmatprep.subr.mxu0 0.0
  %3405 = vmatpush2.msra.mxu0 0.0
  %3406 = vmatprep.subr.mxu0 0.0
  %3407 = vmatpush2.msra.mxu0 0.0
  %3408 = vmatprep.subr.mxu0 0.0
  %3409 = vmatpush2.msra.mxu0 0.0
  %3410 = vmatprep.subr.mxu0 0.0
  %3411 = vmatpush2.msra.mxu0 0.0
  %3412 = vmatprep.subr.mxu0 0.0
  %3413 = vmatpush2.msra.mxu0 0.0
  %3414 = vmatprep.subr.mxu0 0.0
  %3415 = vmatpush2.msra.mxu0 0.0
  %3416 = vmatprep.subr.mxu0 0.0
  %3417 = vmatpush2.msra.mxu0 %v3358
  %3418 = vmatprep.subr.mxu0 0.0
  %3419 = vmatpush2.msra.mxu0 %v3339
  %3420 = vmatprep.subr.mxu0 0.0
  %3421 = vmatpush2.msra.mxu0 %v3338
  %3422 = vmatprep.subr.mxu0 0.0
  %3423 = vmatpush2.msra.mxu0 %v3337
  %3424 = vmatprep.mubr.f32.mxu0 %v3355
  %3425 = vmatmul.mubr.f32.gmra.mxu0 %v3351
  %v3426 = vpop.f32.mrf.mxu0
  %v3427 = vadd.f32 0.0, %v3426
  %v3428 = vpop.f32.mrf.mxu0
  %3429 = vdwg.mxu0
  %v3430 = vadd.s32 %v3346, 1
  %vm3431 = vcmp.eq.s32.totalorder %v3344, %v3430
  %vm3432 = vcmp.eq.s32.totalorder %v3345, %v3430
  %v3433 = vsel %vm3431, 1, 0
  %v3434 = vsel %vm3432, 1, 0
  %v3435 = vcvt.s32.f32 %v3433
  %v3436 = vcvt.s32.f32 %v3434
  %v3438 = vsel %vm3353, %v3436, 0
  %3440 = vmatprep.subr.mxu0 0.0
  %3441 = vmatpush1.msra.mxu0 %v3336
  %3442 = vmatprep.subr.mxu0 0.0
  %3443 = vmatpush1.msra.mxu0 %v3335
  %3444 = vmatprep.subr.mxu0 0.0
  %3445 = vmatpush1.msra.mxu0 %v3334
  %3446 = vmatprep.subr.mxu0 0.0
  %3447 = vmatpush1.msra.mxu0 %v3333
  %3448 = vmatprep.subr.mxu0 0.0
  %3449 = vmatpush1.msra.mxu0 %v3332
  %3450 = vmatprep.subr.mxu0 0.0
  %3451 = vmatpush1.msra.mxu0 %v3331
  %3452 = vmatprep.subr.mxu0 0.0
  %3453 = vmatpush1.msra.mxu0 %v3330
  %3454 = vmatprep.subr.mxu0 0.0
  %3455 = vmatpush1.msra.mxu0 %v3329
  %3456 = vmatprep.subr.mxu0 0.0
  %3457 = vmatpush1.msra.mxu0 %v3328
  %3458 = vmatprep.subr.mxu0 0.0
  %3459 = vmatpush1.msra.mxu0 %v3327
  %3460 = vmatprep.subr.mxu0 0.0
  %3461 = vmatpush1.msra.mxu0 %v3326
  %3462 = vmatprep.subr.mxu0 0.0
  %3463 = vmatpush1.msra.mxu0 %v3325
  %3464 = vmatprep.subr.mxu0 0.0
  %3465 = vmatpush1.msra.mxu0 %v3324
  %3466 = vmatprep.subr.mxu0 0.0
  %3467 = vmatpush1.msra.mxu0 %v3323
  %3468 = vmatprep.subr.mxu0 0.0
  %3469 = vmatpush1.msra.mxu0 %v3322
  %3470 = vmatprep.subr.mxu0 0.0
  %3471 = vmatpush1.msra.mxu0 %v3321
  %3472 = vmatprep.subr.mxu0 0.0
  %3473 = vmatpush2.msra.mxu0 0.0
  %3474 = vmatprep.subr.mxu0 0.0
  %3475 = vmatpush2.msra.mxu0 0.0
  %3476 = vmatprep.subr.mxu0 0.0
  %3477 = vmatpush2.msra.mxu0 0.0
  %3478 = vmatprep.subr.mxu0 0.0
  %3479 = vmatpush2.msra.mxu0 0.0
  %3480 = vmatprep.subr.mxu0 0.0
  %3481 = vmatpush2.msra.mxu0 0.0
  %3482 = vmatprep.subr.mxu0 0.0
  %3483 = vmatpush2.msra.mxu0 0.0
  %3484 = vmatprep.subr.mxu0 0.0
  %3485 = vmatpush2.msra.mxu0 0.0
  %3486 = vmatprep.subr.mxu0 0.0
  %3487 = vmatpush2.msra.mxu0 0.0
  %3488 = vmatprep.subr.mxu0 0.0
  %3489 = vmatpush2.msra.mxu0 0.0
  %3490 = vmatprep.subr.mxu0 0.0
  %3491 = vmatpush2.msra.mxu0 0.0
  %3492 = vmatprep.subr.mxu0 0.0
  %3493 = vmatpush2.msra.mxu0 0.0
  %3494 = vmatprep.subr.mxu0 0.0
  %3495 = vmatpush2.msra.mxu0 0.0
  %3496 = vmatprep.subr.mxu0 0.0
  %3497 = vmatpush2.msra.mxu0 %v3358
  %3498 = vmatprep.subr.mxu0 0.0
  %3499 = vmatpush2.msra.mxu0 %v3339
  %3500 = vmatprep.subr.mxu0 0.0
  %3501 = vmatpush2.msra.mxu0 %v3338
  %3502 = vmatprep.subr.mxu0 0.0
  %3503 = vmatpush2.msra.mxu0 %v3337
  %3504 = vmatprep.mubr.f32.mxu0 %v3438
  %3505 = vmatmul.mubr.f32.gmra.mxu0 %v3435
  %v3506 = vpop.f32.mrf.mxu0
  %v3507 = vadd.f32 0.0, %v3506
  %v3508 = vpop.f32.mrf.mxu0
  %3509 = vdwg.mxu0
  %v3510 = vadd.s32 %v3346, 2
  %vm3511 = vcmp.eq.s32.totalorder %v3344, %v3510
  %vm3512 = vcmp.eq.s32.totalorder %v3345, %v3510
  %v3513 = vsel %vm3511, 1, 0
  %v3514 = vsel %vm3512, 1, 0
  %v3515 = vcvt.s32.f32 %v3513
  %v3516 = vcvt.s32.f32 %v3514
  %v3518 = vsel %vm3353, %v3516, 0
  %3520 = vmatprep.subr.mxu0 0.0
  %3521 = vmatpush1.msra.mxu0 %v3336
  %3522 = vmatprep.subr.mxu0 0.0
  %3523 = vmatpush1.msra.mxu0 %v3335
  %3524 = vmatprep.subr.mxu0 0.0
  %3525 = vmatpush1.msra.mxu0 %v3334
  %3526 = vmatprep.subr.mxu0 0.0
  %3527 = vmatpush1.msra.mxu0 %v3333
  %3528 = vmatprep.subr.mxu0 0.0
  %3529 = vmatpush1.msra.mxu0 %v3332
  %3530 = vmatprep.subr.mxu0 0.0
  %3531 = vmatpush1.msra.mxu0 %v3331
  %3532 = vmatprep.subr.mxu0 0.0
  %3533 = vmatpush1.msra.mxu0 %v3330
  %3534 = vmatprep.subr.mxu0 0.0
  %3535 = vmatpush1.msra.mxu0 %v3329
  %3536 = vmatprep.subr.mxu0 0.0
  %3537 = vmatpush1.msra.mxu0 %v3328
  %3538 = vmatprep.subr.mxu0 0.0
  %3539 = vmatpush1.msra.mxu0 %v3327
  %3540 = vmatprep.subr.mxu0 0.0
  %3541 = vmatpush1.msra.mxu0 %v3326
  %3542 = vmatprep.subr.mxu0 0.0
  %3543 = vmatpush1.msra.mxu0 %v3325
  %3544 = vmatprep.subr.mxu0 0.0
  %3545 = vmatpush1.msra.mxu0 %v3324
  %3546 = vmatprep.subr.mxu0 0.0
  %3547 = vmatpush1.msra.mxu0 %v3323
  %3548 = vmatprep.subr.mxu0 0.0
  %3549 = vmatpush1.msra.mxu0 %v3322
  %3550 = vmatprep.subr.mxu0 0.0
  %3551 = vmatpush1.msra.mxu0 %v3321
  %3552 = vmatprep.subr.mxu0 0.0
  %3553 = vmatpush2.msra.mxu0 0.0
  %3554 = vmatprep.subr.mxu0 0.0
  %3555 = vmatpush2.msra.mxu0 0.0
  %3556 = vmatprep.subr.mxu0 0.0
  %3557 = vmatpush2.msra.mxu0 0.0
  %3558 = vmatprep.subr.mxu0 0.0
  %3559 = vmatpush2.msra.mxu0 0.0
  %3560 = vmatprep.subr.mxu0 0.0
  %3561 = vmatpush2.msra.mxu0 0.0
  %3562 = vmatprep.subr.mxu0 0.0
  %3563 = vmatpush2.msra.mxu0 0.0
  %3564 = vmatprep.subr.mxu0 0.0
  %3565 = vmatpush2.msra.mxu0 0.0
  %3566 = vmatprep.subr.mxu0 0.0
  %3567 = vmatpush2.msra.mxu0 0.0
  %3568 = vmatprep.subr.mxu0 0.0
  %3569 = vmatpush2.msra.mxu0 0.0
  %3570 = vmatprep.subr.mxu0 0.0
  %3571 = vmatpush2.msra.mxu0 0.0
  %3572 = vmatprep.subr.mxu0 0.0
  %3573 = vmatpush2.msra.mxu0 0.0
  %3574 = vmatprep.subr.mxu0 0.0
  %3575 = vmatpush2.msra.mxu0 0.0
  %3576 = vmatprep.subr.mxu0 0.0
  %3577 = vmatpush2.msra.mxu0 %v3358
  %3578 = vmatprep.subr.mxu0 0.0
  %3579 = vmatpush2.msra.mxu0 %v3339
  %3580 = vmatprep.subr.mxu0 0.0
  %3581 = vmatpush2.msra.mxu0 %v3338
  %3582 = vmatprep.subr.mxu0 0.0
  %3583 = vmatpush2.msra.mxu0 %v3337
  %3584 = vmatprep.mubr.f32.mxu0 %v3518
  %3585 = vmatmul.mubr.f32.gmra.mxu0 %v3515
  %v3586 = vpop.f32.mrf.mxu0
  %v3587 = vadd.f32 0.0, %v3586
  %v3588 = vpop.f32.mrf.mxu0
  %3589 = vdwg.mxu0
  %v3590 = vadd.s32 %v3346, 3
  %vm3591 = vcmp.eq.s32.totalorder %v3344, %v3590
  %vm3592 = vcmp.eq.s32.totalorder %v3345, %v3590
  %v3593 = vsel %vm3591, 1, 0
  %v3594 = vsel %vm3592, 1, 0
  %v3595 = vcvt.s32.f32 %v3593
  %v3596 = vcvt.s32.f32 %v3594
  %v3598 = vsel %vm3353, %v3596, 0
  %3600 = vmatprep.subr.mxu0 0.0
  %3601 = vmatpush1.msra.mxu0 %v3336
  %3602 = vmatprep.subr.mxu0 0.0
  %3603 = vmatpush1.msra.mxu0 %v3335
  %3604 = vmatprep.subr.mxu0 0.0
  %3605 = vmatpush1.msra.mxu0 %v3334
  %3606 = vmatprep.subr.mxu0 0.0
  %3607 = vmatpush1.msra.mxu0 %v3333
  %3608 = vmatprep.subr.mxu0 0.0
  %3609 = vmatpush1.msra.mxu0 %v3332
  %3610 = vmatprep.subr.mxu0 0.0
  %3611 = vmatpush1.msra.mxu0 %v3331
  %3612 = vmatprep.subr.mxu0 0.0
  %3613 = vmatpush1.msra.mxu0 %v3330
  %3614 = vmatprep.subr.mxu0 0.0
  %3615 = vmatpush1.msra.mxu0 %v3329
  %3616 = vmatprep.subr.mxu0 0.0
  %3617 = vmatpush1.msra.mxu0 %v3328
  %3618 = vmatprep.subr.mxu0 0.0
  %3619 = vmatpush1.msra.mxu0 %v3327
  %3620 = vmatprep.subr.mxu0 0.0
  %3621 = vmatpush1.msra.mxu0 %v3326
  %3622 = vmatprep.subr.mxu0 0.0
  %3623 = vmatpush1.msra.mxu0 %v3325
  %3624 = vmatprep.subr.mxu0 0.0
  %3625 = vmatpush1.msra.mxu0 %v3324
  %3626 = vmatprep.subr.mxu0 0.0
  %3627 = vmatpush1.msra.mxu0 %v3323
  %3628 = vmatprep.subr.mxu0 0.0
  %3629 = vmatpush1.msra.mxu0 %v3322
  %3630 = vmatprep.subr.mxu0 0.0
  %3631 = vmatpush1.msra.mxu0 %v3321
  %3632 = vmatprep.subr.mxu0 0.0
  %3633 = vmatpush2.msra.mxu0 0.0
  %3634 = vmatprep.subr.mxu0 0.0
  %3635 = vmatpush2.msra.mxu0 0.0
  %3636 = vmatprep.subr.mxu0 0.0
  %3637 = vmatpush2.msra.mxu0 0.0
  %3638 = vmatprep.subr.mxu0 0.0
  %3639 = vmatpush2.msra.mxu0 0.0
  %3640 = vmatprep.subr.mxu0 0.0
  %3641 = vmatpush2.msra.mxu0 0.0
  %3642 = vmatprep.subr.mxu0 0.0
  %3643 = vmatpush2.msra.mxu0 0.0
  %3644 = vmatprep.subr.mxu0 0.0
  %3645 = vmatpush2.msra.mxu0 0.0
  %3646 = vmatprep.subr.mxu0 0.0
  %3647 = vmatpush2.msra.mxu0 0.0
  %3648 = vmatprep.subr.mxu0 0.0
  %3649 = vmatpush2.msra.mxu0 0.0
  %3650 = vmatprep.subr.mxu0 0.0
  %3651 = vmatpush2.msra.mxu0 0.0
  %3652 = vmatprep.subr.mxu0 0.0
  %3653 = vmatpush2.msra.mxu0 0.0
  %3654 = vmatprep.subr.mxu0 0.0
  %3655 = vmatpush2.msra.mxu0 0.0
  %3656 = vmatprep.subr.mxu0 0.0
  %3657 = vmatpush2.msra.mxu0 %v3358
  %3658 = vmatprep.subr.mxu0 0.0
  %3659 = vmatpush2.msra.mxu0 %v3339
  %3660 = vmatprep.subr.mxu0 0.0
  %3661 = vmatpush2.msra.mxu0 %v3338
  %3662 = vmatprep.subr.mxu0 0.0
  %3663 = vmatpush2.msra.mxu0 %v3337
  %3664 = vmatprep.mubr.f32.mxu0 %v3598
  %3665 = vmatmul.mubr.f32.gmra.mxu0 %v3595
  %v3666 = vpop.f32.mrf.mxu0
  %v3667 = vadd.f32 0.0, %v3666
  %v3668 = vpop.f32.mrf.mxu0
  %3669 = vdwg.mxu0
  %v3670 = vadd.s32 %v3346, 4
  %vm3671 = vcmp.eq.s32.totalorder %v3344, %v3670
  %vm3672 = vcmp.eq.s32.totalorder %v3345, %v3670
  %v3673 = vsel %vm3671, 1, 0
  %v3674 = vsel %vm3672, 1, 0
  %v3675 = vcvt.s32.f32 %v3673
  %v3676 = vcvt.s32.f32 %v3674
  %v3678 = vsel %vm3353, %v3676, 0
  %3680 = vmatprep.subr.mxu0 0.0
  %3681 = vmatpush1.msra.mxu0 %v3336
  %3682 = vmatprep.subr.mxu0 0.0
  %3683 = vmatpush1.msra.mxu0 %v3335
  %3684 = vmatprep.subr.mxu0 0.0
  %3685 = vmatpush1.msra.mxu0 %v3334
  %3686 = vmatprep.subr.mxu0 0.0
  %3687 = vmatpush1.msra.mxu0 %v3333
  %3688 = vmatprep.subr.mxu0 0.0
  %3689 = vmatpush1.msra.mxu0 %v3332
  %3690 = vmatprep.subr.mxu0 0.0
  %3691 = vmatpush1.msra.mxu0 %v3331
  %3692 = vmatprep.subr.mxu0 0.0
  %3693 = vmatpush1.msra.mxu0 %v3330
  %3694 = vmatprep.subr.mxu0 0.0
  %3695 = vmatpush1.msra.mxu0 %v3329
  %3696 = vmatprep.subr.mxu0 0.0
  %3697 = vmatpush1.msra.mxu0 %v3328
  %3698 = vmatprep.subr.mxu0 0.0
  %3699 = vmatpush1.msra.mxu0 %v3327
  %3700 = vmatprep.subr.mxu0 0.0
  %3701 = vmatpush1.msra.mxu0 %v3326
  %3702 = vmatprep.subr.mxu0 0.0
  %3703 = vmatpush1.msra.mxu0 %v3325
  %3704 = vmatprep.subr.mxu0 0.0
  %3705 = vmatpush1.msra.mxu0 %v3324
  %3706 = vmatprep.subr.mxu0 0.0
  %3707 = vmatpush1.msra.mxu0 %v3323
  %3708 = vmatprep.subr.mxu0 0.0
  %3709 = vmatpush1.msra.mxu0 %v3322
  %3710 = vmatprep.subr.mxu0 0.0
  %3711 = vmatpush1.msra.mxu0 %v3321
  %3712 = vmatprep.subr.mxu0 0.0
  %3713 = vmatpush2.msra.mxu0 0.0
  %3714 = vmatprep.subr.mxu0 0.0
  %3715 = vmatpush2.msra.mxu0 0.0
  %3716 = vmatprep.subr.mxu0 0.0
  %3717 = vmatpush2.msra.mxu0 0.0
  %3718 = vmatprep.subr.mxu0 0.0
  %3719 = vmatpush2.msra.mxu0 0.0
  %3720 = vmatprep.subr.mxu0 0.0
  %3721 = vmatpush2.msra.mxu0 0.0
  %3722 = vmatprep.subr.mxu0 0.0
  %3723 = vmatpush2.msra.mxu0 0.0
  %3724 = vmatprep.subr.mxu0 0.0
  %3725 = vmatpush2.msra.mxu0 0.0
  %3726 = vmatprep.subr.mxu0 0.0
  %3727 = vmatpush2.msra.mxu0 0.0
  %3728 = vmatprep.subr.mxu0 0.0
  %3729 = vmatpush2.msra.mxu0 0.0
  %3730 = vmatprep.subr.mxu0 0.0
  %3731 = vmatpush2.msra.mxu0 0.0
  %3732 = vmatprep.subr.mxu0 0.0
  %3733 = vmatpush2.msra.mxu0 0.0
  %3734 = vmatprep.subr.mxu0 0.0
  %3735 = vmatpush2.msra.mxu0 0.0
  %3736 = vmatprep.subr.mxu0 0.0
  %3737 = vmatpush2.msra.mxu0 %v3358
  %3738 = vmatprep.subr.mxu0 0.0
  %3739 = vmatpush2.msra.mxu0 %v3339
  %3740 = vmatprep.subr.mxu0 0.0
  %3741 = vmatpush2.msra.mxu0 %v3338
  %3742 = vmatprep.subr.mxu0 0.0
  %3743 = vmatpush2.msra.mxu0 %v3337
  %3744 = vmatprep.mubr.f32.mxu0 %v3678
  %3745 = vmatmul.mubr.f32.gmra.mxu0 %v3675
  %v3746 = vpop.f32.mrf.mxu0
  %v3747 = vadd.f32 0.0, %v3746
  %v3748 = vpop.f32.mrf.mxu0
  %3749 = vdwg.mxu0
  %v3750 = vadd.s32 %v3346, 5
  %vm3751 = vcmp.eq.s32.totalorder %v3344, %v3750
  %vm3752 = vcmp.eq.s32.totalorder %v3345, %v3750
  %v3753 = vsel %vm3751, 1, 0
  %v3754 = vsel %vm3752, 1, 0
  %v3755 = vcvt.s32.f32 %v3753
  %v3756 = vcvt.s32.f32 %v3754
  %v3758 = vsel %vm3353, %v3756, 0
  %3760 = vmatprep.subr.mxu0 0.0
  %3761 = vmatpush1.msra.mxu0 %v3336
  %3762 = vmatprep.subr.mxu0 0.0
  %3763 = vmatpush1.msra.mxu0 %v3335
  %3764 = vmatprep.subr.mxu0 0.0
  %3765 = vmatpush1.msra.mxu0 %v3334
  %3766 = vmatprep.subr.mxu0 0.0
  %3767 = vmatpush1.msra.mxu0 %v3333
  %3768 = vmatprep.subr.mxu0 0.0
  %3769 = vmatpush1.msra.mxu0 %v3332
  %3770 = vmatprep.subr.mxu0 0.0
  %3771 = vmatpush1.msra.mxu0 %v3331
  %3772 = vmatprep.subr.mxu0 0.0
  %3773 = vmatpush1.msra.mxu0 %v3330
  %3774 = vmatprep.subr.mxu0 0.0
  %3775 = vmatpush1.msra.mxu0 %v3329
  %3776 = vmatprep.subr.mxu0 0.0
  %3777 = vmatpush1.msra.mxu0 %v3328
  %3778 = vmatprep.subr.mxu0 0.0
  %3779 = vmatpush1.msra.mxu0 %v3327
  %3780 = vmatprep.subr.mxu0 0.0
  %3781 = vmatpush1.msra.mxu0 %v3326
  %3782 = vmatprep.subr.mxu0 0.0
  %3783 = vmatpush1.msra.mxu0 %v3325
  %3784 = vmatprep.subr.mxu0 0.0
  %3785 = vmatpush1.msra.mxu0 %v3324
  %3786 = vmatprep.subr.mxu0 0.0
  %3787 = vmatpush1.msra.mxu0 %v3323
  %3788 = vmatprep.subr.mxu0 0.0
  %3789 = vmatpush1.msra.mxu0 %v3322
  %3790 = vmatprep.subr.mxu0 0.0
  %3791 = vmatpush1.msra.mxu0 %v3321
  %3792 = vmatprep.subr.mxu0 0.0
  %3793 = vmatpush2.msra.mxu0 0.0
  %3794 = vmatprep.subr.mxu0 0.0
  %3795 = vmatpush2.msra.mxu0 0.0
  %3796 = vmatprep.subr.mxu0 0.0
  %3797 = vmatpush2.msra.mxu0 0.0
  %3798 = vmatprep.subr.mxu0 0.0
  %3799 = vmatpush2.msra.mxu0 0.0
  %3800 = vmatprep.subr.mxu0 0.0
  %3801 = vmatpush2.msra.mxu0 0.0
  %3802 = vmatprep.subr.mxu0 0.0
  %3803 = vmatpush2.msra.mxu0 0.0
  %3804 = vmatprep.subr.mxu0 0.0
  %3805 = vmatpush2.msra.mxu0 0.0
  %3806 = vmatprep.subr.mxu0 0.0
  %3807 = vmatpush2.msra.mxu0 0.0
  %3808 = vmatprep.subr.mxu0 0.0
  %3809 = vmatpush2.msra.mxu0 0.0
  %3810 = vmatprep.subr.mxu0 0.0
  %3811 = vmatpush2.msra.mxu0 0.0
  %3812 = vmatprep.subr.mxu0 0.0
  %3813 = vmatpush2.msra.mxu0 0.0
  %3814 = vmatprep.subr.mxu0 0.0
  %3815 = vmatpush2.msra.mxu0 0.0
  %3816 = vmatprep.subr.mxu0 0.0
  %3817 = vmatpush2.msra.mxu0 %v3358
  %3818 = vmatprep.subr.mxu0 0.0
  %3819 = vmatpush2.msra.mxu0 %v3339
  %3820 = vmatprep.subr.mxu0 0.0
  %3821 = vmatpush2.msra.mxu0 %v3338
  %3822 = vmatprep.subr.mxu0 0.0
  %3823 = vmatpush2.msra.mxu0 %v3337
  %3824 = vmatprep.mubr.f32.mxu0 %v3758
  %3825 = vmatmul.mubr.f32.gmra.mxu0 %v3755
  %v3826 = vpop.f32.mrf.mxu0
  %v3827 = vadd.f32 0.0, %v3826
  %v3828 = vpop.f32.mrf.mxu0
  %3829 = vdwg.mxu0
  %v3830 = vadd.s32 %v3346, 6
  %vm3831 = vcmp.eq.s32.totalorder %v3344, %v3830
  %vm3832 = vcmp.eq.s32.totalorder %v3345, %v3830
  %v3833 = vsel %vm3831, 1, 0
  %v3834 = vsel %vm3832, 1, 0
  %v3835 = vcvt.s32.f32 %v3833
  %v3836 = vcvt.s32.f32 %v3834
  %v3838 = vsel %vm3353, %v3836, 0
  %3840 = vmatprep.subr.mxu0 0.0
  %3841 = vmatpush1.msra.mxu0 %v3336
  %3842 = vmatprep.subr.mxu0 0.0
  %3843 = vmatpush1.msra.mxu0 %v3335
  %3844 = vmatprep.subr.mxu0 0.0
  %3845 = vmatpush1.msra.mxu0 %v3334
  %3846 = vmatprep.subr.mxu0 0.0
  %3847 = vmatpush1.msra.mxu0 %v3333
  %3848 = vmatprep.subr.mxu0 0.0
  %3849 = vmatpush1.msra.mxu0 %v3332
  %3850 = vmatprep.subr.mxu0 0.0
  %3851 = vmatpush1.msra.mxu0 %v3331
  %3852 = vmatprep.subr.mxu0 0.0
  %3853 = vmatpush1.msra.mxu0 %v3330
  %3854 = vmatprep.subr.mxu0 0.0
  %3855 = vmatpush1.msra.mxu0 %v3329
  %3856 = vmatprep.subr.mxu0 0.0
  %3857 = vmatpush1.msra.mxu0 %v3328
  %3858 = vmatprep.subr.mxu0 0.0
  %3859 = vmatpush1.msra.mxu0 %v3327
  %3860 = vmatprep.subr.mxu0 0.0
  %3861 = vmatpush1.msra.mxu0 %v3326
  %3862 = vmatprep.subr.mxu0 0.0
  %3863 = vmatpush1.msra.mxu0 %v3325
  %3864 = vmatprep.subr.mxu0 0.0
  %3865 = vmatpush1.msra.mxu0 %v3324
  %3866 = vmatprep.subr.mxu0 0.0
  %3867 = vmatpush1.msra.mxu0 %v3323
  %3868 = vmatprep.subr.mxu0 0.0
  %3869 = vmatpush1.msra.mxu0 %v3322
  %3870 = vmatprep.subr.mxu0 0.0
  %3871 = vmatpush1.msra.mxu0 %v3321
  %3872 = vmatprep.subr.mxu0 0.0
  %3873 = vmatpush2.msra.mxu0 0.0
  %3874 = vmatprep.subr.mxu0 0.0
  %3875 = vmatpush2.msra.mxu0 0.0
  %3876 = vmatprep.subr.mxu0 0.0
  %3877 = vmatpush2.msra.mxu0 0.0
  %3878 = vmatprep.subr.mxu0 0.0
  %3879 = vmatpush2.msra.mxu0 0.0
  %3880 = vmatprep.subr.mxu0 0.0
  %3881 = vmatpush2.msra.mxu0 0.0
  %3882 = vmatprep.subr.mxu0 0.0
  %3883 = vmatpush2.msra.mxu0 0.0
  %3884 = vmatprep.subr.mxu0 0.0
  %3885 = vmatpush2.msra.mxu0 0.0
  %3886 = vmatprep.subr.mxu0 0.0
  %3887 = vmatpush2.msra.mxu0 0.0
  %3888 = vmatprep.subr.mxu0 0.0
  %3889 = vmatpush2.msra.mxu0 0.0
  %3890 = vmatprep.subr.mxu0 0.0
  %3891 = vmatpush2.msra.mxu0 0.0
  %3892 = vmatprep.subr.mxu0 0.0
  %3893 = vmatpush2.msra.mxu0 0.0
  %3894 = vmatprep.subr.mxu0 0.0
  %3895 = vmatpush2.msra.mxu0 0.0
  %3896 = vmatprep.subr.mxu0 0.0
  %3897 = vmatpush2.msra.mxu0 %v3358
  %3898 = vmatprep.subr.mxu0 0.0
  %3899 = vmatpush2.msra.mxu0 %v3339
  %3900 = vmatprep.subr.mxu0 0.0
  %3901 = vmatpush2.msra.mxu0 %v3338
  %3902 = vmatprep.subr.mxu0 0.0
  %3903 = vmatpush2.msra.mxu0 %v3337
  %3904 = vmatprep.mubr.f32.mxu0 %v3838
  %3905 = vmatmul.mubr.f32.gmra.mxu0 %v3835
  %v3906 = vpop.f32.mrf.mxu0
  %v3907 = vadd.f32 0.0, %v3906
  %v3908 = vpop.f32.mrf.mxu0
  %3909 = vdwg.mxu0
  %v3910 = vadd.s32 %v3346, 7
  %vm3911 = vcmp.eq.s32.totalorder %v3344, %v3910
  %vm3912 = vcmp.eq.s32.totalorder %v3345, %v3910
  %v3913 = vsel %vm3911, 1, 0
  %v3914 = vsel %vm3912, 1, 0
  %v3915 = vcvt.s32.f32 %v3913
  %v3916 = vcvt.s32.f32 %v3914
  %v3918 = vsel %vm3353, %v3916, 0
  %3920 = vmatprep.subr.mxu0 0.0
  %3921 = vmatpush1.msra.mxu0 %v3336
  %3922 = vmatprep.subr.mxu0 0.0
  %3923 = vmatpush1.msra.mxu0 %v3335
  %3924 = vmatprep.subr.mxu0 0.0
  %3925 = vmatpush1.msra.mxu0 %v3334
  %3926 = vmatprep.subr.mxu0 0.0
  %3927 = vmatpush1.msra.mxu0 %v3333
  %3928 = vmatprep.subr.mxu0 0.0
  %3929 = vmatpush1.msra.mxu0 %v3332
  %3930 = vmatprep.subr.mxu0 0.0
  %3931 = vmatpush1.msra.mxu0 %v3331
  %3932 = vmatprep.subr.mxu0 0.0
  %3933 = vmatpush1.msra.mxu0 %v3330
  %3934 = vmatprep.subr.mxu0 0.0
  %3935 = vmatpush1.msra.mxu0 %v3329
  %3936 = vmatprep.subr.mxu0 0.0
  %3937 = vmatpush1.msra.mxu0 %v3328
  %3938 = vmatprep.subr.mxu0 0.0
  %3939 = vmatpush1.msra.mxu0 %v3327
  %3940 = vmatprep.subr.mxu0 0.0
  %3941 = vmatpush1.msra.mxu0 %v3326
  %3942 = vmatprep.subr.mxu0 0.0
  %3943 = vmatpush1.msra.mxu0 %v3325
  %3944 = vmatprep.subr.mxu0 0.0
  %3945 = vmatpush1.msra.mxu0 %v3324
  %3946 = vmatprep.subr.mxu0 0.0
  %3947 = vmatpush1.msra.mxu0 %v3323
  %3948 = vmatprep.subr.mxu0 0.0
  %3949 = vmatpush1.msra.mxu0 %v3322
  %3950 = vmatprep.subr.mxu0 0.0
  %3951 = vmatpush1.msra.mxu0 %v3321
  %3952 = vmatprep.subr.mxu0 0.0
  %3953 = vmatpush2.msra.mxu0 0.0
  %3954 = vmatprep.subr.mxu0 0.0
  %3955 = vmatpush2.msra.mxu0 0.0
  %3956 = vmatprep.subr.mxu0 0.0
  %3957 = vmatpush2.msra.mxu0 0.0
  %3958 = vmatprep.subr.mxu0 0.0
  %3959 = vmatpush2.msra.mxu0 0.0
  %3960 = vmatprep.subr.mxu0 0.0
  %3961 = vmatpush2.msra.mxu0 0.0
  %3962 = vmatprep.subr.mxu0 0.0
  %3963 = vmatpush2.msra.mxu0 0.0
  %3964 = vmatprep.subr.mxu0 0.0
  %3965 = vmatpush2.msra.mxu0 0.0
  %3966 = vmatprep.subr.mxu0 0.0
  %3967 = vmatpush2.msra.mxu0 0.0
  %3968 = vmatprep.subr.mxu0 0.0
  %3969 = vmatpush2.msra.mxu0 0.0
  %3970 = vmatprep.subr.mxu0 0.0
  %3971 = vmatpush2.msra.mxu0 0.0
  %3972 = vmatprep.subr.mxu0 0.0
  %3973 = vmatpush2.msra.mxu0 0.0
  %3974 = vmatprep.subr.mxu0 0.0
  %3975 = vmatpush2.msra.mxu0 0.0
  %3976 = vmatprep.subr.mxu0 0.0
  %3977 = vmatpush2.msra.mxu0 %v3358
  %3978 = vmatprep.subr.mxu0 0.0
  %3979 = vmatpush2.msra.mxu0 %v3339
  %3980 = vmatprep.subr.mxu0 0.0
  %3981 = vmatpush2.msra.mxu0 %v3338
  %3982 = vmatprep.subr.mxu0 0.0
  %3983 = vmatpush2.msra.mxu0 %v3337
  %3984 = vmatprep.mubr.f32.mxu0 %v3918
  %3985 = vmatmul.mubr.f32.gmra.mxu0 %v3915
  %v3986 = vpop.f32.mrf.mxu0
  %v3987 = vadd.f32 0.0, %v3986
  %v3988 = vpop.f32.mrf.mxu0
  %3989 = vdwg.mxu0
  %v3990 = vadd.s32 %v3346, 8
  %vm3991 = vcmp.eq.s32.totalorder %v3344, %v3990
  %vm3992 = vcmp.eq.s32.totalorder %v3345, %v3990
  %v3993 = vsel %vm3991, 1, 0
  %v3994 = vsel %vm3992, 1, 0
  %v3995 = vcvt.s32.f32 %v3993
  %v3996 = vcvt.s32.f32 %v3994
  %v3998 = vsel %vm3353, %v3996, 0
  %4000 = vmatprep.subr.mxu0 0.0
  %4001 = vmatpush1.msra.mxu0 %v3336
  %4002 = vmatprep.subr.mxu0 0.0
  %4003 = vmatpush1.msra.mxu0 %v3335
  %4004 = vmatprep.subr.mxu0 0.0
  %4005 = vmatpush1.msra.mxu0 %v3334
  %4006 = vmatprep.subr.mxu0 0.0
  %4007 = vmatpush1.msra.mxu0 %v3333
  %4008 = vmatprep.subr.mxu0 0.0
  %4009 = vmatpush1.msra.mxu0 %v3332
  %4010 = vmatprep.subr.mxu0 0.0
  %4011 = vmatpush1.msra.mxu0 %v3331
  %4012 = vmatprep.subr.mxu0 0.0
  %4013 = vmatpush1.msra.mxu0 %v3330
  %4014 = vmatprep.subr.mxu0 0.0
  %4015 = vmatpush1.msra.mxu0 %v3329
  %4016 = vmatprep.subr.mxu0 0.0
  %4017 = vmatpush1.msra.mxu0 %v3328
  %4018 = vmatprep.subr.mxu0 0.0
  %4019 = vmatpush1.msra.mxu0 %v3327
  %4020 = vmatprep.subr.mxu0 0.0
  %4021 = vmatpush1.msra.mxu0 %v3326
  %4022 = vmatprep.subr.mxu0 0.0
  %4023 = vmatpush1.msra.mxu0 %v3325
  %4024 = vmatprep.subr.mxu0 0.0
  %4025 = vmatpush1.msra.mxu0 %v3324
  %4026 = vmatprep.subr.mxu0 0.0
  %4027 = vmatpush1.msra.mxu0 %v3323
  %4028 = vmatprep.subr.mxu0 0.0
  %4029 = vmatpush1.msra.mxu0 %v3322
  %4030 = vmatprep.subr.mxu0 0.0
  %4031 = vmatpush1.msra.mxu0 %v3321
  %4032 = vmatprep.subr.mxu0 0.0
  %4033 = vmatpush2.msra.mxu0 0.0
  %4034 = vmatprep.subr.mxu0 0.0
  %4035 = vmatpush2.msra.mxu0 0.0
  %4036 = vmatprep.subr.mxu0 0.0
  %4037 = vmatpush2.msra.mxu0 0.0
  %4038 = vmatprep.subr.mxu0 0.0
  %4039 = vmatpush2.msra.mxu0 0.0
  %4040 = vmatprep.subr.mxu0 0.0
  %4041 = vmatpush2.msra.mxu0 0.0
  %4042 = vmatprep.subr.mxu0 0.0
  %4043 = vmatpush2.msra.mxu0 0.0
  %4044 = vmatprep.subr.mxu0 0.0
  %4045 = vmatpush2.msra.mxu0 0.0
  %4046 = vmatprep.subr.mxu0 0.0
  %4047 = vmatpush2.msra.mxu0 0.0
  %4048 = vmatprep.subr.mxu0 0.0
  %4049 = vmatpush2.msra.mxu0 0.0
  %4050 = vmatprep.subr.mxu0 0.0
  %4051 = vmatpush2.msra.mxu0 0.0
  %4052 = vmatprep.subr.mxu0 0.0
  %4053 = vmatpush2.msra.mxu0 0.0
  %4054 = vmatprep.subr.mxu0 0.0
  %4055 = vmatpush2.msra.mxu0 0.0
  %4056 = vmatprep.subr.mxu0 0.0
  %4057 = vmatpush2.msra.mxu0 %v3358
  %4058 = vmatprep.subr.mxu0 0.0
  %4059 = vmatpush2.msra.mxu0 %v3339
  %4060 = vmatprep.subr.mxu0 0.0
  %4061 = vmatpush2.msra.mxu0 %v3338
  %4062 = vmatprep.subr.mxu0 0.0
  %4063 = vmatpush2.msra.mxu0 %v3337
  %4064 = vmatprep.mubr.f32.mxu0 %v3998
  %4065 = vmatmul.mubr.f32.gmra.mxu0 %v3995
  %v4066 = vpop.f32.mrf.mxu0
  %v4067 = vadd.f32 0.0, %v4066
  %v4068 = vpop.f32.mrf.mxu0
  %4069 = vdwg.mxu0
  %v4070 = vadd.s32 %v3346, 9
  %vm4071 = vcmp.eq.s32.totalorder %v3344, %v4070
  %vm4072 = vcmp.eq.s32.totalorder %v3345, %v4070
  %v4073 = vsel %vm4071, 1, 0
  %v4074 = vsel %vm4072, 1, 0
  %v4075 = vcvt.s32.f32 %v4073
  %v4076 = vcvt.s32.f32 %v4074
  %v4078 = vsel %vm3353, %v4076, 0
  %4080 = vmatprep.subr.mxu0 0.0
  %4081 = vmatpush1.msra.mxu0 %v3336
  %4082 = vmatprep.subr.mxu0 0.0
  %4083 = vmatpush1.msra.mxu0 %v3335
  %4084 = vmatprep.subr.mxu0 0.0
  %4085 = vmatpush1.msra.mxu0 %v3334
  %4086 = vmatprep.subr.mxu0 0.0
  %4087 = vmatpush1.msra.mxu0 %v3333
  %4088 = vmatprep.subr.mxu0 0.0
  %4089 = vmatpush1.msra.mxu0 %v3332
  %4090 = vmatprep.subr.mxu0 0.0
  %4091 = vmatpush1.msra.mxu0 %v3331
  %4092 = vmatprep.subr.mxu0 0.0
  %4093 = vmatpush1.msra.mxu0 %v3330
  %4094 = vmatprep.subr.mxu0 0.0
  %4095 = vmatpush1.msra.mxu0 %v3329
  %4096 = vmatprep.subr.mxu0 0.0
  %4097 = vmatpush1.msra.mxu0 %v3328
  %4098 = vmatprep.subr.mxu0 0.0
  %4099 = vmatpush1.msra.mxu0 %v3327
  %4100 = vmatprep.subr.mxu0 0.0
  %4101 = vmatpush1.msra.mxu0 %v3326
  %4102 = vmatprep.subr.mxu0 0.0
  %4103 = vmatpush1.msra.mxu0 %v3325
  %4104 = vmatprep.subr.mxu0 0.0
  %4105 = vmatpush1.msra.mxu0 %v3324
  %4106 = vmatprep.subr.mxu0 0.0
  %4107 = vmatpush1.msra.mxu0 %v3323
  %4108 = vmatprep.subr.mxu0 0.0
  %4109 = vmatpush1.msra.mxu0 %v3322
  %4110 = vmatprep.subr.mxu0 0.0
  %4111 = vmatpush1.msra.mxu0 %v3321
  %4112 = vmatprep.subr.mxu0 0.0
  %4113 = vmatpush2.msra.mxu0 0.0
  %4114 = vmatprep.subr.mxu0 0.0
  %4115 = vmatpush2.msra.mxu0 0.0
  %4116 = vmatprep.subr.mxu0 0.0
  %4117 = vmatpush2.msra.mxu0 0.0
  %4118 = vmatprep.subr.mxu0 0.0
  %4119 = vmatpush2.msra.mxu0 0.0
  %4120 = vmatprep.subr.mxu0 0.0
  %4121 = vmatpush2.msra.mxu0 0.0
  %4122 = vmatprep.subr.mxu0 0.0
  %4123 = vmatpush2.msra.mxu0 0.0
  %4124 = vmatprep.subr.mxu0 0.0
  %4125 = vmatpush2.msra.mxu0 0.0
  %4126 = vmatprep.subr.mxu0 0.0
  %4127 = vmatpush2.msra.mxu0 0.0
  %4128 = vmatprep.subr.mxu0 0.0
  %4129 = vmatpush2.msra.mxu0 0.0
  %4130 = vmatprep.subr.mxu0 0.0
  %4131 = vmatpush2.msra.mxu0 0.0
  %4132 = vmatprep.subr.mxu0 0.0
  %4133 = vmatpush2.msra.mxu0 0.0
  %4134 = vmatprep.subr.mxu0 0.0
  %4135 = vmatpush2.msra.mxu0 0.0
  %4136 = vmatprep.subr.mxu0 0.0
  %4137 = vmatpush2.msra.mxu0 %v3358
  %4138 = vmatprep.subr.mxu0 0.0
  %4139 = vmatpush2.msra.mxu0 %v3339
  %4140 = vmatprep.subr.mxu0 0.0
  %4141 = vmatpush2.msra.mxu0 %v3338
  %4142 = vmatprep.subr.mxu0 0.0
  %4143 = vmatpush2.msra.mxu0 %v3337
  %4144 = vmatprep.mubr.f32.mxu0 %v4078
  %4145 = vmatmul.mubr.f32.gmra.mxu0 %v4075
  %v4146 = vpop.f32.mrf.mxu0
  %v4147 = vadd.f32 0.0, %v4146
  %v4148 = vpop.f32.mrf.mxu0
  %4149 = vdwg.mxu0
  %v4150 = vadd.s32 %v3346, 10
  %vm4151 = vcmp.eq.s32.totalorder %v3344, %v4150
  %vm4152 = vcmp.eq.s32.totalorder %v3345, %v4150
  %v4153 = vsel %vm4151, 1, 0
  %v4154 = vsel %vm4152, 1, 0
  %v4155 = vcvt.s32.f32 %v4153
  %v4156 = vcvt.s32.f32 %v4154
  %v4158 = vsel %vm3353, %v4156, 0
  %4160 = vmatprep.subr.mxu0 0.0
  %4161 = vmatpush1.msra.mxu0 %v3336
  %4162 = vmatprep.subr.mxu0 0.0
  %4163 = vmatpush1.msra.mxu0 %v3335
  %4164 = vmatprep.subr.mxu0 0.0
  %4165 = vmatpush1.msra.mxu0 %v3334
  %4166 = vmatprep.subr.mxu0 0.0
  %4167 = vmatpush1.msra.mxu0 %v3333
  %4168 = vmatprep.subr.mxu0 0.0
  %4169 = vmatpush1.msra.mxu0 %v3332
  %4170 = vmatprep.subr.mxu0 0.0
  %4171 = vmatpush1.msra.mxu0 %v3331
  %4172 = vmatprep.subr.mxu0 0.0
  %4173 = vmatpush1.msra.mxu0 %v3330
  %4174 = vmatprep.subr.mxu0 0.0
  %4175 = vmatpush1.msra.mxu0 %v3329
  %4176 = vmatprep.subr.mxu0 0.0
  %4177 = vmatpush1.msra.mxu0 %v3328
  %4178 = vmatprep.subr.mxu0 0.0
  %4179 = vmatpush1.msra.mxu0 %v3327
  %4180 = vmatprep.subr.mxu0 0.0
  %4181 = vmatpush1.msra.mxu0 %v3326
  %4182 = vmatprep.subr.mxu0 0.0
  %4183 = vmatpush1.msra.mxu0 %v3325
  %4184 = vmatprep.subr.mxu0 0.0
  %4185 = vmatpush1.msra.mxu0 %v3324
  %4186 = vmatprep.subr.mxu0 0.0
  %4187 = vmatpush1.msra.mxu0 %v3323
  %4188 = vmatprep.subr.mxu0 0.0
  %4189 = vmatpush1.msra.mxu0 %v3322
  %4190 = vmatprep.subr.mxu0 0.0
  %4191 = vmatpush1.msra.mxu0 %v3321
  %4192 = vmatprep.subr.mxu0 0.0
  %4193 = vmatpush2.msra.mxu0 0.0
  %4194 = vmatprep.subr.mxu0 0.0
  %4195 = vmatpush2.msra.mxu0 0.0
  %4196 = vmatprep.subr.mxu0 0.0
  %4197 = vmatpush2.msra.mxu0 0.0
  %4198 = vmatprep.subr.mxu0 0.0
  %4199 = vmatpush2.msra.mxu0 0.0
  %4200 = vmatprep.subr.mxu0 0.0
  %4201 = vmatpush2.msra.mxu0 0.0
  %4202 = vmatprep.subr.mxu0 0.0
  %4203 = vmatpush2.msra.mxu0 0.0
  %4204 = vmatprep.subr.mxu0 0.0
  %4205 = vmatpush2.msra.mxu0 0.0
  %4206 = vmatprep.subr.mxu0 0.0
  %4207 = vmatpush2.msra.mxu0 0.0
  %4208 = vmatprep.subr.mxu0 0.0
  %4209 = vmatpush2.msra.mxu0 0.0
  %4210 = vmatprep.subr.mxu0 0.0
  %4211 = vmatpush2.msra.mxu0 0.0
  %4212 = vmatprep.subr.mxu0 0.0
  %4213 = vmatpush2.msra.mxu0 0.0
  %4214 = vmatprep.subr.mxu0 0.0
  %4215 = vmatpush2.msra.mxu0 0.0
  %4216 = vmatprep.subr.mxu0 0.0
  %4217 = vmatpush2.msra.mxu0 %v3358
  %4218 = vmatprep.subr.mxu0 0.0
  %4219 = vmatpush2.msra.mxu0 %v3339
  %4220 = vmatprep.subr.mxu0 0.0
  %4221 = vmatpush2.msra.mxu0 %v3338
  %4222 = vmatprep.subr.mxu0 0.0
  %4223 = vmatpush2.msra.mxu0 %v3337
  %4224 = vmatprep.mubr.f32.mxu0 %v4158
  %4225 = vmatmul.mubr.f32.gmra.mxu0 %v4155
  %v4226 = vpop.f32.mrf.mxu0
  %v4227 = vadd.f32 0.0, %v4226
  %v4228 = vpop.f32.mrf.mxu0
  %4229 = vdwg.mxu0
  %v4230 = vadd.s32 %v3346, 11
  %vm4231 = vcmp.eq.s32.totalorder %v3344, %v4230
  %vm4232 = vcmp.eq.s32.totalorder %v3345, %v4230
  %v4233 = vsel %vm4231, 1, 0
  %v4234 = vsel %vm4232, 1, 0
  %v4235 = vcvt.s32.f32 %v4233
  %v4236 = vcvt.s32.f32 %v4234
  %v4238 = vsel %vm3353, %v4236, 0
  %4240 = vmatprep.subr.mxu0 0.0
  %4241 = vmatpush1.msra.mxu0 %v3336
  %4242 = vmatprep.subr.mxu0 0.0
  %4243 = vmatpush1.msra.mxu0 %v3335
  %4244 = vmatprep.subr.mxu0 0.0
  %4245 = vmatpush1.msra.mxu0 %v3334
  %4246 = vmatprep.subr.mxu0 0.0
  %4247 = vmatpush1.msra.mxu0 %v3333
  %4248 = vmatprep.subr.mxu0 0.0
  %4249 = vmatpush1.msra.mxu0 %v3332
  %4250 = vmatprep.subr.mxu0 0.0
  %4251 = vmatpush1.msra.mxu0 %v3331
  %4252 = vmatprep.subr.mxu0 0.0
  %4253 = vmatpush1.msra.mxu0 %v3330
  %4254 = vmatprep.subr.mxu0 0.0
  %4255 = vmatpush1.msra.mxu0 %v3329
  %4256 = vmatprep.subr.mxu0 0.0
  %4257 = vmatpush1.msra.mxu0 %v3328
  %4258 = vmatprep.subr.mxu0 0.0
  %4259 = vmatpush1.msra.mxu0 %v3327
  %4260 = vmatprep.subr.mxu0 0.0
  %4261 = vmatpush1.msra.mxu0 %v3326
  %4262 = vmatprep.subr.mxu0 0.0
  %4263 = vmatpush1.msra.mxu0 %v3325
  %4264 = vmatprep.subr.mxu0 0.0
  %4265 = vmatpush1.msra.mxu0 %v3324
  %4266 = vmatprep.subr.mxu0 0.0
  %4267 = vmatpush1.msra.mxu0 %v3323
  %4268 = vmatprep.subr.mxu0 0.0
  %4269 = vmatpush1.msra.mxu0 %v3322
  %4270 = vmatprep.subr.mxu0 0.0
  %4271 = vmatpush1.msra.mxu0 %v3321
  %4272 = vmatprep.subr.mxu0 0.0
  %4273 = vmatpush2.msra.mxu0 0.0
  %4274 = vmatprep.subr.mxu0 0.0
  %4275 = vmatpush2.msra.mxu0 0.0
  %4276 = vmatprep.subr.mxu0 0.0
  %4277 = vmatpush2.msra.mxu0 0.0
  %4278 = vmatprep.subr.mxu0 0.0
  %4279 = vmatpush2.msra.mxu0 0.0
  %4280 = vmatprep.subr.mxu0 0.0
  %4281 = vmatpush2.msra.mxu0 0.0
  %4282 = vmatprep.subr.mxu0 0.0
  %4283 = vmatpush2.msra.mxu0 0.0
  %4284 = vmatprep.subr.mxu0 0.0
  %4285 = vmatpush2.msra.mxu0 0.0
  %4286 = vmatprep.subr.mxu0 0.0
  %4287 = vmatpush2.msra.mxu0 0.0
  %4288 = vmatprep.subr.mxu0 0.0
  %4289 = vmatpush2.msra.mxu0 0.0
  %4290 = vmatprep.subr.mxu0 0.0
  %4291 = vmatpush2.msra.mxu0 0.0
  %4292 = vmatprep.subr.mxu0 0.0
  %4293 = vmatpush2.msra.mxu0 0.0
  %4294 = vmatprep.subr.mxu0 0.0
  %4295 = vmatpush2.msra.mxu0 0.0
  %4296 = vmatprep.subr.mxu0 0.0
  %4297 = vmatpush2.msra.mxu0 %v3358
  %4298 = vmatprep.subr.mxu0 0.0
  %4299 = vmatpush2.msra.mxu0 %v3339
  %4300 = vmatprep.subr.mxu0 0.0
  %4301 = vmatpush2.msra.mxu0 %v3338
  %4302 = vmatprep.subr.mxu0 0.0
  %4303 = vmatpush2.msra.mxu0 %v3337
  %4304 = vmatprep.mubr.f32.mxu0 %v4238
  %4305 = vmatmul.mubr.f32.gmra.mxu0 %v4235
  %v4306 = vpop.f32.mrf.mxu0
  %v4307 = vadd.f32 0.0, %v4306
  %v4308 = vpop.f32.mrf.mxu0
  %4309 = vdwg.mxu0
  %v4310 = vadd.s32 %v3346, 12
  %vm4311 = vcmp.eq.s32.totalorder %v3344, %v4310
  %vm4312 = vcmp.eq.s32.totalorder %v3345, %v4310
  %v4313 = vsel %vm4311, 1, 0
  %v4314 = vsel %vm4312, 1, 0
  %v4315 = vcvt.s32.f32 %v4313
  %v4316 = vcvt.s32.f32 %v4314
  %v4318 = vsel %vm3353, %v4316, 0
  %4320 = vmatprep.subr.mxu0 0.0
  %4321 = vmatpush1.msra.mxu0 %v3336
  %4322 = vmatprep.subr.mxu0 0.0
  %4323 = vmatpush1.msra.mxu0 %v3335
  %4324 = vmatprep.subr.mxu0 0.0
  %4325 = vmatpush1.msra.mxu0 %v3334
  %4326 = vmatprep.subr.mxu0 0.0
  %4327 = vmatpush1.msra.mxu0 %v3333
  %4328 = vmatprep.subr.mxu0 0.0
  %4329 = vmatpush1.msra.mxu0 %v3332
  %4330 = vmatprep.subr.mxu0 0.0
  %4331 = vmatpush1.msra.mxu0 %v3331
  %4332 = vmatprep.subr.mxu0 0.0
  %4333 = vmatpush1.msra.mxu0 %v3330
  %4334 = vmatprep.subr.mxu0 0.0
  %4335 = vmatpush1.msra.mxu0 %v3329
  %4336 = vmatprep.subr.mxu0 0.0
  %4337 = vmatpush1.msra.mxu0 %v3328
  %4338 = vmatprep.subr.mxu0 0.0
  %4339 = vmatpush1.msra.mxu0 %v3327
  %4340 = vmatprep.subr.mxu0 0.0
  %4341 = vmatpush1.msra.mxu0 %v3326
  %4342 = vmatprep.subr.mxu0 0.0
  %4343 = vmatpush1.msra.mxu0 %v3325
  %4344 = vmatprep.subr.mxu0 0.0
  %4345 = vmatpush1.msra.mxu0 %v3324
  %4346 = vmatprep.subr.mxu0 0.0
  %4347 = vmatpush1.msra.mxu0 %v3323
  %4348 = vmatprep.subr.mxu0 0.0
  %4349 = vmatpush1.msra.mxu0 %v3322
  %4350 = vmatprep.subr.mxu0 0.0
  %4351 = vmatpush1.msra.mxu0 %v3321
  %4352 = vmatprep.subr.mxu0 0.0
  %4353 = vmatpush2.msra.mxu0 0.0
  %4354 = vmatprep.subr.mxu0 0.0
  %4355 = vmatpush2.msra.mxu0 0.0
  %4356 = vmatprep.subr.mxu0 0.0
  %4357 = vmatpush2.msra.mxu0 0.0
  %4358 = vmatprep.subr.mxu0 0.0
  %4359 = vmatpush2.msra.mxu0 0.0
  %4360 = vmatprep.subr.mxu0 0.0
  %4361 = vmatpush2.msra.mxu0 0.0
  %4362 = vmatprep.subr.mxu0 0.0
  %4363 = vmatpush2.msra.mxu0 0.0
  %4364 = vmatprep.subr.mxu0 0.0
  %4365 = vmatpush2.msra.mxu0 0.0
  %4366 = vmatprep.subr.mxu0 0.0
  %4367 = vmatpush2.msra.mxu0 0.0
  %4368 = vmatprep.subr.mxu0 0.0
  %4369 = vmatpush2.msra.mxu0 0.0
  %4370 = vmatprep.subr.mxu0 0.0
  %4371 = vmatpush2.msra.mxu0 0.0
  %4372 = vmatprep.subr.mxu0 0.0
  %4373 = vmatpush2.msra.mxu0 0.0
  %4374 = vmatprep.subr.mxu0 0.0
  %4375 = vmatpush2.msra.mxu0 0.0
  %4376 = vmatprep.subr.mxu0 0.0
  %4377 = vmatpush2.msra.mxu0 %v3358
  %4378 = vmatprep.subr.mxu0 0.0
  %4379 = vmatpush2.msra.mxu0 %v3339
  %4380 = vmatprep.subr.mxu0 0.0
  %4381 = vmatpush2.msra.mxu0 %v3338
  %4382 = vmatprep.subr.mxu0 0.0
  %4383 = vmatpush2.msra.mxu0 %v3337
  %4384 = vmatprep.mubr.f32.mxu0 %v4318
  %4385 = vmatmul.mubr.f32.gmra.mxu0 %v4315
  %v4386 = vpop.f32.mrf.mxu0
  %v4387 = vadd.f32 0.0, %v4386
  %v4388 = vpop.f32.mrf.mxu0
  %4389 = vdwg.mxu0
  %v4390 = vadd.s32 %v3346, 13
  %vm4391 = vcmp.eq.s32.totalorder %v3344, %v4390
  %vm4392 = vcmp.eq.s32.totalorder %v3345, %v4390
  %v4393 = vsel %vm4391, 1, 0
  %v4394 = vsel %vm4392, 1, 0
  %v4395 = vcvt.s32.f32 %v4393
  %v4396 = vcvt.s32.f32 %v4394
  %v4398 = vsel %vm3353, %v4396, 0
  %4400 = vmatprep.subr.mxu0 0.0
  %4401 = vmatpush1.msra.mxu0 %v3336
  %4402 = vmatprep.subr.mxu0 0.0
  %4403 = vmatpush1.msra.mxu0 %v3335
  %4404 = vmatprep.subr.mxu0 0.0
  %4405 = vmatpush1.msra.mxu0 %v3334
  %4406 = vmatprep.subr.mxu0 0.0
  %4407 = vmatpush1.msra.mxu0 %v3333
  %4408 = vmatprep.subr.mxu0 0.0
  %4409 = vmatpush1.msra.mxu0 %v3332
  %4410 = vmatprep.subr.mxu0 0.0
  %4411 = vmatpush1.msra.mxu0 %v3331
  %4412 = vmatprep.subr.mxu0 0.0
  %4413 = vmatpush1.msra.mxu0 %v3330
  %4414 = vmatprep.subr.mxu0 0.0
  %4415 = vmatpush1.msra.mxu0 %v3329
  %4416 = vmatprep.subr.mxu0 0.0
  %4417 = vmatpush1.msra.mxu0 %v3328
  %4418 = vmatprep.subr.mxu0 0.0
  %4419 = vmatpush1.msra.mxu0 %v3327
  %4420 = vmatprep.subr.mxu0 0.0
  %4421 = vmatpush1.msra.mxu0 %v3326
  %4422 = vmatprep.subr.mxu0 0.0
  %4423 = vmatpush1.msra.mxu0 %v3325
  %4424 = vmatprep.subr.mxu0 0.0
  %4425 = vmatpush1.msra.mxu0 %v3324
  %4426 = vmatprep.subr.mxu0 0.0
  %4427 = vmatpush1.msra.mxu0 %v3323
  %4428 = vmatprep.subr.mxu0 0.0
  %4429 = vmatpush1.msra.mxu0 %v3322
  %4430 = vmatprep.subr.mxu0 0.0
  %4431 = vmatpush1.msra.mxu0 %v3321
  %4432 = vmatprep.subr.mxu0 0.0
  %4433 = vmatpush2.msra.mxu0 0.0
  %4434 = vmatprep.subr.mxu0 0.0
  %4435 = vmatpush2.msra.mxu0 0.0
  %4436 = vmatprep.subr.mxu0 0.0
  %4437 = vmatpush2.msra.mxu0 0.0
  %4438 = vmatprep.subr.mxu0 0.0
  %4439 = vmatpush2.msra.mxu0 0.0
  %4440 = vmatprep.subr.mxu0 0.0
  %4441 = vmatpush2.msra.mxu0 0.0
  %4442 = vmatprep.subr.mxu0 0.0
  %4443 = vmatpush2.msra.mxu0 0.0
  %4444 = vmatprep.subr.mxu0 0.0
  %4445 = vmatpush2.msra.mxu0 0.0
  %4446 = vmatprep.subr.mxu0 0.0
  %4447 = vmatpush2.msra.mxu0 0.0
  %4448 = vmatprep.subr.mxu0 0.0
  %4449 = vmatpush2.msra.mxu0 0.0
  %4450 = vmatprep.subr.mxu0 0.0
  %4451 = vmatpush2.msra.mxu0 0.0
  %4452 = vmatprep.subr.mxu0 0.0
  %4453 = vmatpush2.msra.mxu0 0.0
  %4454 = vmatprep.subr.mxu0 0.0
  %4455 = vmatpush2.msra.mxu0 0.0
  %4456 = vmatprep.subr.mxu0 0.0
  %4457 = vmatpush2.msra.mxu0 %v3358
  %4458 = vmatprep.subr.mxu0 0.0
  %4459 = vmatpush2.msra.mxu0 %v3339
  %4460 = vmatprep.subr.mxu0 0.0
  %4461 = vmatpush2.msra.mxu0 %v3338
  %4462 = vmatprep.subr.mxu0 0.0
  %4463 = vmatpush2.msra.mxu0 %v3337
  %4464 = vmatprep.mubr.f32.mxu0 %v4398
  %4465 = vmatmul.mubr.f32.gmra.mxu0 %v4395
  %v4466 = vpop.f32.mrf.mxu0
  %v4467 = vadd.f32 0.0, %v4466
  %v4468 = vpop.f32.mrf.mxu0
  %4469 = vdwg.mxu0
  %v4470 = vpack.c.bf16 %v3427, %v3427
  %v4471 = vpack.c.bf16 %v3507, %v3507
  %v4472 = vpack.c.bf16 %v3587, %v3587
  %v4473 = vpack.c.bf16 %v3667, %v3667
  %v4474 = vpack.c.bf16 %v3747, %v3747
  %v4475 = vpack.c.bf16 %v3827, %v3827
  %v4476 = vpack.c.bf16 %v3907, %v3907
  %v4477 = vpack.c.bf16 %v3987, %v3987
  %v4478 = vpack.c.bf16 %v4067, %v4067
  %v4479 = vpack.c.bf16 %v4147, %v4147
  %v4480 = vpack.c.bf16 %v4227, %v4227
  %v4481 = vpack.c.bf16 %v4307, %v4307
  %v4482 = vpack.c.bf16 %v4387, %v4387
  %v4483 = vpack.c.bf16 %v4467, %v4467
  %v4484 = vld [vmem:[%s7] sm:$0xff]
  %v4485 = vld [vmem:[%s7 + $0x8] sm:$0xff]
  %v4486 = vld [vmem:[%s7 + $0x10] sm:$0xff]
  %v4487 = vld [vmem:[%s7 + $0x18] sm:$0xff]
  %v4488 = vld [vmem:[%s7 + $0x20] sm:$0xff]
  %v4489 = vld [vmem:[%s7 + $0x28] sm:$0xff]
  %v4490 = vld [vmem:[%s7 + $0x30] sm:$0xff]
  %v4491 = vld [vmem:[%s7 + $0x38] sm:$0xff]
  %v4492 = vld [vmem:[%s7 + $0x40] sm:$0xff]
  %v4493 = vld [vmem:[%s7 + $0x48] sm:$0xff]
  %v4494 = vld [vmem:[%s7 + $0x50] sm:$0xff]
  %v4495 = vld [vmem:[%s7 + $0x58] sm:$0xff]
  %v4496 = vld [vmem:[%s7 + $0x60] sm:$0xff]
  %v4497 = vld [vmem:[%s7 + $0x68] sm:$0xff]
  %v4498 = vld [vmem:[%s7 + $0x70] sm:$0xff]
  %v4499 = vld [vmem:[%s7 + $0x78] sm:$0xff]
  %v4500 = vld [vmem:[%s7 + $0x80] sm:$0xff]
  %v4501 = vld [vmem:[%s7 + $0x88] sm:$0xff]
  %v4502 = vld [vmem:[%s7 + $0x90] sm:$0xff]
  %v4503 = vld [vmem:[%s7 + $0x98] sm:$0xff]
  %v4504 = vld [vmem:[%s7 + $0xa0] sm:$0xff]
  %v4505 = vld [vmem:[%s7 + $0xa8] sm:$0xff]
  %v4506 = vld [vmem:[%s7 + $0xb0] sm:$0xff]
  %v4507 = vld [vmem:[%s7 + $0xb8] sm:$0xff]
  %v4508 = vld [vmem:[%s7 + $0xc0] sm:$0xff]
  %v4509 = vld [vmem:[%s7 + $0xc8] sm:$0xff]
  %v4510 = vld [vmem:[%s7 + $0xd0] sm:$0xff]
  %v4511 = vld [vmem:[%s7 + $0xd8] sm:$0xff]
  %v4512 = vld [vmem:[%s7 + $0xe0] sm:$0xff]
  %v4513 = vld [vmem:[%s7 + $0xe8] sm:$0xff]
  %v4514 = vld [vmem:[%s7 + $0xf0] sm:$0xff]
  %v4515 = vld [vmem:[%s7 + $0xf8] sm:$0xff]
  %v4516 = vld [vmem:[%s7 + $0x100] sm:$0xff]
  %v4517 = vld [vmem:[%s7 + $0x108] sm:$0xff]
  %v4518 = vld [vmem:[%s7 + $0x110] sm:$0xff]
  %v4519 = vld [vmem:[%s7 + $0x118] sm:$0xff]
  %v4520 = vld [vmem:[%s7 + $0x120] sm:$0xff]
  %v4521 = vld [vmem:[%s7 + $0x128] sm:$0xff]
  %v4522 = vld [vmem:[%s7 + $0x130] sm:$0xff]
  %v4523 = vld [vmem:[%s7 + $0x138] sm:$0xff]
  %v4524 = vld [vmem:[%s7 + $0x140] sm:$0xff]
  %v4525 = vld [vmem:[%s7 + $0x148] sm:$0xff]
  %v4526 = vld [vmem:[%s7 + $0x150] sm:$0xff]
  %v4527 = vld [vmem:[%s7 + $0x158] sm:$0xff]
  %v4528 = vld [vmem:[%s7 + $0x160] sm:$0xff]
  %v4529 = vld [vmem:[%s7 + $0x168] sm:$0xff]
  %v4530 = vld [vmem:[%s7 + $0x170] sm:$0xff]
  %v4531 = vld [vmem:[%s7 + $0x178] sm:$0xff]
  %v4532 = vld [vmem:[%s7 + $0x180] sm:$0xff]
  %v4533 = vld [vmem:[%s7 + $0x188] sm:$0xff]
  %v4534 = vld [vmem:[%s7 + $0x190] sm:$0xff]
  %v4535 = vld [vmem:[%s7 + $0x198] sm:$0xff]
  %v4536 = vld [vmem:[%s7 + $0x1a0] sm:$0xff]
  %v4537 = vld [vmem:[%s7 + $0x1a8] sm:$0xff]
  %v4538 = vld [vmem:[%s7 + $0x1b0] sm:$0xff]
  %v4539 = vld [vmem:[%s7 + $0x1b8] sm:$0xff]
  %v4540 = vld [vmem:[%s7 + $0x1c0] sm:$0xff]
  %v4541 = vld [vmem:[%s7 + $0x1c8] sm:$0xff]
  %v4542 = vld [vmem:[%s7 + $0x1d0] sm:$0xff]
  %v4543 = vld [vmem:[%s7 + $0x1d8] sm:$0xff]
  %v4544 = vld [vmem:[%s7 + $0x1e0] sm:$0xff]
  %v4545 = vld [vmem:[%s7 + $0x1e8] sm:$0xff]
  %v4546 = vld [vmem:[%s7 + $0x1f0] sm:$0xff]
  %v4547 = vld [vmem:[%s7 + $0x1f8] sm:$0xff]
  %v4548 = vld [vmem:[%s7 + $0x200] sm:$0xff]
  %v4549 = vld [vmem:[%s7 + $0x208] sm:$0xff]
  %v4550 = vld [vmem:[%s7 + $0x210] sm:$0xff]
  %v4551 = vld [vmem:[%s7 + $0x218] sm:$0xff]
  %v4552 = vld [vmem:[%s7 + $0x220] sm:$0xff]
  %v4553 = vld [vmem:[%s7 + $0x228] sm:$0xff]
  %v4554 = vld [vmem:[%s7 + $0x230] sm:$0xff]
  %v4555 = vld [vmem:[%s7 + $0x238] sm:$0xff]
  %v4556 = vld [vmem:[%s7 + $0x240] sm:$0xff]
  %v4557 = vld [vmem:[%s7 + $0x248] sm:$0xff]
  %v4558 = vld [vmem:[%s7 + $0x250] sm:$0xff]
  %v4559 = vld [vmem:[%s7 + $0x258] sm:$0xff]
  %v4560 = vld [vmem:[%s7 + $0x260] sm:$0xff]
  %v4561 = vld [vmem:[%s7 + $0x268] sm:$0xff]
  %v4562 = vld [vmem:[%s7 + $0x270] sm:$0xff]
  %v4563 = vld [vmem:[%s7 + $0x278] sm:$0xff]
  %v4564 = vld [vmem:[%s7 + $0x280] sm:$0xff]
  %v4565 = vld [vmem:[%s7 + $0x288] sm:$0xff]
  %v4566 = vld [vmem:[%s7 + $0x290] sm:$0xff]
  %v4567 = vld [vmem:[%s7 + $0x298] sm:$0xff]
  %v4568 = vld [vmem:[%s7 + $0x2a0] sm:$0xff]
  %v4569 = vld [vmem:[%s7 + $0x2a8] sm:$0xff]
  %v4570 = vld [vmem:[%s7 + $0x2b0] sm:$0xff]
  %v4571 = vld [vmem:[%s7 + $0x2b8] sm:$0xff]
  %v4572 = vld [vmem:[%s7 + $0x2c0] sm:$0xff]
  %v4573 = vld [vmem:[%s7 + $0x2c8] sm:$0xff]
  %v4574 = vld [vmem:[%s7 + $0x2d0] sm:$0xff]
  %v4575 = vld [vmem:[%s7 + $0x2d8] sm:$0xff]
  %v4576 = vld [vmem:[%s7 + $0x2e0] sm:$0xff]
  %v4577 = vld [vmem:[%s7 + $0x2e8] sm:$0xff]
  %v4578 = vld [vmem:[%s7 + $0x2f0] sm:$0xff]
  %v4579 = vld [vmem:[%s7 + $0x2f8] sm:$0xff]
  %v4580 = vld [vmem:[%s7 + $0x300] sm:$0xff]
  %v4581 = vld [vmem:[%s7 + $0x308] sm:$0xff]
  %v4582 = vld [vmem:[%s7 + $0x310] sm:$0xff]
  %v4583 = vld [vmem:[%s7 + $0x318] sm:$0xff]
  %v4584 = vld [vmem:[%s7 + $0x320] sm:$0xff]
  %v4585 = vld [vmem:[%s7 + $0x328] sm:$0xff]
  %v4586 = vld [vmem:[%s7 + $0x330] sm:$0xff]
  %v4587 = vld [vmem:[%s7 + $0x338] sm:$0xff]
  %v4588 = vld [vmem:[%s7 + $0x340] sm:$0xff]
  %v4589 = vld [vmem:[%s7 + $0x348] sm:$0xff]
  %v4590 = vld [vmem:[%s7 + $0x350] sm:$0xff]
  %v4591 = vld [vmem:[%s7 + $0x358] sm:$0xff]
  %v4592 = vld [vmem:[%s7 + $0x360] sm:$0xff]
  %v4593 = vld [vmem:[%s7 + $0x368] sm:$0xff]
  %v4594 = vld [vmem:[%s7 + $0x370] sm:$0xff]
  %v4595 = vld [vmem:[%s7 + $0x378] sm:$0xff]
  %v4596 = vld [vmem:[%s7 + $0x380] sm:$0xff]
  %v4597 = vld [vmem:[%s7 + $0x388] sm:$0xff]
  %v4598 = vld [vmem:[%s7 + $0x390] sm:$0xff]
  %v4599 = vld [vmem:[%s7 + $0x398] sm:$0xff]
  %v4600 = vld [vmem:[%s7 + $0x3a0] sm:$0xff]
  %v4601 = vld [vmem:[%s7 + $0x3a8] sm:$0xff]
  %v4602 = vld [vmem:[%s7 + $0x3b0] sm:$0xff]
  %v4603 = vld [vmem:[%s7 + $0x3b8] sm:$0xff]
  %v4604 = vld [vmem:[%s7 + $0x3c0] sm:$0xff]
  %v4605 = vld [vmem:[%s7 + $0x3c8] sm:$0xff]
  %v4606 = vld [vmem:[%s7 + $0x3d0] sm:$0xff]
  %v4607 = vld [vmem:[%s7 + $0x3d8] sm:$0xff]
  %v4608 = vld [vmem:[%s7 + $0x3e0] sm:$0xff]
  %v4609 = vld [vmem:[%s7 + $0x3e8] sm:$0xff]
  %v4610 = vld [vmem:[%s7 + $0x3f0] sm:$0xff]
  %v4611 = vld [vmem:[%s7 + $0x3f8] sm:$0xff]
  %v4612 = vld [vmem:[%s7 + $0x400] sm:$0xff]
  %v4613 = vld [vmem:[%s7 + $0x408] sm:$0xff]
  %v4614 = vld [vmem:[%s7 + $0x410] sm:$0xff]
  %v4615 = vld [vmem:[%s7 + $0x418] sm:$0xff]
  %v4616 = vld [vmem:[%s7 + $0x420] sm:$0xff]
  %v4617 = vld [vmem:[%s7 + $0x428] sm:$0xff]
  %v4618 = vld [vmem:[%s7 + $0x430] sm:$0xff]
  %v4619 = vld [vmem:[%s7 + $0x438] sm:$0xff]
  %v4620 = vld [vmem:[%s7 + $0x440] sm:$0xff]
  %v4621 = vld [vmem:[%s7 + $0x448] sm:$0xff]
  %v4622 = vld [vmem:[%s7 + $0x450] sm:$0xff]
  %v4623 = vld [vmem:[%s7 + $0x458] sm:$0xff]
  %v4624 = vld [vmem:[%s7 + $0x460] sm:$0xff]
  %v4625 = vld [vmem:[%s7 + $0x468] sm:$0xff]
  %v4626 = vld [vmem:[%s7 + $0x470] sm:$0xff]
  %v4627 = vld [vmem:[%s7 + $0x478] sm:$0xff]
  %v4628 = vld [vmem:[%s7 + $0x480] sm:$0xff]
  %v4629 = vld [vmem:[%s7 + $0x488] sm:$0xff]
  %v4630 = vld [vmem:[%s7 + $0x490] sm:$0xff]
  %v4631 = vld [vmem:[%s7 + $0x498] sm:$0xff]
  %v4632 = vld [vmem:[%s7 + $0x4a0] sm:$0xff]
  %v4633 = vld [vmem:[%s7 + $0x4a8] sm:$0xff]
  %v4634 = vld [vmem:[%s7 + $0x4b0] sm:$0xff]
  %v4635 = vld [vmem:[%s7 + $0x4b8] sm:$0xff]
  %v4636 = vld [vmem:[%s7 + $0x4c0] sm:$0xff]
  %v4637 = vld [vmem:[%s7 + $0x4c8] sm:$0xff]
  %v4638 = vld [vmem:[%s7 + $0x4d0] sm:$0xff]
  %v4639 = vld [vmem:[%s7 + $0x4d8] sm:$0xff]
  %v4640 = vld [vmem:[%s7 + $0x4e0] sm:$0xff]
  %v4641 = vld [vmem:[%s7 + $0x4e8] sm:$0xff]
  %v4642 = vld [vmem:[%s7 + $0x4f0] sm:$0xff]
  %v4643 = vld [vmem:[%s7 + $0x4f8] sm:$0xff]
  %v4644 = vld [vmem:[%s7 + $0x500] sm:$0xff]
  %v4645 = vld [vmem:[%s7 + $0x508] sm:$0xff]
  %v4646 = vld [vmem:[%s7 + $0x510] sm:$0xff]
  %v4647 = vld [vmem:[%s7 + $0x518] sm:$0xff]
  %v4648 = vld [vmem:[%s7 + $0x520] sm:$0xff]
  %v4649 = vld [vmem:[%s7 + $0x528] sm:$0xff]
  %v4650 = vld [vmem:[%s7 + $0x530] sm:$0xff]
  %v4651 = vld [vmem:[%s7 + $0x538] sm:$0xff]
  %v4652 = vld [vmem:[%s7 + $0x540] sm:$0xff]
  %v4653 = vld [vmem:[%s7 + $0x548] sm:$0xff]
  %v4654 = vld [vmem:[%s7 + $0x550] sm:$0xff]
  %v4655 = vld [vmem:[%s7 + $0x558] sm:$0xff]
  %v4656 = vld [vmem:[%s7 + $0x560] sm:$0xff]
  %v4657 = vld [vmem:[%s7 + $0x568] sm:$0xff]
  %v4658 = vld [vmem:[%s7 + $0x570] sm:$0xff]
  %v4659 = vld [vmem:[%s7 + $0x578] sm:$0xff]
  %v4660 = vld [vmem:[%s7 + $0x580] sm:$0xff]
  %v4661 = vld [vmem:[%s7 + $0x588] sm:$0xff]
  %v4662 = vld [vmem:[%s7 + $0x590] sm:$0xff]
  %v4663 = vld [vmem:[%s7 + $0x598] sm:$0xff]
  %v4664 = vld [vmem:[%s7 + $0x5a0] sm:$0xff]
  %v4665 = vld [vmem:[%s7 + $0x5a8] sm:$0xff]
  %v4666 = vld [vmem:[%s7 + $0x5b0] sm:$0xff]
  %v4667 = vld [vmem:[%s7 + $0x5b8] sm:$0xff]
  %v4668 = vld [vmem:[%s7 + $0x5c0] sm:$0xff]
  %v4669 = vld [vmem:[%s7 + $0x5c8] sm:$0xff]
  %v4670 = vld [vmem:[%s7 + $0x5d0] sm:$0xff]
  %v4671 = vld [vmem:[%s7 + $0x5d8] sm:$0xff]
  %v4672 = vld [vmem:[%s7 + $0x5e0] sm:$0xff]
  %v4673 = vld [vmem:[%s7 + $0x5e8] sm:$0xff]
  %v4674 = vld [vmem:[%s7 + $0x5f0] sm:$0xff]
  %v4675 = vld [vmem:[%s7 + $0x5f8] sm:$0xff]
  %v4676 = vld [vmem:[%s7 + $0x600] sm:$0xff]
  %v4677 = vld [vmem:[%s7 + $0x608] sm:$0xff]
  %v4678 = vld [vmem:[%s7 + $0x610] sm:$0xff]
  %v4679 = vld [vmem:[%s7 + $0x618] sm:$0xff]
  %v4680 = vld [vmem:[%s7 + $0x620] sm:$0xff]
  %v4681 = vld [vmem:[%s7 + $0x628] sm:$0xff]
  %v4682 = vld [vmem:[%s7 + $0x630] sm:$0xff]
  %v4683 = vld [vmem:[%s7 + $0x638] sm:$0xff]
  %v4684 = vld [vmem:[%s7 + $0x640] sm:$0xff]
  %v4685 = vld [vmem:[%s7 + $0x648] sm:$0xff]
  %v4686 = vld [vmem:[%s7 + $0x650] sm:$0xff]
  %v4687 = vld [vmem:[%s7 + $0x658] sm:$0xff]
  %v4688 = vld [vmem:[%s7 + $0x660] sm:$0xff]
  %v4689 = vld [vmem:[%s7 + $0x668] sm:$0xff]
  %v4690 = vld [vmem:[%s7 + $0x670] sm:$0xff]
  %v4691 = vld [vmem:[%s7 + $0x678] sm:$0xff]
  %v4692 = vld [vmem:[%s7 + $0x680] sm:$0xff]
  %v4693 = vld [vmem:[%s7 + $0x688] sm:$0xff]
  %v4694 = vld [vmem:[%s7 + $0x690] sm:$0xff]
  %v4695 = vld [vmem:[%s7 + $0x698] sm:$0xff]
  %v4696 = vld [vmem:[%s7 + $0x6a0] sm:$0xff]
  %v4697 = vld [vmem:[%s7 + $0x6a8] sm:$0xff]
  %v4698 = vld [vmem:[%s7 + $0x6b0] sm:$0xff]
  %v4699 = vld [vmem:[%s7 + $0x6b8] sm:$0xff]
  %v4700 = vld [vmem:[%s7 + $0x6c0] sm:$0xff]
  %v4701 = vld [vmem:[%s7 + $0x6c8] sm:$0xff]
  %v4702 = vld [vmem:[%s7 + $0x6d0] sm:$0xff]
  %v4703 = vld [vmem:[%s7 + $0x6d8] sm:$0xff]
  %v4704 = vld [vmem:[%s7 + $0x6e0] sm:$0xff]
  %v4705 = vld [vmem:[%s7 + $0x6e8] sm:$0xff]
  %v4706 = vld [vmem:[%s7 + $0x6f0] sm:$0xff]
  %v4707 = vld [vmem:[%s7 + $0x6f8] sm:$0xff]
  %v4708 = vld [vmem:[%s8] sm:$0x3]
  %v4710 = vlaneseq
  %v4711 = vshrl.u32 %v4710, 7
  %v4712 = vsub.s32 0, %v4711
  %v4713 = vrot.slane %v4708, %v4712
  %v4714 = vlaneseq
  %v4715 = vshrl.u32 %v4714, 7
  %v4716 = vsub.s32 1, %v4715
  %v4717 = vrot.slane %v4708, %v4716
  %v4944 = vunpack.c.l.b16 %v4484
  %v4945 = vunpack.c.h.b16 %v4484
  %v4946 = vunpack.c.l.b16 %v4485
  %v4947 = vunpack.c.h.b16 %v4485
  %v4948 = vunpack.c.l.b16 %v4486
  %v4949 = vunpack.c.h.b16 %v4486
  %v4950 = vunpack.c.l.b16 %v4487
  %v4951 = vunpack.c.h.b16 %v4487
  %v4952 = vunpack.c.l.b16 %v4488
  %v4953 = vunpack.c.h.b16 %v4488
  %v4954 = vunpack.c.l.b16 %v4489
  %v4955 = vunpack.c.h.b16 %v4489
  %v4956 = vunpack.c.l.b16 %v4490
  %v4957 = vunpack.c.h.b16 %v4490
  %v4958 = vunpack.c.l.b16 %v4491
  %v4959 = vunpack.c.h.b16 %v4491
  %v4960 = vunpack.c.l.b16 %v4492
  %v4961 = vunpack.c.h.b16 %v4492
  %v4962 = vunpack.c.l.b16 %v4493
  %v4963 = vunpack.c.h.b16 %v4493
  %v4964 = vunpack.c.l.b16 %v4494
  %v4965 = vunpack.c.h.b16 %v4494
  %v4966 = vunpack.c.l.b16 %v4495
  %v4967 = vunpack.c.h.b16 %v4495
  %v4968 = vunpack.c.l.b16 %v4496
  %v4969 = vunpack.c.h.b16 %v4496
  %v4970 = vunpack.c.l.b16 %v4497
  %v4971 = vunpack.c.h.b16 %v4497
  %v4972 = vunpack.c.l.b16 %v4498
  %v4973 = vunpack.c.h.b16 %v4498
  %v4974 = vunpack.c.l.b16 %v4499
  %v4975 = vunpack.c.h.b16 %v4499
  %v4976 = vunpack.c.l.b16 %v4500
  %v4977 = vunpack.c.h.b16 %v4500
  %v4978 = vunpack.c.l.b16 %v4501
  %v4979 = vunpack.c.h.b16 %v4501
  %v4980 = vunpack.c.l.b16 %v4502
  %v4981 = vunpack.c.h.b16 %v4502
  %v4982 = vunpack.c.l.b16 %v4503
  %v4983 = vunpack.c.h.b16 %v4503
  %v4984 = vunpack.c.l.b16 %v4504
  %v4985 = vunpack.c.h.b16 %v4504
  %v4986 = vunpack.c.l.b16 %v4505
  %v4987 = vunpack.c.h.b16 %v4505
  %v4988 = vunpack.c.l.b16 %v4506
  %v4989 = vunpack.c.h.b16 %v4506
  %v4990 = vunpack.c.l.b16 %v4507
  %v4991 = vunpack.c.h.b16 %v4507
  %v4992 = vunpack.c.l.b16 %v4508
  %v4993 = vunpack.c.h.b16 %v4508
  %v4994 = vunpack.c.l.b16 %v4509
  %v4995 = vunpack.c.h.b16 %v4509
  %v4996 = vunpack.c.l.b16 %v4510
  %v4997 = vunpack.c.h.b16 %v4510
  %v4998 = vunpack.c.l.b16 %v4511
  %v4999 = vunpack.c.h.b16 %v4511
  %v5000 = vunpack.c.l.b16 %v4512
  %v5001 = vunpack.c.h.b16 %v4512
  %v5002 = vunpack.c.l.b16 %v4513
  %v5003 = vunpack.c.h.b16 %v4513
  %v5004 = vunpack.c.l.b16 %v4514
  %v5005 = vunpack.c.h.b16 %v4514
  %v5006 = vunpack.c.l.b16 %v4515
  %v5007 = vunpack.c.h.b16 %v4515
  %v5008 = vunpack.c.l.b16 %v4516
  %v5009 = vunpack.c.h.b16 %v4516
  %v5010 = vunpack.c.l.b16 %v4517
  %v5011 = vunpack.c.h.b16 %v4517
  %v5012 = vunpack.c.l.b16 %v4518
  %v5013 = vunpack.c.h.b16 %v4518
  %v5014 = vunpack.c.l.b16 %v4519
  %v5015 = vunpack.c.h.b16 %v4519
  %v5016 = vunpack.c.l.b16 %v4520
  %v5017 = vunpack.c.h.b16 %v4520
  %v5018 = vunpack.c.l.b16 %v4521
  %v5019 = vunpack.c.h.b16 %v4521
  %v5020 = vunpack.c.l.b16 %v4522
  %v5021 = vunpack.c.h.b16 %v4522
  %v5022 = vunpack.c.l.b16 %v4523
  %v5023 = vunpack.c.h.b16 %v4523
  %v5024 = vunpack.c.l.b16 %v4524
  %v5025 = vunpack.c.h.b16 %v4524
  %v5026 = vunpack.c.l.b16 %v4525
  %v5027 = vunpack.c.h.b16 %v4525
  %v5028 = vunpack.c.l.b16 %v4526
  %v5029 = vunpack.c.h.b16 %v4526
  %v5030 = vunpack.c.l.b16 %v4527
  %v5031 = vunpack.c.h.b16 %v4527
  %v5032 = vunpack.c.l.b16 %v4528
  %v5033 = vunpack.c.h.b16 %v4528
  %v5034 = vunpack.c.l.b16 %v4529
  %v5035 = vunpack.c.h.b16 %v4529
  %v5036 = vunpack.c.l.b16 %v4530
  %v5037 = vunpack.c.h.b16 %v4530
  %v5038 = vunpack.c.l.b16 %v4531
  %v5039 = vunpack.c.h.b16 %v4531
  %v5040 = vunpack.c.l.b16 %v4532
  %v5041 = vunpack.c.h.b16 %v4532
  %v5042 = vunpack.c.l.b16 %v4533
  %v5043 = vunpack.c.h.b16 %v4533
  %v5044 = vunpack.c.l.b16 %v4534
  %v5045 = vunpack.c.h.b16 %v4534
  %v5046 = vunpack.c.l.b16 %v4535
  %v5047 = vunpack.c.h.b16 %v4535
  %v5048 = vunpack.c.l.b16 %v4536
  %v5049 = vunpack.c.h.b16 %v4536
  %v5050 = vunpack.c.l.b16 %v4537
  %v5051 = vunpack.c.h.b16 %v4537
  %v5052 = vunpack.c.l.b16 %v4538
  %v5053 = vunpack.c.h.b16 %v4538
  %v5054 = vunpack.c.l.b16 %v4539
  %v5055 = vunpack.c.h.b16 %v4539
  %v5056 = vunpack.c.l.b16 %v4540
  %v5057 = vunpack.c.h.b16 %v4540
  %v5058 = vunpack.c.l.b16 %v4541
  %v5059 = vunpack.c.h.b16 %v4541
  %v5060 = vunpack.c.l.b16 %v4542
  %v5061 = vunpack.c.h.b16 %v4542
  %v5062 = vunpack.c.l.b16 %v4543
  %v5063 = vunpack.c.h.b16 %v4543
  %v5064 = vunpack.c.l.b16 %v4544
  %v5065 = vunpack.c.h.b16 %v4544
  %v5066 = vunpack.c.l.b16 %v4545
  %v5067 = vunpack.c.h.b16 %v4545
  %v5068 = vunpack.c.l.b16 %v4546
  %v5069 = vunpack.c.h.b16 %v4546
  %v5070 = vunpack.c.l.b16 %v4547
  %v5071 = vunpack.c.h.b16 %v4547
  %v5072 = vunpack.c.l.b16 %v4548
  %v5073 = vunpack.c.h.b16 %v4548
  %v5074 = vunpack.c.l.b16 %v4549
  %v5075 = vunpack.c.h.b16 %v4549
  %v5076 = vunpack.c.l.b16 %v4550
  %v5077 = vunpack.c.h.b16 %v4550
  %v5078 = vunpack.c.l.b16 %v4551
  %v5079 = vunpack.c.h.b16 %v4551
  %v5080 = vunpack.c.l.b16 %v4552
  %v5081 = vunpack.c.h.b16 %v4552
  %v5082 = vunpack.c.l.b16 %v4553
  %v5083 = vunpack.c.h.b16 %v4553
  %v5084 = vunpack.c.l.b16 %v4554
  %v5085 = vunpack.c.h.b16 %v4554
  %v5086 = vunpack.c.l.b16 %v4555
  %v5087 = vunpack.c.h.b16 %v4555
  %v5088 = vunpack.c.l.b16 %v4556
  %v5089 = vunpack.c.h.b16 %v4556
  %v5090 = vunpack.c.l.b16 %v4557
  %v5091 = vunpack.c.h.b16 %v4557
  %v5092 = vunpack.c.l.b16 %v4558
  %v5093 = vunpack.c.h.b16 %v4558
  %v5094 = vunpack.c.l.b16 %v4559
  %v5095 = vunpack.c.h.b16 %v4559
  %v5096 = vunpack.c.l.b16 %v4560
  %v5097 = vunpack.c.h.b16 %v4560
  %v5098 = vunpack.c.l.b16 %v4561
  %v5099 = vunpack.c.h.b16 %v4561
  %v5100 = vunpack.c.l.b16 %v4562
  %v5101 = vunpack.c.h.b16 %v4562
  %v5102 = vunpack.c.l.b16 %v4563
  %v5103 = vunpack.c.h.b16 %v4563
  %v5104 = vunpack.c.l.b16 %v4564
  %v5105 = vunpack.c.h.b16 %v4564
  %v5106 = vunpack.c.l.b16 %v4565
  %v5107 = vunpack.c.h.b16 %v4565
  %v5108 = vunpack.c.l.b16 %v4566
  %v5109 = vunpack.c.h.b16 %v4566
  %v5110 = vunpack.c.l.b16 %v4567
  %v5111 = vunpack.c.h.b16 %v4567
  %v5112 = vunpack.c.l.b16 %v4568
  %v5113 = vunpack.c.h.b16 %v4568
  %v5114 = vunpack.c.l.b16 %v4569
  %v5115 = vunpack.c.h.b16 %v4569
  %v5116 = vunpack.c.l.b16 %v4570
  %v5117 = vunpack.c.h.b16 %v4570
  %v5118 = vunpack.c.l.b16 %v4571
  %v5119 = vunpack.c.h.b16 %v4571
  %v5120 = vunpack.c.l.b16 %v4572
  %v5121 = vunpack.c.h.b16 %v4572
  %v5122 = vunpack.c.l.b16 %v4573
  %v5123 = vunpack.c.h.b16 %v4573
  %v5124 = vunpack.c.l.b16 %v4574
  %v5125 = vunpack.c.h.b16 %v4574
  %v5126 = vunpack.c.l.b16 %v4575
  %v5127 = vunpack.c.h.b16 %v4575
  %v5128 = vunpack.c.l.b16 %v4576
  %v5129 = vunpack.c.h.b16 %v4576
  %v5130 = vunpack.c.l.b16 %v4577
  %v5131 = vunpack.c.h.b16 %v4577
  %v5132 = vunpack.c.l.b16 %v4578
  %v5133 = vunpack.c.h.b16 %v4578
  %v5134 = vunpack.c.l.b16 %v4579
  %v5135 = vunpack.c.h.b16 %v4579
  %v5136 = vunpack.c.l.b16 %v4580
  %v5137 = vunpack.c.h.b16 %v4580
  %v5138 = vunpack.c.l.b16 %v4581
  %v5139 = vunpack.c.h.b16 %v4581
  %v5140 = vunpack.c.l.b16 %v4582
  %v5141 = vunpack.c.h.b16 %v4582
  %v5142 = vunpack.c.l.b16 %v4583
  %v5143 = vunpack.c.h.b16 %v4583
  %v5144 = vunpack.c.l.b16 %v4584
  %v5145 = vunpack.c.h.b16 %v4584
  %v5146 = vunpack.c.l.b16 %v4585
  %v5147 = vunpack.c.h.b16 %v4585
  %v5148 = vunpack.c.l.b16 %v4586
  %v5149 = vunpack.c.h.b16 %v4586
  %v5150 = vunpack.c.l.b16 %v4587
  %v5151 = vunpack.c.h.b16 %v4587
  %v5152 = vunpack.c.l.b16 %v4588
  %v5153 = vunpack.c.h.b16 %v4588
  %v5154 = vunpack.c.l.b16 %v4589
  %v5155 = vunpack.c.h.b16 %v4589
  %v5156 = vunpack.c.l.b16 %v4590
  %v5157 = vunpack.c.h.b16 %v4590
  %v5158 = vunpack.c.l.b16 %v4591
  %v5159 = vunpack.c.h.b16 %v4591
  %v5160 = vunpack.c.l.b16 %v4592
  %v5161 = vunpack.c.h.b16 %v4592
  %v5162 = vunpack.c.l.b16 %v4593
  %v5163 = vunpack.c.h.b16 %v4593
  %v5164 = vunpack.c.l.b16 %v4594
  %v5165 = vunpack.c.h.b16 %v4594
  %v5166 = vunpack.c.l.b16 %v4595
  %v5167 = vunpack.c.h.b16 %v4595
  %v5168 = vunpack.c.l.b16 %v4596
  %v5169 = vunpack.c.h.b16 %v4596
  %v5170 = vunpack.c.l.b16 %v4597
  %v5171 = vunpack.c.h.b16 %v4597
  %v5172 = vunpack.c.l.b16 %v4598
  %v5173 = vunpack.c.h.b16 %v4598
  %v5174 = vunpack.c.l.b16 %v4599
  %v5175 = vunpack.c.h.b16 %v4599
  %v5176 = vunpack.c.l.b16 %v4600
  %v5177 = vunpack.c.h.b16 %v4600
  %v5178 = vunpack.c.l.b16 %v4601
  %v5179 = vunpack.c.h.b16 %v4601
  %v5180 = vunpack.c.l.b16 %v4602
  %v5181 = vunpack.c.h.b16 %v4602
  %v5182 = vunpack.c.l.b16 %v4603
  %v5183 = vunpack.c.h.b16 %v4603
  %v5184 = vunpack.c.l.b16 %v4604
  %v5185 = vunpack.c.h.b16 %v4604
  %v5186 = vunpack.c.l.b16 %v4605
  %v5187 = vunpack.c.h.b16 %v4605
  %v5188 = vunpack.c.l.b16 %v4606
  %v5189 = vunpack.c.h.b16 %v4606
  %v5190 = vunpack.c.l.b16 %v4607
  %v5191 = vunpack.c.h.b16 %v4607
  %v5192 = vunpack.c.l.b16 %v4608
  %v5193 = vunpack.c.h.b16 %v4608
  %v5194 = vunpack.c.l.b16 %v4609
  %v5195 = vunpack.c.h.b16 %v4609
  %v5196 = vunpack.c.l.b16 %v4610
  %v5197 = vunpack.c.h.b16 %v4610
  %v5198 = vunpack.c.l.b16 %v4611
  %v5199 = vunpack.c.h.b16 %v4611
  %v5200 = vunpack.c.l.b16 %v4612
  %v5201 = vunpack.c.h.b16 %v4612
  %v5202 = vunpack.c.l.b16 %v4613
  %v5203 = vunpack.c.h.b16 %v4613
  %v5204 = vunpack.c.l.b16 %v4614
  %v5205 = vunpack.c.h.b16 %v4614
  %v5206 = vunpack.c.l.b16 %v4615
  %v5207 = vunpack.c.h.b16 %v4615
  %v5208 = vunpack.c.l.b16 %v4616
  %v5209 = vunpack.c.h.b16 %v4616
  %v5210 = vunpack.c.l.b16 %v4617
  %v5211 = vunpack.c.h.b16 %v4617
  %v5212 = vunpack.c.l.b16 %v4618
  %v5213 = vunpack.c.h.b16 %v4618
  %v5214 = vunpack.c.l.b16 %v4619
  %v5215 = vunpack.c.h.b16 %v4619
  %v5216 = vunpack.c.l.b16 %v4620
  %v5217 = vunpack.c.h.b16 %v4620
  %v5218 = vunpack.c.l.b16 %v4621
  %v5219 = vunpack.c.h.b16 %v4621
  %v5220 = vunpack.c.l.b16 %v4622
  %v5221 = vunpack.c.h.b16 %v4622
  %v5222 = vunpack.c.l.b16 %v4623
  %v5223 = vunpack.c.h.b16 %v4623
  %v5224 = vunpack.c.l.b16 %v4624
  %v5225 = vunpack.c.h.b16 %v4624
  %v5226 = vunpack.c.l.b16 %v4625
  %v5227 = vunpack.c.h.b16 %v4625
  %v5228 = vunpack.c.l.b16 %v4626
  %v5229 = vunpack.c.h.b16 %v4626
  %v5230 = vunpack.c.l.b16 %v4627
  %v5231 = vunpack.c.h.b16 %v4627
  %v5232 = vunpack.c.l.b16 %v4628
  %v5233 = vunpack.c.h.b16 %v4628
  %v5234 = vunpack.c.l.b16 %v4629
  %v5235 = vunpack.c.h.b16 %v4629
  %v5236 = vunpack.c.l.b16 %v4630
  %v5237 = vunpack.c.h.b16 %v4630
  %v5238 = vunpack.c.l.b16 %v4631
  %v5239 = vunpack.c.h.b16 %v4631
  %v5240 = vunpack.c.l.b16 %v4632
  %v5241 = vunpack.c.h.b16 %v4632
  %v5242 = vunpack.c.l.b16 %v4633
  %v5243 = vunpack.c.h.b16 %v4633
  %v5244 = vunpack.c.l.b16 %v4634
  %v5245 = vunpack.c.h.b16 %v4634
  %v5246 = vunpack.c.l.b16 %v4635
  %v5247 = vunpack.c.h.b16 %v4635
  %v5248 = vunpack.c.l.b16 %v4636
  %v5249 = vunpack.c.h.b16 %v4636
  %v5250 = vunpack.c.l.b16 %v4637
  %v5251 = vunpack.c.h.b16 %v4637
  %v5252 = vunpack.c.l.b16 %v4638
  %v5253 = vunpack.c.h.b16 %v4638
  %v5254 = vunpack.c.l.b16 %v4639
  %v5255 = vunpack.c.h.b16 %v4639
  %v5256 = vunpack.c.l.b16 %v4640
  %v5257 = vunpack.c.h.b16 %v4640
  %v5258 = vunpack.c.l.b16 %v4641
  %v5259 = vunpack.c.h.b16 %v4641
  %v5260 = vunpack.c.l.b16 %v4642
  %v5261 = vunpack.c.h.b16 %v4642
  %v5262 = vunpack.c.l.b16 %v4643
  %v5263 = vunpack.c.h.b16 %v4643
  %v5264 = vunpack.c.l.b16 %v4644
  %v5265 = vunpack.c.h.b16 %v4644
  %v5266 = vunpack.c.l.b16 %v4645
  %v5267 = vunpack.c.h.b16 %v4645
  %v5268 = vunpack.c.l.b16 %v4646
  %v5269 = vunpack.c.h.b16 %v4646
  %v5270 = vunpack.c.l.b16 %v4647
  %v5271 = vunpack.c.h.b16 %v4647
  %v5272 = vunpack.c.l.b16 %v4648
  %v5273 = vunpack.c.h.b16 %v4648
  %v5274 = vunpack.c.l.b16 %v4649
  %v5275 = vunpack.c.h.b16 %v4649
  %v5276 = vunpack.c.l.b16 %v4650
  %v5277 = vunpack.c.h.b16 %v4650
  %v5278 = vunpack.c.l.b16 %v4651
  %v5279 = vunpack.c.h.b16 %v4651
  %v5280 = vunpack.c.l.b16 %v4652
  %v5281 = vunpack.c.h.b16 %v4652
  %v5282 = vunpack.c.l.b16 %v4653
  %v5283 = vunpack.c.h.b16 %v4653
  %v5284 = vunpack.c.l.b16 %v4654
  %v5285 = vunpack.c.h.b16 %v4654
  %v5286 = vunpack.c.l.b16 %v4655
  %v5287 = vunpack.c.h.b16 %v4655
  %v5288 = vunpack.c.l.b16 %v4656
  %v5289 = vunpack.c.h.b16 %v4656
  %v5290 = vunpack.c.l.b16 %v4657
  %v5291 = vunpack.c.h.b16 %v4657
  %v5292 = vunpack.c.l.b16 %v4658
  %v5293 = vunpack.c.h.b16 %v4658
  %v5294 = vunpack.c.l.b16 %v4659
  %v5295 = vunpack.c.h.b16 %v4659
  %v5296 = vunpack.c.l.b16 %v4660
  %v5297 = vunpack.c.h.b16 %v4660
  %v5298 = vunpack.c.l.b16 %v4661
  %v5299 = vunpack.c.h.b16 %v4661
  %v5300 = vunpack.c.l.b16 %v4662
  %v5301 = vunpack.c.h.b16 %v4662
  %v5302 = vunpack.c.l.b16 %v4663
  %v5303 = vunpack.c.h.b16 %v4663
  %v5304 = vunpack.c.l.b16 %v4664
  %v5305 = vunpack.c.h.b16 %v4664
  %v5306 = vunpack.c.l.b16 %v4665
  %v5307 = vunpack.c.h.b16 %v4665
  %v5308 = vunpack.c.l.b16 %v4666
  %v5309 = vunpack.c.h.b16 %v4666
  %v5310 = vunpack.c.l.b16 %v4667
  %v5311 = vunpack.c.h.b16 %v4667
  %v5312 = vunpack.c.l.b16 %v4668
  %v5313 = vunpack.c.h.b16 %v4668
  %v5314 = vunpack.c.l.b16 %v4669
  %v5315 = vunpack.c.h.b16 %v4669
  %v5316 = vunpack.c.l.b16 %v4670
  %v5317 = vunpack.c.h.b16 %v4670
  %v5318 = vunpack.c.l.b16 %v4671
  %v5319 = vunpack.c.h.b16 %v4671
  %v5320 = vunpack.c.l.b16 %v4672
  %v5321 = vunpack.c.h.b16 %v4672
  %v5322 = vunpack.c.l.b16 %v4673
  %v5323 = vunpack.c.h.b16 %v4673
  %v5324 = vunpack.c.l.b16 %v4674
  %v5325 = vunpack.c.h.b16 %v4674
  %v5326 = vunpack.c.l.b16 %v4675
  %v5327 = vunpack.c.h.b16 %v4675
  %v5328 = vunpack.c.l.b16 %v4676
  %v5329 = vunpack.c.h.b16 %v4676
  %v5330 = vunpack.c.l.b16 %v4677
  %v5331 = vunpack.c.h.b16 %v4677
  %v5332 = vunpack.c.l.b16 %v4678
  %v5333 = vunpack.c.h.b16 %v4678
  %v5334 = vunpack.c.l.b16 %v4679
  %v5335 = vunpack.c.h.b16 %v4679
  %v5336 = vunpack.c.l.b16 %v4680
  %v5337 = vunpack.c.h.b16 %v4680
  %v5338 = vunpack.c.l.b16 %v4681
  %v5339 = vunpack.c.h.b16 %v4681
  %v5340 = vunpack.c.l.b16 %v4682
  %v5341 = vunpack.c.h.b16 %v4682
  %v5342 = vunpack.c.l.b16 %v4683
  %v5343 = vunpack.c.h.b16 %v4683
  %v5344 = vunpack.c.l.b16 %v4684
  %v5345 = vunpack.c.h.b16 %v4684
  %v5346 = vunpack.c.l.b16 %v4685
  %v5347 = vunpack.c.h.b16 %v4685
  %v5348 = vunpack.c.l.b16 %v4686
  %v5349 = vunpack.c.h.b16 %v4686
  %v5350 = vunpack.c.l.b16 %v4687
  %v5351 = vunpack.c.h.b16 %v4687
  %v5352 = vunpack.c.l.b16 %v4688
  %v5353 = vunpack.c.h.b16 %v4688
  %v5354 = vunpack.c.l.b16 %v4689
  %v5355 = vunpack.c.h.b16 %v4689
  %v5356 = vunpack.c.l.b16 %v4690
  %v5357 = vunpack.c.h.b16 %v4690
  %v5358 = vunpack.c.l.b16 %v4691
  %v5359 = vunpack.c.h.b16 %v4691
  %v5360 = vunpack.c.l.b16 %v4692
  %v5361 = vunpack.c.h.b16 %v4692
  %v5362 = vunpack.c.l.b16 %v4693
  %v5363 = vunpack.c.h.b16 %v4693
  %v5364 = vunpack.c.l.b16 %v4694
  %v5365 = vunpack.c.h.b16 %v4694
  %v5366 = vunpack.c.l.b16 %v4695
  %v5367 = vunpack.c.h.b16 %v4695
  %v5368 = vunpack.c.l.b16 %v4696
  %v5369 = vunpack.c.h.b16 %v4696
  %v5370 = vunpack.c.l.b16 %v4697
  %v5371 = vunpack.c.h.b16 %v4697
  %v5372 = vunpack.c.l.b16 %v4698
  %v5373 = vunpack.c.h.b16 %v4698
  %v5374 = vunpack.c.l.b16 %v4699
  %v5375 = vunpack.c.h.b16 %v4699
  %v5376 = vunpack.c.l.b16 %v4700
  %v5377 = vunpack.c.h.b16 %v4700
  %v5378 = vunpack.c.l.b16 %v4701
  %v5379 = vunpack.c.h.b16 %v4701
  %v5380 = vunpack.c.l.b16 %v4702
  %v5381 = vunpack.c.h.b16 %v4702
  %v5382 = vunpack.c.l.b16 %v4703
  %v5383 = vunpack.c.h.b16 %v4703
  %v5384 = vunpack.c.l.b16 %v4704
  %v5385 = vunpack.c.h.b16 %v4704
  %v5386 = vunpack.c.l.b16 %v4705
  %v5387 = vunpack.c.h.b16 %v4705
  %v5388 = vunpack.c.l.b16 %v4706
  %v5389 = vunpack.c.h.b16 %v4706
  %v5390 = vunpack.c.l.b16 %v4707
  %v5391 = vunpack.c.h.b16 %v4707
  %v5392 = vpack.c.b16 %v4946, %v4944
  %v5393 = vpack.c.b16 %v4947, %v4945
  %v5394 = vpack.c.b16 %v4950, %v4948
  %v5395 = vpack.c.b16 %v4951, %v4949
  %v5396 = vpack.c.b16 %v4954, %v4952
  %v5397 = vpack.c.b16 %v4955, %v4953
  %v5398 = vpack.c.b16 %v4958, %v4956
  %v5399 = vpack.c.b16 %v4959, %v4957
  %v5400 = vpack.c.b16 %v4962, %v4960
  %v5401 = vpack.c.b16 %v4963, %v4961
  %v5402 = vpack.c.b16 %v4966, %v4964
  %v5403 = vpack.c.b16 %v4967, %v4965
  %v5404 = vpack.c.b16 %v4970, %v4968
  %v5405 = vpack.c.b16 %v4971, %v4969
  %v5406 = vpack.c.b16 %v4974, %v4972
  %v5407 = vpack.c.b16 %v4975, %v4973
  %v5408 = vpack.c.b16 %v4978, %v4976
  %v5409 = vpack.c.b16 %v4979, %v4977
  %v5410 = vpack.c.b16 %v4982, %v4980
  %v5411 = vpack.c.b16 %v4983, %v4981
  %v5412 = vpack.c.b16 %v4986, %v4984
  %v5413 = vpack.c.b16 %v4987, %v4985
  %v5414 = vpack.c.b16 %v4990, %v4988
  %v5415 = vpack.c.b16 %v4991, %v4989
  %v5416 = vpack.c.b16 %v4994, %v4992
  %v5417 = vpack.c.b16 %v4995, %v4993
  %v5418 = vpack.c.b16 %v4998, %v4996
  %v5419 = vpack.c.b16 %v4999, %v4997
  %v5420 = vpack.c.b16 %v5002, %v5000
  %v5421 = vpack.c.b16 %v5003, %v5001
  %v5422 = vpack.c.b16 %v5006, %v5004
  %v5423 = vpack.c.b16 %v5007, %v5005
  %v5424 = vpack.c.b16 %v5010, %v5008
  %v5425 = vpack.c.b16 %v5011, %v5009
  %v5426 = vpack.c.b16 %v5014, %v5012
  %v5427 = vpack.c.b16 %v5015, %v5013
  %v5428 = vpack.c.b16 %v5018, %v5016
  %v5429 = vpack.c.b16 %v5019, %v5017
  %v5430 = vpack.c.b16 %v5022, %v5020
  %v5431 = vpack.c.b16 %v5023, %v5021
  %v5432 = vpack.c.b16 %v5026, %v5024
  %v5433 = vpack.c.b16 %v5027, %v5025
  %v5434 = vpack.c.b16 %v5030, %v5028
  %v5435 = vpack.c.b16 %v5031, %v5029
  %v5436 = vpack.c.b16 %v5034, %v5032
  %v5437 = vpack.c.b16 %v5035, %v5033
  %v5438 = vpack.c.b16 %v5038, %v5036
  %v5439 = vpack.c.b16 %v5039, %v5037
  %v5440 = vpack.c.b16 %v5042, %v5040
  %v5441 = vpack.c.b16 %v5043, %v5041
  %v5442 = vpack.c.b16 %v5046, %v5044
  %v5443 = vpack.c.b16 %v5047, %v5045
  %v5444 = vpack.c.b16 %v5050, %v5048
  %v5445 = vpack.c.b16 %v5051, %v5049
  %v5446 = vpack.c.b16 %v5054, %v5052
  %v5447 = vpack.c.b16 %v5055, %v5053
  %v5448 = vpack.c.b16 %v5058, %v5056
  %v5449 = vpack.c.b16 %v5059, %v5057
  %v5450 = vpack.c.b16 %v5062, %v5060
  %v5451 = vpack.c.b16 %v5063, %v5061
  %v5452 = vpack.c.b16 %v5066, %v5064
  %v5453 = vpack.c.b16 %v5067, %v5065
  %v5454 = vpack.c.b16 %v5070, %v5068
  %v5455 = vpack.c.b16 %v5071, %v5069
  %v5456 = vpack.c.b16 %v5074, %v5072
  %v5457 = vpack.c.b16 %v5075, %v5073
  %v5458 = vpack.c.b16 %v5078, %v5076
  %v5459 = vpack.c.b16 %v5079, %v5077
  %v5460 = vpack.c.b16 %v5082, %v5080
  %v5461 = vpack.c.b16 %v5083, %v5081
  %v5462 = vpack.c.b16 %v5086, %v5084
  %v5463 = vpack.c.b16 %v5087, %v5085
  %v5464 = vpack.c.b16 %v5090, %v5088
  %v5465 = vpack.c.b16 %v5091, %v5089
  %v5466 = vpack.c.b16 %v5094, %v5092
  %v5467 = vpack.c.b16 %v5095, %v5093
  %v5468 = vpack.c.b16 %v5098, %v5096
  %v5469 = vpack.c.b16 %v5099, %v5097
  %v5470 = vpack.c.b16 %v5102, %v5100
  %v5471 = vpack.c.b16 %v5103, %v5101
  %v5472 = vpack.c.b16 %v5106, %v5104
  %v5473 = vpack.c.b16 %v5107, %v5105
  %v5474 = vpack.c.b16 %v5110, %v5108
  %v5475 = vpack.c.b16 %v5111, %v5109
  %v5476 = vpack.c.b16 %v5114, %v5112
  %v5477 = vpack.c.b16 %v5115, %v5113
  %v5478 = vpack.c.b16 %v5118, %v5116
  %v5479 = vpack.c.b16 %v5119, %v5117
  %v5480 = vpack.c.b16 %v5122, %v5120
  %v5481 = vpack.c.b16 %v5123, %v5121
  %v5482 = vpack.c.b16 %v5126, %v5124
  %v5483 = vpack.c.b16 %v5127, %v5125
  %v5484 = vpack.c.b16 %v5130, %v5128
  %v5485 = vpack.c.b16 %v5131, %v5129
  %v5486 = vpack.c.b16 %v5134, %v5132
  %v5487 = vpack.c.b16 %v5135, %v5133
  %v5488 = vpack.c.b16 %v5138, %v5136
  %v5489 = vpack.c.b16 %v5139, %v5137
  %v5490 = vpack.c.b16 %v5142, %v5140
  %v5491 = vpack.c.b16 %v5143, %v5141
  %v5492 = vpack.c.b16 %v5146, %v5144
  %v5493 = vpack.c.b16 %v5147, %v5145
  %v5494 = vpack.c.b16 %v5150, %v5148
  %v5495 = vpack.c.b16 %v5151, %v5149
  %v5496 = vpack.c.b16 %v5154, %v5152
  %v5497 = vpack.c.b16 %v5155, %v5153
  %v5498 = vpack.c.b16 %v5158, %v5156
  %v5499 = vpack.c.b16 %v5159, %v5157
  %v5500 = vpack.c.b16 %v5162, %v5160
  %v5501 = vpack.c.b16 %v5163, %v5161
  %v5502 = vpack.c.b16 %v5166, %v5164
  %v5503 = vpack.c.b16 %v5167, %v5165
  %v5504 = vpack.c.b16 %v5170, %v5168
  %v5505 = vpack.c.b16 %v5171, %v5169
  %v5506 = vpack.c.b16 %v5174, %v5172
  %v5507 = vpack.c.b16 %v5175, %v5173
  %v5508 = vpack.c.b16 %v5178, %v5176
  %v5509 = vpack.c.b16 %v5179, %v5177
  %v5510 = vpack.c.b16 %v5182, %v5180
  %v5511 = vpack.c.b16 %v5183, %v5181
  %v5512 = vpack.c.b16 %v5186, %v5184
  %v5513 = vpack.c.b16 %v5187, %v5185
  %v5514 = vpack.c.b16 %v5190, %v5188
  %v5515 = vpack.c.b16 %v5191, %v5189
  %v5516 = vpack.c.b16 %v5194, %v5192
  %v5517 = vpack.c.b16 %v5195, %v5193
  %v5518 = vpack.c.b16 %v5198, %v5196
  %v5519 = vpack.c.b16 %v5199, %v5197
  %v5520 = vpack.c.b16 %v5202, %v5200
  %v5521 = vpack.c.b16 %v5203, %v5201
  %v5522 = vpack.c.b16 %v5206, %v5204
  %v5523 = vpack.c.b16 %v5207, %v5205
  %v5524 = vpack.c.b16 %v5210, %v5208
  %v5525 = vpack.c.b16 %v5211, %v5209
  %v5526 = vpack.c.b16 %v5214, %v5212
  %v5527 = vpack.c.b16 %v5215, %v5213
  %v5528 = vpack.c.b16 %v5218, %v5216
  %v5529 = vpack.c.b16 %v5219, %v5217
  %v5530 = vpack.c.b16 %v5222, %v5220
  %v5531 = vpack.c.b16 %v5223, %v5221
  %v5532 = vpack.c.b16 %v5226, %v5224
  %v5533 = vpack.c.b16 %v5227, %v5225
  %v5534 = vpack.c.b16 %v5230, %v5228
  %v5535 = vpack.c.b16 %v5231, %v5229
  %v5536 = vpack.c.b16 %v5234, %v5232
  %v5537 = vpack.c.b16 %v5235, %v5233
  %v5538 = vpack.c.b16 %v5238, %v5236
  %v5539 = vpack.c.b16 %v5239, %v5237
  %v5540 = vpack.c.b16 %v5242, %v5240
  %v5541 = vpack.c.b16 %v5243, %v5241
  %v5542 = vpack.c.b16 %v5246, %v5244
  %v5543 = vpack.c.b16 %v5247, %v5245
  %v5544 = vpack.c.b16 %v5250, %v5248
  %v5545 = vpack.c.b16 %v5251, %v5249
  %v5546 = vpack.c.b16 %v5254, %v5252
  %v5547 = vpack.c.b16 %v5255, %v5253
  %v5548 = vpack.c.b16 %v5258, %v5256
  %v5549 = vpack.c.b16 %v5259, %v5257
  %v5550 = vpack.c.b16 %v5262, %v5260
  %v5551 = vpack.c.b16 %v5263, %v5261
  %v5552 = vpack.c.b16 %v5266, %v5264
  %v5553 = vpack.c.b16 %v5267, %v5265
  %v5554 = vpack.c.b16 %v5270, %v5268
  %v5555 = vpack.c.b16 %v5271, %v5269
  %v5556 = vpack.c.b16 %v5274, %v5272
  %v5557 = vpack.c.b16 %v5275, %v5273
  %v5558 = vpack.c.b16 %v5278, %v5276
  %v5559 = vpack.c.b16 %v5279, %v5277
  %v5560 = vpack.c.b16 %v5282, %v5280
  %v5561 = vpack.c.b16 %v5283, %v5281
  %v5562 = vpack.c.b16 %v5286, %v5284
  %v5563 = vpack.c.b16 %v5287, %v5285
  %v5564 = vpack.c.b16 %v5290, %v5288
  %v5565 = vpack.c.b16 %v5291, %v5289
  %v5566 = vpack.c.b16 %v5294, %v5292
  %v5567 = vpack.c.b16 %v5295, %v5293
  %v5568 = vpack.c.b16 %v5298, %v5296
  %v5569 = vpack.c.b16 %v5299, %v5297
  %v5570 = vpack.c.b16 %v5302, %v5300
  %v5571 = vpack.c.b16 %v5303, %v5301
  %v5572 = vpack.c.b16 %v5306, %v5304
  %v5573 = vpack.c.b16 %v5307, %v5305
  %v5574 = vpack.c.b16 %v5310, %v5308
  %v5575 = vpack.c.b16 %v5311, %v5309
  %v5576 = vpack.c.b16 %v5314, %v5312
  %v5577 = vpack.c.b16 %v5315, %v5313
  %v5578 = vpack.c.b16 %v5318, %v5316
  %v5579 = vpack.c.b16 %v5319, %v5317
  %v5580 = vpack.c.b16 %v5322, %v5320
  %v5581 = vpack.c.b16 %v5323, %v5321
  %v5582 = vpack.c.b16 %v5326, %v5324
  %v5583 = vpack.c.b16 %v5327, %v5325
  %v5584 = vpack.c.b16 %v5330, %v5328
  %v5585 = vpack.c.b16 %v5331, %v5329
  %v5586 = vpack.c.b16 %v5334, %v5332
  %v5587 = vpack.c.b16 %v5335, %v5333
  %v5588 = vpack.c.b16 %v5338, %v5336
  %v5589 = vpack.c.b16 %v5339, %v5337
  %v5590 = vpack.c.b16 %v5342, %v5340
  %v5591 = vpack.c.b16 %v5343, %v5341
  %v5592 = vpack.c.b16 %v5346, %v5344
  %v5593 = vpack.c.b16 %v5347, %v5345
  %v5594 = vpack.c.b16 %v5350, %v5348
  %v5595 = vpack.c.b16 %v5351, %v5349
  %v5596 = vpack.c.b16 %v5354, %v5352
  %v5597 = vpack.c.b16 %v5355, %v5353
  %v5598 = vpack.c.b16 %v5358, %v5356
  %v5599 = vpack.c.b16 %v5359, %v5357
  %v5600 = vpack.c.b16 %v5362, %v5360
  %v5601 = vpack.c.b16 %v5363, %v5361
  %v5602 = vpack.c.b16 %v5366, %v5364
  %v5603 = vpack.c.b16 %v5367, %v5365
  %v5604 = vpack.c.b16 %v5370, %v5368
  %v5605 = vpack.c.b16 %v5371, %v5369
  %v5606 = vpack.c.b16 %v5374, %v5372
  %v5607 = vpack.c.b16 %v5375, %v5373
  %v5608 = vpack.c.b16 %v5378, %v5376
  %v5609 = vpack.c.b16 %v5379, %v5377
  %v5610 = vpack.c.b16 %v5382, %v5380
  %v5611 = vpack.c.b16 %v5383, %v5381
  %v5612 = vpack.c.b16 %v5386, %v5384
  %v5613 = vpack.c.b16 %v5387, %v5385
  %v5614 = vpack.c.b16 %v5390, %v5388
  %v5615 = vpack.c.b16 %v5391, %v5389
  %5840 = vmatprep.subr.bf16.mxu0 %v5407
  %5841 = vmatpush1.bf16.msra.mxu0 %v5406
  %5842 = vmatprep.subr.bf16.mxu0 %v5405
  %5843 = vmatpush1.bf16.msra.mxu0 %v5404
  %5844 = vmatprep.subr.bf16.mxu0 %v5403
  %5845 = vmatpush1.bf16.msra.mxu0 %v5402
  %5846 = vmatprep.subr.bf16.mxu0 %v5401
  %5847 = vmatpush1.bf16.msra.mxu0 %v5400
  %5848 = vmatprep.subr.bf16.mxu0 %v5399
  %5849 = vmatpush1.bf16.msra.mxu0 %v5398
  %5850 = vmatprep.subr.bf16.mxu0 %v5397
  %5851 = vmatpush1.bf16.msra.mxu0 %v5396
  %5852 = vmatprep.subr.bf16.mxu0 %v5395
  %5853 = vmatpush1.bf16.msra.mxu0 %v5394
  %5854 = vmatprep.subr.bf16.mxu0 %v5393
  %5855 = vmatpush1.bf16.msra.mxu0 %v5392
  %5856 = vmatprep.subr.bf16.mxu0 %v5423
  %5857 = vmatpush2.bf16.msra.mxu0 %v5422
  %5858 = vmatprep.subr.bf16.mxu0 %v5421
  %5859 = vmatpush2.bf16.msra.mxu0 %v5420
  %5860 = vmatprep.subr.bf16.mxu0 %v5419
  %5861 = vmatpush2.bf16.msra.mxu0 %v5418
  %5862 = vmatprep.subr.bf16.mxu0 %v5417
  %5863 = vmatpush2.bf16.msra.mxu0 %v5416
  %5864 = vmatprep.subr.bf16.mxu0 %v5415
  %5865 = vmatpush2.bf16.msra.mxu0 %v5414
  %5866 = vmatprep.subr.bf16.mxu0 %v5413
  %5867 = vmatpush2.bf16.msra.mxu0 %v5412
  %5868 = vmatprep.subr.bf16.mxu0 %v5411
  %5869 = vmatpush2.bf16.msra.mxu0 %v5410
  %5870 = vmatprep.subr.bf16.mxu0 %v5409
  %5871 = vmatpush2.bf16.msra.mxu0 %v5408
  %5872 = vmatprep.mubr.bf16.mxu0 %v4471
  %5873 = vmatmul.mubr.bf16.gmra.mxu0 %v4470
  %v5874 = vpop.f32.mrf.mxu0
  %v5875 = vadd.f32 %v4713, %v5874
  %v5876 = vpop.f32.mrf.mxu0
  %v5877 = vadd.f32 %v4717, %v5876
  %v5878 = vpop.f32.mrf.mxu0
  %v5879 = vpop.f32.mrf.mxu0
  %5880 = vdwg.mxu0
  %5881 = vmatprep.subr.bf16.mxu0 %v5439
  %5882 = vmatpush1.bf16.msra.mxu0 %v5438
  %5883 = vmatprep.subr.bf16.mxu0 %v5437
  %5884 = vmatpush1.bf16.msra.mxu0 %v5436
  %5885 = vmatprep.subr.bf16.mxu0 %v5435
  %5886 = vmatpush1.bf16.msra.mxu0 %v5434
  %5887 = vmatprep.subr.bf16.mxu0 %v5433
  %5888 = vmatpush1.bf16.msra.mxu0 %v5432
  %5889 = vmatprep.subr.bf16.mxu0 %v5431
  %5890 = vmatpush1.bf16.msra.mxu0 %v5430
  %5891 = vmatprep.subr.bf16.mxu0 %v5429
  %5892 = vmatpush1.bf16.msra.mxu0 %v5428
  %5893 = vmatprep.subr.bf16.mxu0 %v5427
  %5894 = vmatpush1.bf16.msra.mxu0 %v5426
  %5895 = vmatprep.subr.bf16.mxu0 %v5425
  %5896 = vmatpush1.bf16.msra.mxu0 %v5424
  %5897 = vmatprep.subr.bf16.mxu0 %v5455
  %5898 = vmatpush2.bf16.msra.mxu0 %v5454
  %5899 = vmatprep.subr.bf16.mxu0 %v5453
  %5900 = vmatpush2.bf16.msra.mxu0 %v5452
  %5901 = vmatprep.subr.bf16.mxu0 %v5451
  %5902 = vmatpush2.bf16.msra.mxu0 %v5450
  %5903 = vmatprep.subr.bf16.mxu0 %v5449
  %5904 = vmatpush2.bf16.msra.mxu0 %v5448
  %5905 = vmatprep.subr.bf16.mxu0 %v5447
  %5906 = vmatpush2.bf16.msra.mxu0 %v5446
  %5907 = vmatprep.subr.bf16.mxu0 %v5445
  %5908 = vmatpush2.bf16.msra.mxu0 %v5444
  %5909 = vmatprep.subr.bf16.mxu0 %v5443
  %5910 = vmatpush2.bf16.msra.mxu0 %v5442
  %5911 = vmatprep.subr.bf16.mxu0 %v5441
  %5912 = vmatpush2.bf16.msra.mxu0 %v5440
  %5913 = vmatprep.mubr.bf16.mxu0 %v4473
  %5914 = vmatmul.mubr.bf16.gmra.mxu0 %v4472
  %v5915 = vpop.f32.mrf.mxu0
  %v5916 = vadd.f32 %v5875, %v5915
  %v5917 = vpop.f32.mrf.mxu0
  %v5918 = vadd.f32 %v5877, %v5917
  %v5919 = vpop.f32.mrf.mxu0
  %v5920 = vpop.f32.mrf.mxu0
  %5921 = vdwg.mxu0
  %5922 = vmatprep.subr.bf16.mxu0 %v5471
  %5923 = vmatpush1.bf16.msra.mxu0 %v5470
  %5924 = vmatprep.subr.bf16.mxu0 %v5469
  %5925 = vmatpush1.bf16.msra.mxu0 %v5468
  %5926 = vmatprep.subr.bf16.mxu0 %v5467
  %5927 = vmatpush1.bf16.msra.mxu0 %v5466
  %5928 = vmatprep.subr.bf16.mxu0 %v5465
  %5929 = vmatpush1.bf16.msra.mxu0 %v5464
  %5930 = vmatprep.subr.bf16.mxu0 %v5463
  %5931 = vmatpush1.bf16.msra.mxu0 %v5462
  %5932 = vmatprep.subr.bf16.mxu0 %v5461
  %5933 = vmatpush1.bf16.msra.mxu0 %v5460
  %5934 = vmatprep.subr.bf16.mxu0 %v5459
  %5935 = vmatpush1.bf16.msra.mxu0 %v5458
  %5936 = vmatprep.subr.bf16.mxu0 %v5457
  %5937 = vmatpush1.bf16.msra.mxu0 %v5456
  %5938 = vmatprep.subr.bf16.mxu0 %v5487
  %5939 = vmatpush2.bf16.msra.mxu0 %v5486
  %5940 = vmatprep.subr.bf16.mxu0 %v5485
  %5941 = vmatpush2.bf16.msra.mxu0 %v5484
  %5942 = vmatprep.subr.bf16.mxu0 %v5483
  %5943 = vmatpush2.bf16.msra.mxu0 %v5482
  %5944 = vmatprep.subr.bf16.mxu0 %v5481
  %5945 = vmatpush2.bf16.msra.mxu0 %v5480
  %5946 = vmatprep.subr.bf16.mxu0 %v5479
  %5947 = vmatpush2.bf16.msra.mxu0 %v5478
  %5948 = vmatprep.subr.bf16.mxu0 %v5477
  %5949 = vmatpush2.bf16.msra.mxu0 %v5476
  %5950 = vmatprep.subr.bf16.mxu0 %v5475
  %5951 = vmatpush2.bf16.msra.mxu0 %v5474
  %5952 = vmatprep.subr.bf16.mxu0 %v5473
  %5953 = vmatpush2.bf16.msra.mxu0 %v5472
  %5954 = vmatprep.mubr.bf16.mxu0 %v4475
  %5955 = vmatmul.mubr.bf16.gmra.mxu0 %v4474
  %v5956 = vpop.f32.mrf.mxu0
  %v5957 = vadd.f32 %v5916, %v5956
  %v5958 = vpop.f32.mrf.mxu0
  %v5959 = vadd.f32 %v5918, %v5958
  %v5960 = vpop.f32.mrf.mxu0
  %v5961 = vpop.f32.mrf.mxu0
  %5962 = vdwg.mxu0
  %5963 = vmatprep.subr.bf16.mxu0 %v5503
  %5964 = vmatpush1.bf16.msra.mxu0 %v5502
  %5965 = vmatprep.subr.bf16.mxu0 %v5501
  %5966 = vmatpush1.bf16.msra.mxu0 %v5500
  %5967 = vmatprep.subr.bf16.mxu0 %v5499
  %5968 = vmatpush1.bf16.msra.mxu0 %v5498
  %5969 = vmatprep.subr.bf16.mxu0 %v5497
  %5970 = vmatpush1.bf16.msra.mxu0 %v5496
  %5971 = vmatprep.subr.bf16.mxu0 %v5495
  %5972 = vmatpush1.bf16.msra.mxu0 %v5494
  %5973 = vmatprep.subr.bf16.mxu0 %v5493
  %5974 = vmatpush1.bf16.msra.mxu0 %v5492
  %5975 = vmatprep.subr.bf16.mxu0 %v5491
  %5976 = vmatpush1.bf16.msra.mxu0 %v5490
  %5977 = vmatprep.subr.bf16.mxu0 %v5489
  %5978 = vmatpush1.bf16.msra.mxu0 %v5488
  %5979 = vmatprep.subr.bf16.mxu0 %v5519
  %5980 = vmatpush2.bf16.msra.mxu0 %v5518
  %5981 = vmatprep.subr.bf16.mxu0 %v5517
  %5982 = vmatpush2.bf16.msra.mxu0 %v5516
  %5983 = vmatprep.subr.bf16.mxu0 %v5515
  %5984 = vmatpush2.bf16.msra.mxu0 %v5514
  %5985 = vmatprep.subr.bf16.mxu0 %v5513
  %5986 = vmatpush2.bf16.msra.mxu0 %v5512
  %5987 = vmatprep.subr.bf16.mxu0 %v5511
  %5988 = vmatpush2.bf16.msra.mxu0 %v5510
  %5989 = vmatprep.subr.bf16.mxu0 %v5509
  %5990 = vmatpush2.bf16.msra.mxu0 %v5508
  %5991 = vmatprep.subr.bf16.mxu0 %v5507
  %5992 = vmatpush2.bf16.msra.mxu0 %v5506
  %5993 = vmatprep.subr.bf16.mxu0 %v5505
  %5994 = vmatpush2.bf16.msra.mxu0 %v5504
  %5995 = vmatprep.mubr.bf16.mxu0 %v4477
  %5996 = vmatmul.mubr.bf16.gmra.mxu0 %v4476
  %v5997 = vpop.f32.mrf.mxu0
  %v5998 = vadd.f32 %v5957, %v5997
  %v5999 = vpop.f32.mrf.mxu0
  %v6000 = vadd.f32 %v5959, %v5999
  %v6001 = vpop.f32.mrf.mxu0
  %v6002 = vpop.f32.mrf.mxu0
  %6003 = vdwg.mxu0
  %6004 = vmatprep.subr.bf16.mxu0 %v5535
  %6005 = vmatpush1.bf16.msra.mxu0 %v5534
  %6006 = vmatprep.subr.bf16.mxu0 %v5533
  %6007 = vmatpush1.bf16.msra.mxu0 %v5532
  %6008 = vmatprep.subr.bf16.mxu0 %v5531
  %6009 = vmatpush1.bf16.msra.mxu0 %v5530
  %6010 = vmatprep.subr.bf16.mxu0 %v5529
  %6011 = vmatpush1.bf16.msra.mxu0 %v5528
  %6012 = vmatprep.subr.bf16.mxu0 %v5527
  %6013 = vmatpush1.bf16.msra.mxu0 %v5526
  %6014 = vmatprep.subr.bf16.mxu0 %v5525
  %6015 = vmatpush1.bf16.msra.mxu0 %v5524
  %6016 = vmatprep.subr.bf16.mxu0 %v5523
  %6017 = vmatpush1.bf16.msra.mxu0 %v5522
  %6018 = vmatprep.subr.bf16.mxu0 %v5521
  %6019 = vmatpush1.bf16.msra.mxu0 %v5520
  %6020 = vmatprep.subr.bf16.mxu0 %v5551
  %6021 = vmatpush2.bf16.msra.mxu0 %v5550
  %6022 = vmatprep.subr.bf16.mxu0 %v5549
  %6023 = vmatpush2.bf16.msra.mxu0 %v5548
  %6024 = vmatprep.subr.bf16.mxu0 %v5547
  %6025 = vmatpush2.bf16.msra.mxu0 %v5546
  %6026 = vmatprep.subr.bf16.mxu0 %v5545
  %6027 = vmatpush2.bf16.msra.mxu0 %v5544
  %6028 = vmatprep.subr.bf16.mxu0 %v5543
  %6029 = vmatpush2.bf16.msra.mxu0 %v5542
  %6030 = vmatprep.subr.bf16.mxu0 %v5541
  %6031 = vmatpush2.bf16.msra.mxu0 %v5540
  %6032 = vmatprep.subr.bf16.mxu0 %v5539
  %6033 = vmatpush2.bf16.msra.mxu0 %v5538
  %6034 = vmatprep.subr.bf16.mxu0 %v5537
  %6035 = vmatpush2.bf16.msra.mxu0 %v5536
  %6036 = vmatprep.mubr.bf16.mxu0 %v4479
  %6037 = vmatmul.mubr.bf16.gmra.mxu0 %v4478
  %v6038 = vpop.f32.mrf.mxu0
  %v6039 = vadd.f32 %v5998, %v6038
  %v6040 = vpop.f32.mrf.mxu0
  %v6041 = vadd.f32 %v6000, %v6040
  %v6042 = vpop.f32.mrf.mxu0
  %v6043 = vpop.f32.mrf.mxu0
  %6044 = vdwg.mxu0
  %6045 = vmatprep.subr.bf16.mxu0 %v5567
  %6046 = vmatpush1.bf16.msra.mxu0 %v5566
  %6047 = vmatprep.subr.bf16.mxu0 %v5565
  %6048 = vmatpush1.bf16.msra.mxu0 %v5564
  %6049 = vmatprep.subr.bf16.mxu0 %v5563
  %6050 = vmatpush1.bf16.msra.mxu0 %v5562
  %6051 = vmatprep.subr.bf16.mxu0 %v5561
  %6052 = vmatpush1.bf16.msra.mxu0 %v5560
  %6053 = vmatprep.subr.bf16.mxu0 %v5559
  %6054 = vmatpush1.bf16.msra.mxu0 %v5558
  %6055 = vmatprep.subr.bf16.mxu0 %v5557
  %6056 = vmatpush1.bf16.msra.mxu0 %v5556
  %6057 = vmatprep.subr.bf16.mxu0 %v5555
  %6058 = vmatpush1.bf16.msra.mxu0 %v5554
  %6059 = vmatprep.subr.bf16.mxu0 %v5553
  %6060 = vmatpush1.bf16.msra.mxu0 %v5552
  %6061 = vmatprep.subr.bf16.mxu0 %v5583
  %6062 = vmatpush2.bf16.msra.mxu0 %v5582
  %6063 = vmatprep.subr.bf16.mxu0 %v5581
  %6064 = vmatpush2.bf16.msra.mxu0 %v5580
  %6065 = vmatprep.subr.bf16.mxu0 %v5579
  %6066 = vmatpush2.bf16.msra.mxu0 %v5578
  %6067 = vmatprep.subr.bf16.mxu0 %v5577
  %6068 = vmatpush2.bf16.msra.mxu0 %v5576
  %6069 = vmatprep.subr.bf16.mxu0 %v5575
  %6070 = vmatpush2.bf16.msra.mxu0 %v5574
  %6071 = vmatprep.subr.bf16.mxu0 %v5573
  %6072 = vmatpush2.bf16.msra.mxu0 %v5572
  %6073 = vmatprep.subr.bf16.mxu0 %v5571
  %6074 = vmatpush2.bf16.msra.mxu0 %v5570
  %6075 = vmatprep.subr.bf16.mxu0 %v5569
  %6076 = vmatpush2.bf16.msra.mxu0 %v5568
  %6077 = vmatprep.mubr.bf16.mxu0 %v4481
  %6078 = vmatmul.mubr.bf16.gmra.mxu0 %v4480
  %v6079 = vpop.f32.mrf.mxu0
  %v6080 = vadd.f32 %v6039, %v6079
  %v6081 = vpop.f32.mrf.mxu0
  %v6082 = vadd.f32 %v6041, %v6081
  %v6083 = vpop.f32.mrf.mxu0
  %v6084 = vpop.f32.mrf.mxu0
  %6085 = vdwg.mxu0
  %6086 = vmatprep.subr.bf16.mxu0 %v5599
  %6087 = vmatpush1.bf16.msra.mxu0 %v5598
  %6088 = vmatprep.subr.bf16.mxu0 %v5597
  %6089 = vmatpush1.bf16.msra.mxu0 %v5596
  %6090 = vmatprep.subr.bf16.mxu0 %v5595
  %6091 = vmatpush1.bf16.msra.mxu0 %v5594
  %6092 = vmatprep.subr.bf16.mxu0 %v5593
  %6093 = vmatpush1.bf16.msra.mxu0 %v5592
  %6094 = vmatprep.subr.bf16.mxu0 %v5591
  %6095 = vmatpush1.bf16.msra.mxu0 %v5590
  %6096 = vmatprep.subr.bf16.mxu0 %v5589
  %6097 = vmatpush1.bf16.msra.mxu0 %v5588
  %6098 = vmatprep.subr.bf16.mxu0 %v5587
  %6099 = vmatpush1.bf16.msra.mxu0 %v5586
  %6100 = vmatprep.subr.bf16.mxu0 %v5585
  %6101 = vmatpush1.bf16.msra.mxu0 %v5584
  %6102 = vmatprep.subr.bf16.mxu0 %v5615
  %6103 = vmatpush2.bf16.msra.mxu0 %v5614
  %6104 = vmatprep.subr.bf16.mxu0 %v5613
  %6105 = vmatpush2.bf16.msra.mxu0 %v5612
  %6106 = vmatprep.subr.bf16.mxu0 %v5611
  %6107 = vmatpush2.bf16.msra.mxu0 %v5610
  %6108 = vmatprep.subr.bf16.mxu0 %v5609
  %6109 = vmatpush2.bf16.msra.mxu0 %v5608
  %6110 = vmatprep.subr.bf16.mxu0 %v5607
  %6111 = vmatpush2.bf16.msra.mxu0 %v5606
  %6112 = vmatprep.subr.bf16.mxu0 %v5605
  %6113 = vmatpush2.bf16.msra.mxu0 %v5604
  %6114 = vmatprep.subr.bf16.mxu0 %v5603
  %6115 = vmatpush2.bf16.msra.mxu0 %v5602
  %6116 = vmatprep.subr.bf16.mxu0 %v5601
  %6117 = vmatpush2.bf16.msra.mxu0 %v5600
  %6118 = vmatprep.mubr.bf16.mxu0 %v4483
  %6119 = vmatmul.mubr.bf16.gmra.mxu0 %v4482
  %v6120 = vpop.f32.mrf.mxu0
  %v6121 = vadd.f32 %v6080, %v6120
  %v6122 = vpop.f32.mrf.mxu0
  %v6123 = vadd.f32 %v6082, %v6122
  %v6124 = vpop.f32.mrf.mxu0
  %v6125 = vpop.f32.mrf.mxu0
  %6126 = vdwg.mxu0
  %v6127 = vmax.f32 %v6121, 0.0
  %v6128 = vmax.f32 %v6123, 0.0
  %v6129 = vld [vmem:[%s9] sm:$0xff]
  %v6130 = vld [vmem:[%s9 + $0x8] sm:$0xff]
  %v6131 = vld [vmem:[%s9 + $0x10] sm:$0xff]
  %v6132 = vld [vmem:[%s9 + $0x18] sm:$0xff]
  %v6133 = vld [vmem:[%s9 + $0x20] sm:$0xff]
  %v6134 = vld [vmem:[%s9 + $0x28] sm:$0xff]
  %v6135 = vld [vmem:[%s9 + $0x30] sm:$0xff]
  %v6136 = vld [vmem:[%s9 + $0x38] sm:$0xff]
  %v6137 = vld [vmem:[%s9 + $0x40] sm:$0xff]
  %v6138 = vld [vmem:[%s9 + $0x48] sm:$0xff]
  %v6139 = vld [vmem:[%s9 + $0x50] sm:$0xff]
  %v6140 = vld [vmem:[%s9 + $0x58] sm:$0xff]
  %v6141 = vld [vmem:[%s9 + $0x60] sm:$0xff]
  %v6142 = vld [vmem:[%s9 + $0x68] sm:$0xff]
  %v6143 = vld [vmem:[%s9 + $0x70] sm:$0xff]
  %v6144 = vld [vmem:[%s9 + $0x78] sm:$0xff]
  %v6145 = vld [vmem:[%s9 + $0x80] sm:$0xff]
  %v6146 = vld [vmem:[%s9 + $0x88] sm:$0xff]
  %v6147 = vld [vmem:[%s9 + $0x90] sm:$0xff]
  %v6148 = vld [vmem:[%s9 + $0x98] sm:$0xff]
  %v6149 = vld [vmem:[%s9 + $0xa0] sm:$0xff]
  %v6150 = vld [vmem:[%s9 + $0xa8] sm:$0xff]
  %v6151 = vld [vmem:[%s9 + $0xb0] sm:$0xff]
  %v6152 = vld [vmem:[%s9 + $0xb8] sm:$0xff]
  %v6153 = vld [vmem:[%s9 + $0xc0] sm:$0xff]
  %v6154 = vld [vmem:[%s9 + $0xc8] sm:$0xff]
  %v6155 = vld [vmem:[%s9 + $0xd0] sm:$0xff]
  %v6156 = vld [vmem:[%s9 + $0xd8] sm:$0xff]
  %v6157 = vld [vmem:[%s9 + $0xe0] sm:$0xff]
  %v6158 = vld [vmem:[%s9 + $0xe8] sm:$0xff]
  %v6159 = vld [vmem:[%s9 + $0xf0] sm:$0xff]
  %v6160 = vld [vmem:[%s9 + $0xf8] sm:$0xff]
  %v6161 = vld [vmem:[%s10] sm:$0x1]
  %v6163 = vlaneseq
  %v6164 = vshrl.u32 %v6163, 7
  %v6165 = vsub.s32 0, %v6164
  %v6166 = vrot.slane %v6161, %v6165
  %6168 = vmatprep.subr.mxu0 0.0
  %6169 = vmatpush1.msra.mxu0 %v6144
  %6170 = vmatprep.subr.mxu0 0.0
  %6171 = vmatpush1.msra.mxu0 %v6143
  %6172 = vmatprep.subr.mxu0 0.0
  %6173 = vmatpush1.msra.mxu0 %v6142
  %6174 = vmatprep.subr.mxu0 0.0
  %6175 = vmatpush1.msra.mxu0 %v6141
  %6176 = vmatprep.subr.mxu0 0.0
  %6177 = vmatpush1.msra.mxu0 %v6140
  %6178 = vmatprep.subr.mxu0 0.0
  %6179 = vmatpush1.msra.mxu0 %v6139
  %6180 = vmatprep.subr.mxu0 0.0
  %6181 = vmatpush1.msra.mxu0 %v6138
  %6182 = vmatprep.subr.mxu0 0.0
  %6183 = vmatpush1.msra.mxu0 %v6137
  %6184 = vmatprep.subr.mxu0 0.0
  %6185 = vmatpush1.msra.mxu0 %v6136
  %6186 = vmatprep.subr.mxu0 0.0
  %6187 = vmatpush1.msra.mxu0 %v6135
  %6188 = vmatprep.subr.mxu0 0.0
  %6189 = vmatpush1.msra.mxu0 %v6134
  %6190 = vmatprep.subr.mxu0 0.0
  %6191 = vmatpush1.msra.mxu0 %v6133
  %6192 = vmatprep.subr.mxu0 0.0
  %6193 = vmatpush1.msra.mxu0 %v6132
  %6194 = vmatprep.subr.mxu0 0.0
  %6195 = vmatpush1.msra.mxu0 %v6131
  %6196 = vmatprep.subr.mxu0 0.0
  %6197 = vmatpush1.msra.mxu0 %v6130
  %6198 = vmatprep.subr.mxu0 0.0
  %6199 = vmatpush1.msra.mxu0 %v6129
  %6200 = vmatprep.subr.mxu0 0.0
  %6201 = vmatpush2.msra.mxu0 %v6160
  %6202 = vmatprep.subr.mxu0 0.0
  %6203 = vmatpush2.msra.mxu0 %v6159
  %6204 = vmatprep.subr.mxu0 0.0
  %6205 = vmatpush2.msra.mxu0 %v6158
  %6206 = vmatprep.subr.mxu0 0.0
  %6207 = vmatpush2.msra.mxu0 %v6157
  %6208 = vmatprep.subr.mxu0 0.0
  %6209 = vmatpush2.msra.mxu0 %v6156
  %6210 = vmatprep.subr.mxu0 0.0
  %6211 = vmatpush2.msra.mxu0 %v6155
  %6212 = vmatprep.subr.mxu0 0.0
  %6213 = vmatpush2.msra.mxu0 %v6154
  %6214 = vmatprep.subr.mxu0 0.0
  %6215 = vmatpush2.msra.mxu0 %v6153
  %6216 = vmatprep.subr.mxu0 0.0
  %6217 = vmatpush2.msra.mxu0 %v6152
  %6218 = vmatprep.subr.mxu0 0.0
  %6219 = vmatpush2.msra.mxu0 %v6151
  %6220 = vmatprep.subr.mxu0 0.0
  %6221 = vmatpush2.msra.mxu0 %v6150
  %6222 = vmatprep.subr.mxu0 0.0
  %6223 = vmatpush2.msra.mxu0 %v6149
  %6224 = vmatprep.subr.mxu0 0.0
  %6225 = vmatpush2.msra.mxu0 %v6148
  %6226 = vmatprep.subr.mxu0 0.0
  %6227 = vmatpush2.msra.mxu0 %v6147
  %6228 = vmatprep.subr.mxu0 0.0
  %6229 = vmatpush2.msra.mxu0 %v6146
  %6230 = vmatprep.subr.mxu0 0.0
  %6231 = vmatpush2.msra.mxu0 %v6145
  %6232 = vmatprep.mubr.f32.mxu0 %v6128
  %6233 = vmatmul.mubr.f32.gmra.mxu0 %v6127
  %v6234 = vpop.f32.mrf.mxu0
  %v6235 = vadd.f32 %v6166, %v6234
  %v6236 = vpop.f32.mrf.mxu0
  %6237 = vdwg.mxu0
  %v6238 = vld [vmem:[%s11] sm:$0x3]
  %v6239 = vxor.u32 %v6235, 2147483648
  %v6240 = vmul.f32 %v6239, 1.442695
  %v6241 = vpow.pop %v6240
  %v6242 = vadd.f32 %v6241, 1.0
  %v6243 = vrcp.pop %v6242
  %v6244 = vmul.f32 1.0, %v6243
  %v6245 = vlaneseq
  %v6246 = vshrl.u32 %v6245, 7
  %v6247 = vsub.s32 0, %v6246
  %v6248 = vrot.slane %v6238, %v6247
  %v6249 = vmul.f32 %v6244, %v6248
  %v6250 = vlaneseq
  %v6251 = vshrl.u32 %v6250, 7
  %v6252 = vsub.s32 1, %v6251
  %v6253 = vrot.slane %v6238, %v6252
  %v6254 = vadd.f32 %v6249, %v6253
  %vm6255 = vcmask 15360
  %6256 = vst.msk [vmem:[%s12] sm:$0xff] %vm6255, %v6254
  // Predicated region
  $region50: #{net_forward.1} parent=0 // pred_check
    _
  $region51: #{net_forward.1} parent=0 // pred_check_branch
    %6258 = sbr.rel (0) target = $region53
  $region52: #{net_forward.1} parent=0 // pred_region
    _
  $region53: #{net_forward.1} parent=0 // pred_fallthru
    _
  // Predicated region
  $region54: #{net_forward.1} parent=0 // pred_check
    _
  $region55: #{net_forward.1} parent=0 // pred_check_branch
    %6260 = sbr.rel (0) target = $region57
  $region56: #{net_forward.1} parent=0 // pred_region
    _
  $region57: #{net_forward.1} parent=0 // pred_fallthru
    _

</llo_original>
